<compile_context>
chip_gen: v5e
topology: v5e:2x2
jax: 0.10.0
libtpu: 0.0.40
codegen_flags: <defaults>
</compile_context>

<pallas_src>
import numpy as np
import jax
import jax.numpy as jnp
from jax.experimental import pallas as pl
from jax.experimental.pallas import tpu as pltpu

# ----------------------------- hyper-parameters -----------------------------
STATE_DIM = 4
ACTION_DIM = 2
D_IN = STATE_DIM + ACTION_DIM
HIDDEN = 32                 # hidden_dim (scaled down from default 128)
NHEAD = 4
NLAYERS = 2
FFN = 2048                  # nn.TransformerEncoderLayer default dim_feedforward
HIDDEN2 = HIDDEN // 2
HEAD_DIM = HIDDEN // NHEAD
LN_EPS = 1e-5
LEAKY_SLOPE = 0.01

B = 2                       # batch
S = 8                       # sequence length
M = B * S                   # total token rows, b-major: row = b * S + s

# ---- row offsets inside the packed (ROWS32, 32) small-parameter tensor -----
OFF_WIN = 0                 # (D_IN, 32): rows 0:4 = w_in_state, 4:6 = w_in_action
OFF_BIN = 8                 # (1, 32)    input-proj bias
OFF_PE = 16                 # (M, 32)    positional encoding pre-tiled over batch
OFF_LVEC = 32               # per-layer 16-row slot, 9 used:
LVEC_STRIDE = 16            #   bq, bk, bv, bo, ln1_g, ln1_b, b2, ln2_g, ln2_b
OFF_HW1 = 64                # (32, 32)   fc_out first Linear weight
OFF_HV32 = 96               # (3, 32)    fc_out hb1, ln_g, ln_b
OFF_HMASK = 104             # (32, 32)   block-diagonal head mask (ones per head)
ROWS32 = 136

# ---- row offsets inside the packed (ROWS16, 16) head tensor ----------------
OFF_HW2 = 0                 # (32, 16)   fc_out second Linear weight
OFF_HV16 = 32               # (3, 16)    hb2, ln_g, ln_b
OFF_HW3T = 35               # (1, 16)    final Linear weight (transposed)
OFF_HB3 = 36                # (1, 16)    final bias broadcast across lanes
ROWS16 = 40


# ------------------------------ parameter setup ------------------------------
def positional_encoding(d_model, max_len=100):
    position = np.arange(max_len)[:, None].astype(np.float32)
    div_term = np.exp(
        np.arange(0, d_model, 2).astype(np.float32) * -(np.log(10000.0) / d_model))
    pe = np.zeros((max_len, d_model), np.float32)
    pe[:, 0::2] = np.sin(position * div_term)
    pe[:, 1::2] = np.cos(position * div_term)
    return pe


def init_params(key):
    """Deterministic synthetic weights, packed into a handful of tensors."""
    keys = iter(jax.random.split(key, 64))

    def dense(fan_in, fan_out):
        k1, k2 = jax.random.split(next(keys))
        bound = 1.0 / np.sqrt(fan_in)
        w = jax.random.uniform(k1, (fan_in, fan_out), jnp.float32, -bound, bound)
        b = jax.random.uniform(k2, (1, fan_out), jnp.float32, -bound, bound)
        return w, b

    s32 = np.zeros((ROWS32, HIDDEN), np.float32)
    s16 = np.zeros((ROWS16, HIDDEN2), np.float32)

    # input projection (concat folded into two weight blocks) + pe + head mask
    w_in, b_in = dense(D_IN, HIDDEN)
    s32[OFF_WIN:OFF_WIN + D_IN] = np.asarray(w_in)
    s32[OFF_BIN] = np.asarray(b_in)[0]
    pe = positional_encoding(HIDDEN)[:S]
    s32[OFF_PE:OFF_PE + M] = np.tile(pe, (B, 1))          # pre-tiled, b-major rows
    s32[OFF_HMASK:OFF_HMASK + HIDDEN] = np.kron(
        np.eye(NHEAD, dtype=np.float32), np.ones((HEAD_DIM, HEAD_DIM), np.float32))

    wqkv_l, wo_l, w1_l, b1_l, w2t_l = [], [], [], [], []
    for l in range(NLAYERS):
        wq, bq = dense(HIDDEN, HIDDEN)
        wk, bk = dense(HIDDEN, HIDDEN)
        wv, bv = dense(HIDDEN, HIDDEN)
        wo, bo = dense(HIDDEN, HIDDEN)
        w1, b1 = dense(HIDDEN, FFN)
        w2, b2 = dense(FFN, HIDDEN)
        base = OFF_LVEC + l * LVEC_STRIDE
        s32[base + 0] = np.asarray(bq)[0]
        s32[base + 1] = np.asarray(bk)[0]
        s32[base + 2] = np.asarray(bv)[0]
        s32[base + 3] = np.asarray(bo)[0]
        s32[base + 4] = 1.0                                # LayerNorm1 gamma
        s32[base + 5] = 0.0                                # LayerNorm1 beta
        s32[base + 6] = np.asarray(b2)[0]
        s32[base + 7] = 1.0                                # LayerNorm2 gamma
        s32[base + 8] = 0.0                                # LayerNorm2 beta
        wqkv_l.append(jnp.concatenate([wq, wk, wv], axis=1))     # (32, 96) f32
        wo_l.append(wo)                                          # (32, 32) f32
        w1_l.append(w1.astype(jnp.bfloat16))                     # (32, 2048) bf16
        b1_l.append(b1)                                          # (1, 2048) f32
        w2t_l.append(w2.T.astype(jnp.bfloat16))                  # (32, 2048) bf16

    # fc_out head
    hw1, hb1 = dense(HIDDEN, HIDDEN)
    hw2, hb2 = dense(HIDDEN, HIDDEN2)
    hw3, hb3 = dense(HIDDEN2, 1)
    s32[OFF_HW1:OFF_HW1 + HIDDEN] = np.asarray(hw1)
    s32[OFF_HV32 + 0] = np.asarray(hb1)[0]
    s32[OFF_HV32 + 1] = 1.0                                # LayerNorm gamma
    s32[OFF_HV32 + 2] = 0.0                                # LayerNorm beta
    s16[OFF_HW2:OFF_HW2 + HIDDEN] = np.asarray(hw2)
    s16[OFF_HV16 + 0] = np.asarray(hb2)[0]
    s16[OFF_HV16 + 1] = 1.0
    s16[OFF_HV16 + 2] = 0.0
    s16[OFF_HW3T] = np.asarray(hw3)[:, 0]
    s16[OFF_HB3] = float(np.asarray(hb3)[0, 0])            # broadcast over lanes

    return {
        'small32': jnp.asarray(s32),          # (136, 32) f32
        'small16': jnp.asarray(s16),          # (40, 16)  f32
        'w_qkv': jnp.stack(wqkv_l),           # (L, 32, 96)   f32
        'wo': jnp.stack(wo_l),                # (L, 32, 32)   f32
        'b1': jnp.stack(b1_l),                # (L, 1, 2048)  f32
        'w1': jnp.stack(w1_l),                # (L, 32, 2048) bf16  (HBM, prefetched)
        'w2t': jnp.stack(w2t_l),              # (L, 32, 2048) bf16  (HBM, prefetched)
    }


# --------------------------------- kernel ------------------------------------
def _layernorm(x, g, b):
    mean = jnp.mean(x, axis=-1, keepdims=True)
    var = jnp.mean(jnp.square(x - mean), axis=-1, keepdims=True)
    return (x - mean) * jax.lax.rsqrt(var + LN_EPS) * g + b


def _leaky_relu(x):
    return jnp.where(x >= 0, x, LEAKY_SLOPE * x)


def critic_kernel(state_ref, action_ref, s32_ref, s16_ref,
                  wqkv_ref, wo_ref, b1_ref, w1_hbm, w2t_hbm,
                  out_ref, w1_buf, w2t_buf, dma_sems):
    # ---- kick off all FFN-weight DMAs (HBM -> VMEM) up front; wait at use ----
    ffn_copies = []
    for l in range(NLAYERS):
        c1 = pltpu.make_async_copy(w1_hbm.at[l], w1_buf.at[l], dma_sems.at[l, 0])
        c2 = pltpu.make_async_copy(w2t_hbm.at[l], w2t_buf.at[l], dma_sems.at[l, 1])
        c1.start()
        c2.start()
        ffn_copies.append((c1, c2))

    # ---- input projection + positional encoding (all M = B*S token rows) ----
    x_s = state_ref[...].reshape(M, STATE_DIM)
    x_a = action_ref[...].reshape(M, ACTION_DIM)
    w_in_s = s32_ref[OFF_WIN:OFF_WIN + STATE_DIM, :]
    w_in_a = s32_ref[OFF_WIN + STATE_DIM:OFF_WIN + D_IN, :]
    b_in = s32_ref[OFF_BIN:OFF_BIN + 1, :]
    pe = s32_ref[OFF_PE:OFF_PE + M, :]                     # pre-tiled over batch
    h = (jnp.dot(x_s, w_in_s, preferred_element_type=jnp.float32)
         + jnp.dot(x_a, w_in_a, preferred_element_type=jnp.float32)
         + b_in + pe)

    hmask = s32_ref[OFF_HMASK:OFF_HMASK + HIDDEN, :]       # block-diag head mask
    scale = 1.0 / float(np.sqrt(HEAD_DIM))

    for l in range(NLAYERS):
        base = OFF_LVEC + l * LVEC_STRIDE
        bq = s32_ref[base + 0:base + 1, :]
        bk = s32_ref[base + 1:base + 2, :]
        bv = s32_ref[base + 2:base + 3, :]
        bo = s32_ref[base + 3:base + 4, :]
        g1 = s32_ref[base + 4:base + 5, :]
        be1 = s32_ref[base + 5:base + 6, :]
        b2 = s32_ref[base + 6:base + 7, :]
        g2 = s32_ref[base + 7:base + 8, :]
        be2 = s32_ref[base + 8:base + 9, :]

        # --- multi-head self-attention over the B axis (batch_first=False) ---
        # One fused QKV matmul; static lane slices afterwards.
        qkv = jnp.dot(h, wqkv_ref[l], preferred_element_type=jnp.float32)
        q = qkv[:, 0:HIDDEN] + bq
        k = qkv[:, HIDDEN:2 * HIDDEN] + bk
        v = qkv[:, 2 * HIDDEN:3 * HIDDEN] + bv

        # B == 2: the other batch element at the same s sits S rows away.
        k_sw = pltpu.roll(k, shift=S, axis=0)
        v_sw = pltpu.roll(v, shift=S, axis=0)

        # Per-head q.k dot products broadcast back across each head's lanes via
        # one (H, H) block-diagonal-ones matmul (no per-head loop or concat).
        s_same = jnp.dot(q * k, hmask, preferred_element_type=jnp.float32) * scale
        s_cross = jnp.dot(q * k_sw, hmask, preferred_element_type=jnp.float32) * scale

        # exact 2-way softmax over keys {self, other-batch-element}
        mx = jnp.maximum(s_same, s_cross)
        e_same = jnp.exp(s_same - mx)
        e_cross = jnp.exp(s_cross - mx)
        attn = (e_same * v + e_cross * v_sw) / (e_same + e_cross)

        attn = jnp.dot(attn, wo_ref[l], preferred_element_type=jnp.float32) + bo

        # post-norm residual blocks (norm_first=False default)
        h = _layernorm(h + attn, g1, be1)

        # --- feed-forward: bf16 weights (manually prefetched), f32 accum -----
        ffn_copies[l][0].wait()
        ff = jnp.dot(h.astype(jnp.bfloat16), w1_buf[l],
                     preferred_element_type=jnp.float32) + b1_ref[l]
        ff = jnp.maximum(ff, 0.0)
        ffn_copies[l][1].wait()
        # lane-dense w2 stored transposed (H, FFN); contract A @ B^T
        ff = jax.lax.dot_general(ff.astype(jnp.bfloat16), w2t_buf[l],
                                 (((1,), (1,)), ((), ())),
                                 preferred_element_type=jnp.float32) + b2
        h = _layernorm(h + ff, g2, be2)

    # --- fc_out head ---
    hw1 = s32_ref[OFF_HW1:OFF_HW1 + HIDDEN, :]
    hb1 = s32_ref[OFF_HV32 + 0:OFF_HV32 + 1, :]
    hg1 = s32_ref[OFF_HV32 + 1:OFF_HV32 + 2, :]
    hbe1 = s32_ref[OFF_HV32 + 2:OFF_HV32 + 3, :]
    hw2 = s16_ref[OFF_HW2:OFF_HW2 + HIDDEN, :]
    hb2 = s16_ref[OFF_HV16 + 0:OFF_HV16 + 1, :]
    hg2 = s16_ref[OFF_HV16 + 1:OFF_HV16 + 2, :]
    hbe2 = s16_ref[OFF_HV16 + 2:OFF_HV16 + 3, :]
    hw3t = s16_ref[OFF_HW3T:OFF_HW3T + 1, :]
    hb3 = s16_ref[OFF_HB3:OFF_HB3 + 1, :]

    y = _leaky_relu(_layernorm(
        jnp.dot(h, hw1, preferred_element_type=jnp.float32) + hb1, hg1, hbe1))
    y = _leaky_relu(_layernorm(
        jnp.dot(y, hw2, preferred_element_type=jnp.float32) + hb2, hg2, hbe2))
    # lane-dense (1, M) output row: out[0, m] = y[m, :] @ hw3 + hb3
    out_ref[...] = jax.lax.dot_general(hw3t, y, (((1,), (1,)), ((), ())),
                                       preferred_element_type=jnp.float32) + hb3


# -------------------------------- wrapper -------------------------------------
def _full_spec(arr):
    nd = arr.ndim
    return pl.BlockSpec(arr.shape, lambda i, nd=nd: (0,) * nd)


def transformer_critic_forward(state_seq, action_seq, params):
    vmem_operands = [
        state_seq, action_seq,
        params['small32'], params['small16'],
        params['w_qkv'], params['wo'], params['b1'],
    ]
    hbm_operands = [params['w1'], params['w2t']]     # stay in HBM, manual DMA
    out = pl.pallas_call(
        critic_kernel,
        out_shape=jax.ShapeDtypeStruct((1, M), jnp.float32),
        grid_spec=pltpu.PrefetchScalarGridSpec(
            num_scalar_prefetch=0,
            grid=(1,),    # whole forward in one fully-resident step
            in_specs=([_full_spec(a) for a in vmem_operands]
                      + [pl.BlockSpec(memory_space=pl.ANY)] * len(hbm_operands)),
            out_specs=pl.BlockSpec((1, M), lambda i: (0, 0)),
            scratch_shapes=[
                pltpu.VMEM((NLAYERS, HIDDEN, FFN), jnp.bfloat16),   # w1 buffers
                pltpu.VMEM((NLAYERS, HIDDEN, FFN), jnp.bfloat16),   # w2t buffers
                pltpu.SemaphoreType.DMA((NLAYERS, 2)),
            ]),
        compiler_params=pltpu.CompilerParams(
            dimension_semantics=("arbitrary",)),
    )(*vmem_operands, *hbm_operands)
    return out.reshape(B, S, 1), None


# --------------------------- pure-JAX reference --------------------------------
def reference_forward(state_seq, action_seq, p):
    s32, s16 = p['small32'], p['small16']

    def ln(x, g, b):
        mean = jnp.mean(x, axis=-1, keepdims=True)
        var = jnp.mean(jnp.square(x - mean), axis=-1, keepdims=True)
        return (x - mean) * jax.lax.rsqrt(var + LN_EPS) * g + b

    def leaky(x):
        return jnp.where(x >= 0, x, LEAKY_SLOPE * x)

    w_in_s = s32[OFF_WIN:OFF_WIN + STATE_DIM]
    w_in_a = s32[OFF_WIN + STATE_DIM:OFF_WIN + D_IN]
    b_in = s32[OFF_BIN]
    pe = s32[OFF_PE:OFF_PE + S]                         # (S, H) table (b = 0 rows)

    h = state_seq @ w_in_s + action_seq @ w_in_a + b_in      # (B, S, H)
    h = h + pe[None, :, :]

    scale = 1.0 / np.sqrt(HEAD_DIM)
    for l in range(NLAYERS):
        wqkv = p['w_qkv'][l]
        wq = wqkv[:, 0:HIDDEN]
        wk = wqkv[:, HIDDEN:2 * HIDDEN]
        wv = wqkv[:, 2 * HIDDEN:3 * HIDDEN]
        wo = p['wo'][l]
        base = OFF_LVEC + l * LVEC_STRIDE
        bq, bk, bv, bo = s32[base], s32[base + 1], s32[base + 2], s32[base + 3]
        g1, be1 = s32[base + 4], s32[base + 5]
        b2, g2, be2 = s32[base + 6], s32[base + 7], s32[base + 8]

        q = (h @ wq + bq).reshape(B, S, NHEAD, HEAD_DIM)
        k = (h @ wk + bk).reshape(B, S, NHEAD, HEAD_DIM)
        v = (h @ wv + bv).reshape(B, S, NHEAD, HEAD_DIM)
        # attention over the B axis (batch_first=False semantics)
        sc = jnp.einsum('isnd,jsnd->snij', q, k) * scale
        aw = jax.nn.softmax(sc, axis=-1)
        o = jnp.einsum('snij,jsnd->isnd', aw, v).reshape(B, S, HIDDEN)
        o = o @ wo + bo
        h = ln(h + o, g1, be1)

        w1 = p['w1'][l].astype(jnp.float32)
        w2t = p['w2t'][l].astype(jnp.float32)
        ff = jnp.maximum(h @ w1 + p['b1'][l], 0.0) @ w2t.T + b2
        h = ln(h + ff, g2, be2)

    hw1 = s32[OFF_HW1:OFF_HW1 + HIDDEN]
    hb1, hg1, hbe1 = s32[OFF_HV32], s32[OFF_HV32 + 1], s32[OFF_HV32 + 2]
    hw2 = s16[OFF_HW2:OFF_HW2 + HIDDEN]
    hb2, hg2, hbe2 = s16[OFF_HV16], s16[OFF_HV16 + 1], s16[OFF_HV16 + 2]
    hw3 = s16[OFF_HW3T]
    hb3 = s16[OFF_HB3, 0]

    y = leaky(ln(h @ hw1 + hb1, hg1, hbe1))
    y = leaky(ln(y @ hw2 + hb2, hg2, hbe2))
    y = y @ hw3[:, None] + hb3
    return y, None


# ----------------------------------- main --------------------------------------
if __name__ == "__main__":
    key = jax.random.PRNGKey(0)
    kp, ks, ka = jax.random.split(key, 3)

    params = init_params(kp)
    state_seq = jax.random.normal(ks, (B, S, STATE_DIM), jnp.float32)
    action_seq = jax.random.normal(ka, (B, S, ACTION_DIM), jnp.float32)

    out, _ = transformer_critic_forward(state_seq, action_seq, params)
    out = jax.block_until_ready(out)
    assert out.shape == (B, S, 1), out.shape

    ref, _ = reference_forward(state_seq, action_seq, params)
    # Tolerance accounts for the bf16 activation casts feeding the two FFN
    # matmuls (weights are identical bf16 values in kernel and reference;
    # accumulation is f32; attention/softmax are exact f32).
    np.testing.assert_allclose(np.asarray(out), np.asarray(ref),
                               atol=2e-2, rtol=2e-2)

    print("KERNEL_OK")
</pallas_src>

<mosaic_0001>
module attributes {stable_mosaic.version = 11 : i64} {
  func.func @critic_kernel(%arg0: i32, %arg1: memref<2x8x4xf32, #tpu.memory_space<vmem>>, %arg2: memref<2x8x2xf32, #tpu.memory_space<vmem>>, %arg3: memref<136x32xf32, #tpu.memory_space<vmem>>, %arg4: memref<40x16xf32, #tpu.memory_space<vmem>>, %arg5: memref<2x32x96xf32, #tpu.memory_space<vmem>>, %arg6: memref<2x32x32xf32, #tpu.memory_space<vmem>>, %arg7: memref<2x1x2048xf32, #tpu.memory_space<vmem>>, %arg8: memref<2x32x2048xbf16, #tpu.memory_space<any>>, %arg9: memref<2x32x2048xbf16, #tpu.memory_space<any>>, %arg10: memref<1x16xf32, #tpu.memory_space<vmem>>, %arg11: memref<2x32x2048xbf16, #tpu.memory_space<vmem>>, %arg12: memref<2x32x2048xbf16, #tpu.memory_space<vmem>>, %arg13: memref<2x2x!tpu.dma_semaphore, #tpu.memory_space<semaphore_mem>>) attributes {dimension_semantics = [#tpu.dimension_semantics<arbitrary>], iteration_bounds = array<i64: 1>, scalar_prefetch = 0 : i64, scratch_operands = 3 : i64, tpu.core_type = #tpu.core_type<tc>, window_params = [{pipeline_mode = #tpu.pipeline_mode<synchronous>, transform_indices = @transform_0, window_bounds = array<i64: 2, 8, 4>}, {pipeline_mode = #tpu.pipeline_mode<synchronous>, transform_indices = @transform_1, window_bounds = array<i64: 2, 8, 2>}, {pipeline_mode = #tpu.pipeline_mode<synchronous>, transform_indices = @transform_2, window_bounds = array<i64: 136, 32>}, {pipeline_mode = #tpu.pipeline_mode<synchronous>, transform_indices = @transform_3, window_bounds = array<i64: 40, 16>}, {pipeline_mode = #tpu.pipeline_mode<synchronous>, transform_indices = @transform_4, window_bounds = array<i64: 2, 32, 96>}, {pipeline_mode = #tpu.pipeline_mode<synchronous>, transform_indices = @transform_5, window_bounds = array<i64: 2, 32, 32>}, {pipeline_mode = #tpu.pipeline_mode<synchronous>, transform_indices = @transform_6, window_bounds = array<i64: 2, 1, 2048>}, {}, {}, {pipeline_mode = #tpu.pipeline_mode<synchronous>, transform_indices = @transform_9, window_bounds = array<i64: 1, 16>}]} {
    %c0_i32 = arith.constant 0 : i32
    %c0_i32_0 = arith.constant 0 : i32
    %c0_i32_1 = arith.constant 0 : i32
    %c0_i32_2 = arith.constant 0 : i32
    %c0_i32_3 = arith.constant 0 : i32
    %c0_i32_4 = arith.constant 0 : i32
    %0 = tpu.memref_slice %arg8[%c0_i32, %c0_i32_3, %c0_i32_4] : memref<2x32x2048xbf16, #tpu.memory_space<any>> -> memref<1x32x2048xbf16, #tpu.memory_space<any>>
    %1 = tpu.memref_squeeze %0 : memref<1x32x2048xbf16, #tpu.memory_space<any>> -> memref<32x2048xbf16, #tpu.memory_space<any>>
    %c0_i32_5 = arith.constant 0 : i32
    %c0_i32_6 = arith.constant 0 : i32
    %2 = tpu.memref_slice %arg11[%c0_i32_0, %c0_i32_5, %c0_i32_6] : memref<2x32x2048xbf16, #tpu.memory_space<vmem>> -> memref<1x32x2048xbf16, #tpu.memory_space<vmem>>
    %3 = tpu.memref_squeeze %2 : memref<1x32x2048xbf16, #tpu.memory_space<vmem>> -> memref<32x2048xbf16, #tpu.memory_space<vmem>>
    %4 = tpu.memref_slice %arg13[%c0_i32_1, %c0_i32_2] : memref<2x2x!tpu.dma_semaphore, #tpu.memory_space<semaphore_mem>> -> memref<1x1x!tpu.dma_semaphore, #tpu.memory_space<semaphore_mem>>
    %5 = tpu.memref_squeeze %4 : memref<1x1x!tpu.dma_semaphore, #tpu.memory_space<semaphore_mem>> -> memref<!tpu.dma_semaphore, #tpu.memory_space<semaphore_mem>>
    tpu.enqueue_dma source(%1 : memref<32x2048xbf16, #tpu.memory_space<any>>) target(%3 : memref<32x2048xbf16, #tpu.memory_space<vmem>>) target_semaphore(%5 : memref<!tpu.dma_semaphore, #tpu.memory_space<semaphore_mem>>)
    %c0_i32_7 = arith.constant 0 : i32
    %c0_i32_8 = arith.constant 0 : i32
    %c0_i32_9 = arith.constant 0 : i32
    %c1_i32 = arith.constant 1 : i32
    %c0_i32_10 = arith.constant 0 : i32
    %c0_i32_11 = arith.constant 0 : i32
    %6 = tpu.memref_slice %arg9[%c0_i32_7, %c0_i32_10, %c0_i32_11] : memref<2x32x2048xbf16, #tpu.memory_space<any>> -> memref<1x32x2048xbf16, #tpu.memory_space<any>>
    %7 = tpu.memref_squeeze %6 : memref<1x32x2048xbf16, #tpu.memory_space<any>> -> memref<32x2048xbf16, #tpu.memory_space<any>>
    %c0_i32_12 = arith.constant 0 : i32
    %c0_i32_13 = arith.constant 0 : i32
    %8 = tpu.memref_slice %arg12[%c0_i32_8, %c0_i32_12, %c0_i32_13] : memref<2x32x2048xbf16, #tpu.memory_space<vmem>> -> memref<1x32x2048xbf16, #tpu.memory_space<vmem>>
    %9 = tpu.memref_squeeze %8 : memref<1x32x2048xbf16, #tpu.memory_space<vmem>> -> memref<32x2048xbf16, #tpu.memory_space<vmem>>
    %10 = tpu.memref_slice %arg13[%c0_i32_9, %c1_i32] : memref<2x2x!tpu.dma_semaphore, #tpu.memory_space<semaphore_mem>> -> memref<1x1x!tpu.dma_semaphore, #tpu.memory_space<semaphore_mem>>
    %11 = tpu.memref_squeeze %10 : memref<1x1x!tpu.dma_semaphore, #tpu.memory_space<semaphore_mem>> -> memref<!tpu.dma_semaphore, #tpu.memory_space<semaphore_mem>>
    tpu.enqueue_dma source(%7 : memref<32x2048xbf16, #tpu.memory_space<any>>) target(%9 : memref<32x2048xbf16, #tpu.memory_space<vmem>>) target_semaphore(%11 : memref<!tpu.dma_semaphore, #tpu.memory_space<semaphore_mem>>)
    %c1_i32_14 = arith.constant 1 : i32
    %c1_i32_15 = arith.constant 1 : i32
    %c1_i32_16 = arith.constant 1 : i32
    %c0_i32_17 = arith.constant 0 : i32
    %c0_i32_18 = arith.constant 0 : i32
    %c0_i32_19 = arith.constant 0 : i32
    %12 = tpu.memref_slice %arg8[%c1_i32_14, %c0_i32_18, %c0_i32_19] : memref<2x32x2048xbf16, #tpu.memory_space<any>> -> memref<1x32x2048xbf16, #tpu.memory_space<any>>
    %13 = tpu.memref_squeeze %12 : memref<1x32x2048xbf16, #tpu.memory_space<any>> -> memref<32x2048xbf16, #tpu.memory_space<any>>
    %c0_i32_20 = arith.constant 0 : i32
    %c0_i32_21 = arith.constant 0 : i32
    %14 = tpu.memref_slice %arg11[%c1_i32_15, %c0_i32_20, %c0_i32_21] : memref<2x32x2048xbf16, #tpu.memory_space<vmem>> -> memref<1x32x2048xbf16, #tpu.memory_space<vmem>>
    %15 = tpu.memref_squeeze %14 : memref<1x32x2048xbf16, #tpu.memory_space<vmem>> -> memref<32x2048xbf16, #tpu.memory_space<vmem>>
    %16 = tpu.memref_slice %arg13[%c1_i32_16, %c0_i32_17] : memref<2x2x!tpu.dma_semaphore, #tpu.memory_space<semaphore_mem>> -> memref<1x1x!tpu.dma_semaphore, #tpu.memory_space<semaphore_mem>>
    %17 = tpu.memref_squeeze %16 : memref<1x1x!tpu.dma_semaphore, #tpu.memory_space<semaphore_mem>> -> memref<!tpu.dma_semaphore, #tpu.memory_space<semaphore_mem>>
    tpu.enqueue_dma source(%13 : memref<32x2048xbf16, #tpu.memory_space<any>>) target(%15 : memref<32x2048xbf16, #tpu.memory_space<vmem>>) target_semaphore(%17 : memref<!tpu.dma_semaphore, #tpu.memory_space<semaphore_mem>>)
    %c1_i32_22 = arith.constant 1 : i32
    %c1_i32_23 = arith.constant 1 : i32
    %c1_i32_24 = arith.constant 1 : i32
    %c1_i32_25 = arith.constant 1 : i32
    %c0_i32_26 = arith.constant 0 : i32
    %c0_i32_27 = arith.constant 0 : i32
    %18 = tpu.memref_slice %arg9[%c1_i32_22, %c0_i32_26, %c0_i32_27] : memref<2x32x2048xbf16, #tpu.memory_space<any>> -> memref<1x32x2048xbf16, #tpu.memory_space<any>>
    %19 = tpu.memref_squeeze %18 : memref<1x32x2048xbf16, #tpu.memory_space<any>> -> memref<32x2048xbf16, #tpu.memory_space<any>>
    %c0_i32_28 = arith.constant 0 : i32
    %c0_i32_29 = arith.constant 0 : i32
    %20 = tpu.memref_slice %arg12[%c1_i32_23, %c0_i32_28, %c0_i32_29] : memref<2x32x2048xbf16, #tpu.memory_space<vmem>> -> memref<1x32x2048xbf16, #tpu.memory_space<vmem>>
    %21 = tpu.memref_squeeze %20 : memref<1x32x2048xbf16, #tpu.memory_space<vmem>> -> memref<32x2048xbf16, #tpu.memory_space<vmem>>
    %22 = tpu.memref_slice %arg13[%c1_i32_24, %c1_i32_25] : memref<2x2x!tpu.dma_semaphore, #tpu.memory_space<semaphore_mem>> -> memref<1x1x!tpu.dma_semaphore, #tpu.memory_space<semaphore_mem>>
    %23 = tpu.memref_squeeze %22 : memref<1x1x!tpu.dma_semaphore, #tpu.memory_space<semaphore_mem>> -> memref<!tpu.dma_semaphore, #tpu.memory_space<semaphore_mem>>
    tpu.enqueue_dma source(%19 : memref<32x2048xbf16, #tpu.memory_space<any>>) target(%21 : memref<32x2048xbf16, #tpu.memory_space<vmem>>) target_semaphore(%23 : memref<!tpu.dma_semaphore, #tpu.memory_space<semaphore_mem>>)
    %c0 = arith.constant 0 : index
    %c0_30 = arith.constant 0 : index
    %c0_31 = arith.constant 0 : index
    %24 = vector.load %arg1[%c0, %c0_30, %c0_31] : memref<2x8x4xf32, #tpu.memory_space<vmem>>, vector<2x8x4xf32>
    %25 = vector.shape_cast %24 : vector<2x8x4xf32> to vector<16x4xf32>
    %c0_32 = arith.constant 0 : index
    %c0_33 = arith.constant 0 : index
    %c0_34 = arith.constant 0 : index
    %26 = vector.load %arg2[%c0_32, %c0_33, %c0_34] : memref<2x8x2xf32, #tpu.memory_space<vmem>>, vector<2x8x2xf32>
    %27 = vector.shape_cast %26 : vector<2x8x2xf32> to vector<16x2xf32>
    %c0_35 = arith.constant 0 : index
    %c0_36 = arith.constant 0 : index
    %28 = vector.load %arg3[%c0_35, %c0_36] : memref<136x32xf32, #tpu.memory_space<vmem>>, vector<4x32xf32>
    %c4 = arith.constant 4 : index
    %c0_37 = arith.constant 0 : index
    %29 = vector.load %arg3[%c4, %c0_37] : memref<136x32xf32, #tpu.memory_space<vmem>>, vector<2x32xf32>
    %c8 = arith.constant 8 : index
    %c0_38 = arith.constant 0 : index
    %30 = vector.load %arg3[%c8, %c0_38] : memref<136x32xf32, #tpu.memory_space<vmem>>, vector<1x32xf32>
    %c16 = arith.constant 16 : index
    %c0_39 = arith.constant 0 : index
    %31 = vector.load %arg3[%c16, %c0_39] : memref<136x32xf32, #tpu.memory_space<vmem>>, vector<16x32xf32>
    %cst = arith.constant dense<0.000000e+00> : vector<16x32xf32>
    %32 = tpu.matmul %25, %28, %cst {dimension_numbers = #tpu.dot_dimension_numbers<[1], [0], [0], [1], [0, 0, 1, 1], [], []>} : vector<16x4xf32>, vector<4x32xf32>, vector<16x32xf32> -> vector<16x32xf32>
    %cst_40 = arith.constant dense<0.000000e+00> : vector<16x32xf32>
    %33 = tpu.matmul %27, %29, %cst_40 {dimension_numbers = #tpu.dot_dimension_numbers<[1], [0], [0], [1], [0, 0, 1, 1], [], []>} : vector<16x2xf32>, vector<2x32xf32>, vector<16x32xf32> -> vector<16x32xf32>
    %34 = arith.addf %32, %33 : vector<16x32xf32>
    %35 = vector.broadcast %30 : vector<1x32xf32> to vector<16x32xf32>
    %36 = arith.addf %34, %35 : vector<16x32xf32>
    %37 = arith.addf %36, %31 : vector<16x32xf32>
    %c104 = arith.constant 104 : index
    %c0_41 = arith.constant 0 : index
    %38 = vector.load %arg3[%c104, %c0_41] : memref<136x32xf32, #tpu.memory_space<vmem>>, vector<32x32xf32>
    %c32 = arith.constant 32 : index
    %c0_42 = arith.constant 0 : index
    %39 = vector.load %arg3[%c32, %c0_42] : memref<136x32xf32, #tpu.memory_space<vmem>>, vector<1x32xf32>
    %c33 = arith.constant 33 : index
    %c0_43 = arith.constant 0 : index
    %40 = vector.load %arg3[%c33, %c0_43] : memref<136x32xf32, #tpu.memory_space<vmem>>, vector<1x32xf32>
    %c34 = arith.constant 34 : index
    %c0_44 = arith.constant 0 : index
    %41 = vector.load %arg3[%c34, %c0_44] : memref<136x32xf32, #tpu.memory_space<vmem>>, vector<1x32xf32>
    %c35 = arith.constant 35 : index
    %c0_45 = arith.constant 0 : index
    %42 = vector.load %arg3[%c35, %c0_45] : memref<136x32xf32, #tpu.memory_space<vmem>>, vector<1x32xf32>
    %c36 = arith.constant 36 : index
    %c0_46 = arith.constant 0 : index
    %43 = vector.load %arg3[%c36, %c0_46] : memref<136x32xf32, #tpu.memory_space<vmem>>, vector<1x32xf32>
    %c37 = arith.constant 37 : index
    %c0_47 = arith.constant 0 : index
    %44 = vector.load %arg3[%c37, %c0_47] : memref<136x32xf32, #tpu.memory_space<vmem>>, vector<1x32xf32>
    %c38 = arith.constant 38 : index
    %c0_48 = arith.constant 0 : index
    %45 = vector.load %arg3[%c38, %c0_48] : memref<136x32xf32, #tpu.memory_space<vmem>>, vector<1x32xf32>
    %c39 = arith.constant 39 : index
    %c0_49 = arith.constant 0 : index
    %46 = vector.load %arg3[%c39, %c0_49] : memref<136x32xf32, #tpu.memory_space<vmem>>, vector<1x32xf32>
    %c40 = arith.constant 40 : index
    %c0_50 = arith.constant 0 : index
    %47 = vector.load %arg3[%c40, %c0_50] : memref<136x32xf32, #tpu.memory_space<vmem>>, vector<1x32xf32>
    %c0_51 = arith.constant 0 : index
    %c0_52 = arith.constant 0 : index
    %c0_53 = arith.constant 0 : index
    %48 = vector.load %arg5[%c0_51, %c0_52, %c0_53] : memref<2x32x96xf32, #tpu.memory_space<vmem>>, vector<1x32x96xf32>
    %49 = vector.shape_cast %48 : vector<1x32x96xf32> to vector<32x96xf32>
    %cst_54 = arith.constant dense<0.000000e+00> : vector<16x96xf32>
    %50 = tpu.matmul %37, %49, %cst_54 {dimension_numbers = #tpu.dot_dimension_numbers<[1], [0], [0], [1], [0, 0, 1, 1], [], []>} : vector<16x32xf32>, vector<32x96xf32>, vector<16x96xf32> -> vector<16x96xf32>
    %51 = vector.extract_strided_slice %50 {offsets = [0, 0], sizes = [16, 32], strides = [1, 1]} : vector<16x96xf32> to vector<16x32xf32>
    %52 = vector.broadcast %39 : vector<1x32xf32> to vector<16x32xf32>
    %53 = arith.addf %51, %52 : vector<16x32xf32>
    %54 = vector.extract_strided_slice %50 {offsets = [0, 32], sizes = [16, 32], strides = [1, 1]} : vector<16x96xf32> to vector<16x32xf32>
    %55 = vector.broadcast %40 : vector<1x32xf32> to vector<16x32xf32>
    %56 = arith.addf %54, %55 : vector<16x32xf32>
    %57 = vector.extract_strided_slice %50 {offsets = [0, 64], sizes = [16, 32], strides = [1, 1]} : vector<16x96xf32> to vector<16x32xf32>
    %58 = vector.broadcast %41 : vector<1x32xf32> to vector<16x32xf32>
    %59 = arith.addf %57, %58 : vector<16x32xf32>
    %c8_i32 = arith.constant 8 : i32
    %60 = tpu.dynamic_rotate %56 by %c8_i32 dim 0 : vector<16x32xf32>, i32 -> vector<16x32xf32>
    %c8_i32_55 = arith.constant 8 : i32
    %61 = tpu.dynamic_rotate %59 by %c8_i32_55 dim 0 : vector<16x32xf32>, i32 -> vector<16x32xf32>
    %62 = arith.mulf %53, %56 : vector<16x32xf32>
    %cst_56 = arith.constant dense<0.000000e+00> : vector<16x32xf32>
    %63 = tpu.matmul %62, %38, %cst_56 {dimension_numbers = #tpu.dot_dimension_numbers<[1], [0], [0], [1], [0, 0, 1, 1], [], []>} : vector<16x32xf32>, vector<32x32xf32>, vector<16x32xf32> -> vector<16x32xf32>
    %cst_57 = arith.constant 0.353553385 : f32
    %64 = vector.broadcast %cst_57 : f32 to vector<16x32xf32>
    %65 = arith.mulf %63, %64 : vector<16x32xf32>
    %66 = arith.mulf %53, %60 : vector<16x32xf32>
    %cst_58 = arith.constant dense<0.000000e+00> : vector<16x32xf32>
    %67 = tpu.matmul %66, %38, %cst_58 {dimension_numbers = #tpu.dot_dimension_numbers<[1], [0], [0], [1], [0, 0, 1, 1], [], []>} : vector<16x32xf32>, vector<32x32xf32>, vector<16x32xf32> -> vector<16x32xf32>
    %cst_59 = arith.constant 0.353553385 : f32
    %68 = vector.broadcast %cst_59 : f32 to vector<16x32xf32>
    %69 = arith.mulf %67, %68 : vector<16x32xf32>
    %70 = arith.maximumf %65, %69 : vector<16x32xf32>
    %71 = arith.subf %65, %70 : vector<16x32xf32>
    %72 = math.exp %71 : vector<16x32xf32>
    %73 = arith.subf %69, %70 : vector<16x32xf32>
    %74 = math.exp %73 : vector<16x32xf32>
    %75 = arith.mulf %72, %59 : vector<16x32xf32>
    %76 = arith.mulf %74, %61 : vector<16x32xf32>
    %77 = arith.addf %75, %76 : vector<16x32xf32>
    %78 = arith.addf %72, %74 : vector<16x32xf32>
    %79 = arith.divf %77, %78 : vector<16x32xf32>
    %c0_60 = arith.constant 0 : index
    %c0_61 = arith.constant 0 : index
    %c0_62 = arith.constant 0 : index
    %80 = vector.load %arg6[%c0_60, %c0_61, %c0_62] : memref<2x32x32xf32, #tpu.memory_space<vmem>>, vector<1x32x32xf32>
    %81 = vector.shape_cast %80 : vector<1x32x32xf32> to vector<32x32xf32>
    %cst_63 = arith.constant dense<0.000000e+00> : vector<16x32xf32>
    %82 = tpu.matmul %79, %81, %cst_63 {dimension_numbers = #tpu.dot_dimension_numbers<[1], [0], [0], [1], [0, 0, 1, 1], [], []>} : vector<16x32xf32>, vector<32x32xf32>, vector<16x32xf32> -> vector<16x32xf32>
    %83 = vector.broadcast %42 : vector<1x32xf32> to vector<16x32xf32>
    %84 = arith.addf %82, %83 : vector<16x32xf32>
    %85 = arith.addf %37, %84 : vector<16x32xf32>
    %cst_64 = arith.constant dense<0.000000e+00> : vector<16xf32>
    %86 = vector.multi_reduction <add>, %85, %cst_64 [1] : vector<16x32xf32> to vector<16xf32>
    %87 = vector.shape_cast %86 : vector<16xf32> to vector<16x1xf32>
    %cst_65 = arith.constant 3.200000e+01 : f32
    %88 = vector.broadcast %cst_65 : f32 to vector<16x1xf32>
    %89 = arith.divf %87, %88 : vector<16x1xf32>
    %90 = vector.broadcast %89 : vector<16x1xf32> to vector<16x32xf32>
    %91 = arith.subf %85, %90 : vector<16x32xf32>
    %92 = arith.mulf %91, %91 : vector<16x32xf32>
    %cst_66 = arith.constant dense<0.000000e+00> : vector<16xf32>
    %93 = vector.multi_reduction <add>, %92, %cst_66 [1] : vector<16x32xf32> to vector<16xf32>
    %94 = vector.shape_cast %93 : vector<16xf32> to vector<16x1xf32>
    %cst_67 = arith.constant 3.200000e+01 : f32
    %95 = vector.broadcast %cst_67 : f32 to vector<16x1xf32>
    %96 = arith.divf %94, %95 : vector<16x1xf32>
    %97 = vector.broadcast %89 : vector<16x1xf32> to vector<16x32xf32>
    %98 = arith.subf %85, %97 : vector<16x32xf32>
    %cst_68 = arith.constant 9.99999974E-6 : f32
    %99 = vector.broadcast %cst_68 : f32 to vector<16x1xf32>
    %100 = arith.addf %96, %99 : vector<16x1xf32>
    %101 = math.rsqrt %100 : vector<16x1xf32>
    %102 = vector.broadcast %101 : vector<16x1xf32> to vector<16x32xf32>
    %103 = arith.mulf %98, %102 : vector<16x32xf32>
    %104 = vector.broadcast %43 : vector<1x32xf32> to vector<16x32xf32>
    %105 = arith.mulf %103, %104 : vector<16x32xf32>
    %106 = vector.broadcast %44 : vector<1x32xf32> to vector<16x32xf32>
    %107 = arith.addf %105, %106 : vector<16x32xf32>
    %c0_i32_69 = arith.constant 0 : i32
    %c0_i32_70 = arith.constant 0 : i32
    %c0_i32_71 = arith.constant 0 : i32
    %c0_i32_72 = arith.constant 0 : i32
    %c0_i32_73 = arith.constant 0 : i32
    %c0_i32_74 = arith.constant 0 : i32
    %108 = tpu.memref_slice %arg8[%c0_i32_69, %c0_i32_73, %c0_i32_74] : memref<2x32x2048xbf16, #tpu.memory_space<any>> -> memref<1x32x2048xbf16, #tpu.memory_space<any>>
    %109 = tpu.memref_squeeze %108 : memref<1x32x2048xbf16, #tpu.memory_space<any>> -> memref<32x2048xbf16, #tpu.memory_space<any>>
    %c0_i32_75 = arith.constant 0 : i32
    %c0_i32_76 = arith.constant 0 : i32
    %110 = tpu.memref_slice %arg11[%c0_i32_70, %c0_i32_75, %c0_i32_76] : memref<2x32x2048xbf16, #tpu.memory_space<vmem>> -> memref<1x32x2048xbf16, #tpu.memory_space<vmem>>
    %111 = tpu.memref_squeeze %110 : memref<1x32x2048xbf16, #tpu.memory_space<vmem>> -> memref<32x2048xbf16, #tpu.memory_space<vmem>>
    %112 = tpu.memref_slice %arg13[%c0_i32_71, %c0_i32_72] : memref<2x2x!tpu.dma_semaphore, #tpu.memory_space<semaphore_mem>> -> memref<1x1x!tpu.dma_semaphore, #tpu.memory_space<semaphore_mem>>
    %113 = tpu.memref_squeeze %112 : memref<1x1x!tpu.dma_semaphore, #tpu.memory_space<semaphore_mem>> -> memref<!tpu.dma_semaphore, #tpu.memory_space<semaphore_mem>>
    tpu.wait_dma2 semaphore(%113 : memref<!tpu.dma_semaphore, #tpu.memory_space<semaphore_mem>>) src(%109 : memref<32x2048xbf16, #tpu.memory_space<any>>) dst(%111 : memref<32x2048xbf16, #tpu.memory_space<vmem>>)
    %114 = arith.truncf %107 : vector<16x32xf32> to vector<16x32xbf16>
    %c0_77 = arith.constant 0 : index
    %c0_78 = arith.constant 0 : index
    %c0_79 = arith.constant 0 : index
    %115 = vector.load %arg11[%c0_77, %c0_78, %c0_79] : memref<2x32x2048xbf16, #tpu.memory_space<vmem>>, vector<1x32x2048xbf16>
    %116 = vector.shape_cast %115 : vector<1x32x2048xbf16> to vector<32x2048xbf16>
    %cst_80 = arith.constant dense<0.000000e+00> : vector<16x2048xf32>
    %117 = tpu.matmul %114, %116, %cst_80 {dimension_numbers = #tpu.dot_dimension_numbers<[1], [0], [0], [1], [0, 0, 1, 1], [], []>} : vector<16x32xbf16>, vector<32x2048xbf16>, vector<16x2048xf32> -> vector<16x2048xf32>
    %c0_81 = arith.constant 0 : index
    %c0_82 = arith.constant 0 : index
    %c0_83 = arith.constant 0 : index
    %118 = vector.load %arg7[%c0_81, %c0_82, %c0_83] : memref<2x1x2048xf32, #tpu.memory_space<vmem>>, vector<1x1x2048xf32>
    %119 = vector.shape_cast %118 : vector<1x1x2048xf32> to vector<1x2048xf32>
    %120 = vector.broadcast %119 : vector<1x2048xf32> to vector<16x2048xf32>
    %121 = arith.addf %117, %120 : vector<16x2048xf32>
    %cst_84 = arith.constant 0.000000e+00 : f32
    %122 = vector.broadcast %cst_84 : f32 to vector<16x2048xf32>
    %123 = arith.maximumf %121, %122 : vector<16x2048xf32>
    %c0_i32_85 = arith.constant 0 : i32
    %c0_i32_86 = arith.constant 0 : i32
    %c0_i32_87 = arith.constant 0 : i32
    %c1_i32_88 = arith.constant 1 : i32
    %c0_i32_89 = arith.constant 0 : i32
    %c0_i32_90 = arith.constant 0 : i32
    %124 = tpu.memref_slice %arg9[%c0_i32_85, %c0_i32_89, %c0_i32_90] : memref<2x32x2048xbf16, #tpu.memory_space<any>> -> memref<1x32x2048xbf16, #tpu.memory_space<any>>
    %125 = tpu.memref_squeeze %124 : memref<1x32x2048xbf16, #tpu.memory_space<any>> -> memref<32x2048xbf16, #tpu.memory_space<any>>
    %c0_i32_91 = arith.constant 0 : i32
    %c0_i32_92 = arith.constant 0 : i32
    %126 = tpu.memref_slice %arg12[%c0_i32_86, %c0_i32_91, %c0_i32_92] : memref<2x32x2048xbf16, #tpu.memory_space<vmem>> -> memref<1x32x2048xbf16, #tpu.memory_space<vmem>>
    %127 = tpu.memref_squeeze %126 : memref<1x32x2048xbf16, #tpu.memory_space<vmem>> -> memref<32x2048xbf16, #tpu.memory_space<vmem>>
    %128 = tpu.memref_slice %arg13[%c0_i32_87, %c1_i32_88] : memref<2x2x!tpu.dma_semaphore, #tpu.memory_space<semaphore_mem>> -> memref<1x1x!tpu.dma_semaphore, #tpu.memory_space<semaphore_mem>>
    %129 = tpu.memref_squeeze %128 : memref<1x1x!tpu.dma_semaphore, #tpu.memory_space<semaphore_mem>> -> memref<!tpu.dma_semaphore, #tpu.memory_space<semaphore_mem>>
    tpu.wait_dma2 semaphore(%129 : memref<!tpu.dma_semaphore, #tpu.memory_space<semaphore_mem>>) src(%125 : memref<32x2048xbf16, #tpu.memory_space<any>>) dst(%127 : memref<32x2048xbf16, #tpu.memory_space<vmem>>)
    %130 = arith.truncf %123 : vector<16x2048xf32> to vector<16x2048xbf16>
    %c0_93 = arith.constant 0 : index
    %c0_94 = arith.constant 0 : index
    %c0_95 = arith.constant 0 : index
    %131 = vector.load %arg12[%c0_93, %c0_94, %c0_95] : memref<2x32x2048xbf16, #tpu.memory_space<vmem>>, vector<1x32x2048xbf16>
    %132 = vector.shape_cast %131 : vector<1x32x2048xbf16> to vector<32x2048xbf16>
    %cst_96 = arith.constant dense<0.000000e+00> : vector<16x32xf32>
    %133 = tpu.matmul %130, %132, %cst_96 {dimension_numbers = #tpu.dot_dimension_numbers<[1], [1], [0], [0], [0, 0, 1, 0], [], []>} : vector<16x2048xbf16>, vector<32x2048xbf16>, vector<16x32xf32> -> vector<16x32xf32>
    %134 = vector.broadcast %45 : vector<1x32xf32> to vector<16x32xf32>
    %135 = arith.addf %133, %134 : vector<16x32xf32>
    %136 = arith.addf %107, %135 : vector<16x32xf32>
    %cst_97 = arith.constant dense<0.000000e+00> : vector<16xf32>
    %137 = vector.multi_reduction <add>, %136, %cst_97 [1] : vector<16x32xf32> to vector<16xf32>
    %138 = vector.shape_cast %137 : vector<16xf32> to vector<16x1xf32>
    %cst_98 = arith.constant 3.200000e+01 : f32
    %139 = vector.broadcast %cst_98 : f32 to vector<16x1xf32>
    %140 = arith.divf %138, %139 : vector<16x1xf32>
    %141 = vector.broadcast %140 : vector<16x1xf32> to vector<16x32xf32>
    %142 = arith.subf %136, %141 : vector<16x32xf32>
    %143 = arith.mulf %142, %142 : vector<16x32xf32>
    %cst_99 = arith.constant dense<0.000000e+00> : vector<16xf32>
    %144 = vector.multi_reduction <add>, %143, %cst_99 [1] : vector<16x32xf32> to vector<16xf32>
    %145 = vector.shape_cast %144 : vector<16xf32> to vector<16x1xf32>
    %cst_100 = arith.constant 3.200000e+01 : f32
    %146 = vector.broadcast %cst_100 : f32 to vector<16x1xf32>
    %147 = arith.divf %145, %146 : vector<16x1xf32>
    %148 = vector.broadcast %140 : vector<16x1xf32> to vector<16x32xf32>
    %149 = arith.subf %136, %148 : vector<16x32xf32>
    %cst_101 = arith.constant 9.99999974E-6 : f32
    %150 = vector.broadcast %cst_101 : f32 to vector<16x1xf32>
    %151 = arith.addf %147, %150 : vector<16x1xf32>
    %152 = math.rsqrt %151 : vector<16x1xf32>
    %153 = vector.broadcast %152 : vector<16x1xf32> to vector<16x32xf32>
    %154 = arith.mulf %149, %153 : vector<16x32xf32>
    %155 = vector.broadcast %46 : vector<1x32xf32> to vector<16x32xf32>
    %156 = arith.mulf %154, %155 : vector<16x32xf32>
    %157 = vector.broadcast %47 : vector<1x32xf32> to vector<16x32xf32>
    %158 = arith.addf %156, %157 : vector<16x32xf32>
    %c48 = arith.constant 48 : index
    %c0_102 = arith.constant 0 : index
    %159 = vector.load %arg3[%c48, %c0_102] : memref<136x32xf32, #tpu.memory_space<vmem>>, vector<1x32xf32>
    %c49 = arith.constant 49 : index
    %c0_103 = arith.constant 0 : index
    %160 = vector.load %arg3[%c49, %c0_103] : memref<136x32xf32, #tpu.memory_space<vmem>>, vector<1x32xf32>
    %c50 = arith.constant 50 : index
    %c0_104 = arith.constant 0 : index
    %161 = vector.load %arg3[%c50, %c0_104] : memref<136x32xf32, #tpu.memory_space<vmem>>, vector<1x32xf32>
    %c51 = arith.constant 51 : index
    %c0_105 = arith.constant 0 : index
    %162 = vector.load %arg3[%c51, %c0_105] : memref<136x32xf32, #tpu.memory_space<vmem>>, vector<1x32xf32>
    %c52 = arith.constant 52 : index
    %c0_106 = arith.constant 0 : index
    %163 = vector.load %arg3[%c52, %c0_106] : memref<136x32xf32, #tpu.memory_space<vmem>>, vector<1x32xf32>
    %c53 = arith.constant 53 : index
    %c0_107 = arith.constant 0 : index
    %164 = vector.load %arg3[%c53, %c0_107] : memref<136x32xf32, #tpu.memory_space<vmem>>, vector<1x32xf32>
    %c54 = arith.constant 54 : index
    %c0_108 = arith.constant 0 : index
    %165 = vector.load %arg3[%c54, %c0_108] : memref<136x32xf32, #tpu.memory_space<vmem>>, vector<1x32xf32>
    %c55 = arith.constant 55 : index
    %c0_109 = arith.constant 0 : index
    %166 = vector.load %arg3[%c55, %c0_109] : memref<136x32xf32, #tpu.memory_space<vmem>>, vector<1x32xf32>
    %c56 = arith.constant 56 : index
    %c0_110 = arith.constant 0 : index
    %167 = vector.load %arg3[%c56, %c0_110] : memref<136x32xf32, #tpu.memory_space<vmem>>, vector<1x32xf32>
    %c1 = arith.constant 1 : index
    %c0_111 = arith.constant 0 : index
    %c0_112 = arith.constant 0 : index
    %168 = vector.load %arg5[%c1, %c0_111, %c0_112] : memref<2x32x96xf32, #tpu.memory_space<vmem>>, vector<1x32x96xf32>
    %169 = vector.shape_cast %168 : vector<1x32x96xf32> to vector<32x96xf32>
    %cst_113 = arith.constant dense<0.000000e+00> : vector<16x96xf32>
    %170 = tpu.matmul %158, %169, %cst_113 {dimension_numbers = #tpu.dot_dimension_numbers<[1], [0], [0], [1], [0, 0, 1, 1], [], []>} : vector<16x32xf32>, vector<32x96xf32>, vector<16x96xf32> -> vector<16x96xf32>
    %171 = vector.extract_strided_slice %170 {offsets = [0, 0], sizes = [16, 32], strides = [1, 1]} : vector<16x96xf32> to vector<16x32xf32>
    %172 = vector.broadcast %159 : vector<1x32xf32> to vector<16x32xf32>
    %173 = arith.addf %171, %172 : vector<16x32xf32>
    %174 = vector.extract_strided_slice %170 {offsets = [0, 32], sizes = [16, 32], strides = [1, 1]} : vector<16x96xf32> to vector<16x32xf32>
    %175 = vector.broadcast %160 : vector<1x32xf32> to vector<16x32xf32>
    %176 = arith.addf %174, %175 : vector<16x32xf32>
    %177 = vector.extract_strided_slice %170 {offsets = [0, 64], sizes = [16, 32], strides = [1, 1]} : vector<16x96xf32> to vector<16x32xf32>
    %178 = vector.broadcast %161 : vector<1x32xf32> to vector<16x32xf32>
    %179 = arith.addf %177, %178 : vector<16x32xf32>
    %c8_i32_114 = arith.constant 8 : i32
    %180 = tpu.dynamic_rotate %176 by %c8_i32_114 dim 0 : vector<16x32xf32>, i32 -> vector<16x32xf32>
    %c8_i32_115 = arith.constant 8 : i32
    %181 = tpu.dynamic_rotate %179 by %c8_i32_115 dim 0 : vector<16x32xf32>, i32 -> vector<16x32xf32>
    %182 = arith.mulf %173, %176 : vector<16x32xf32>
    %cst_116 = arith.constant dense<0.000000e+00> : vector<16x32xf32>
    %183 = tpu.matmul %182, %38, %cst_116 {dimension_numbers = #tpu.dot_dimension_numbers<[1], [0], [0], [1], [0, 0, 1, 1], [], []>} : vector<16x32xf32>, vector<32x32xf32>, vector<16x32xf32> -> vector<16x32xf32>
    %cst_117 = arith.constant 0.353553385 : f32
    %184 = vector.broadcast %cst_117 : f32 to vector<16x32xf32>
    %185 = arith.mulf %183, %184 : vector<16x32xf32>
    %186 = arith.mulf %173, %180 : vector<16x32xf32>
    %cst_118 = arith.constant dense<0.000000e+00> : vector<16x32xf32>
    %187 = tpu.matmul %186, %38, %cst_118 {dimension_numbers = #tpu.dot_dimension_numbers<[1], [0], [0], [1], [0, 0, 1, 1], [], []>} : vector<16x32xf32>, vector<32x32xf32>, vector<16x32xf32> -> vector<16x32xf32>
    %cst_119 = arith.constant 0.353553385 : f32
    %188 = vector.broadcast %cst_119 : f32 to vector<16x32xf32>
    %189 = arith.mulf %187, %188 : vector<16x32xf32>
    %190 = arith.maximumf %185, %189 : vector<16x32xf32>
    %191 = arith.subf %185, %190 : vector<16x32xf32>
    %192 = math.exp %191 : vector<16x32xf32>
    %193 = arith.subf %189, %190 : vector<16x32xf32>
    %194 = math.exp %193 : vector<16x32xf32>
    %195 = arith.mulf %192, %179 : vector<16x32xf32>
    %196 = arith.mulf %194, %181 : vector<16x32xf32>
    %197 = arith.addf %195, %196 : vector<16x32xf32>
    %198 = arith.addf %192, %194 : vector<16x32xf32>
    %199 = arith.divf %197, %198 : vector<16x32xf32>
    %c1_120 = arith.constant 1 : index
    %c0_121 = arith.constant 0 : index
    %c0_122 = arith.constant 0 : index
    %200 = vector.load %arg6[%c1_120, %c0_121, %c0_122] : memref<2x32x32xf32, #tpu.memory_space<vmem>>, vector<1x32x32xf32>
    %201 = vector.shape_cast %200 : vector<1x32x32xf32> to vector<32x32xf32>
    %cst_123 = arith.constant dense<0.000000e+00> : vector<16x32xf32>
    %202 = tpu.matmul %199, %201, %cst_123 {dimension_numbers = #tpu.dot_dimension_numbers<[1], [0], [0], [1], [0, 0, 1, 1], [], []>} : vector<16x32xf32>, vector<32x32xf32>, vector<16x32xf32> -> vector<16x32xf32>
    %203 = vector.broadcast %162 : vector<1x32xf32> to vector<16x32xf32>
    %204 = arith.addf %202, %203 : vector<16x32xf32>
    %205 = arith.addf %158, %204 : vector<16x32xf32>
    %cst_124 = arith.constant dense<0.000000e+00> : vector<16xf32>
    %206 = vector.multi_reduction <add>, %205, %cst_124 [1] : vector<16x32xf32> to vector<16xf32>
    %207 = vector.shape_cast %206 : vector<16xf32> to vector<16x1xf32>
    %cst_125 = arith.constant 3.200000e+01 : f32
    %208 = vector.broadcast %cst_125 : f32 to vector<16x1xf32>
    %209 = arith.divf %207, %208 : vector<16x1xf32>
    %210 = vector.broadcast %209 : vector<16x1xf32> to vector<16x32xf32>
    %211 = arith.subf %205, %210 : vector<16x32xf32>
    %212 = arith.mulf %211, %211 : vector<16x32xf32>
    %cst_126 = arith.constant dense<0.000000e+00> : vector<16xf32>
    %213 = vector.multi_reduction <add>, %212, %cst_126 [1] : vector<16x32xf32> to vector<16xf32>
    %214 = vector.shape_cast %213 : vector<16xf32> to vector<16x1xf32>
    %cst_127 = arith.constant 3.200000e+01 : f32
    %215 = vector.broadcast %cst_127 : f32 to vector<16x1xf32>
    %216 = arith.divf %214, %215 : vector<16x1xf32>
    %217 = vector.broadcast %209 : vector<16x1xf32> to vector<16x32xf32>
    %218 = arith.subf %205, %217 : vector<16x32xf32>
    %cst_128 = arith.constant 9.99999974E-6 : f32
    %219 = vector.broadcast %cst_128 : f32 to vector<16x1xf32>
    %220 = arith.addf %216, %219 : vector<16x1xf32>
    %221 = math.rsqrt %220 : vector<16x1xf32>
    %222 = vector.broadcast %221 : vector<16x1xf32> to vector<16x32xf32>
    %223 = arith.mulf %218, %222 : vector<16x32xf32>
    %224 = vector.broadcast %163 : vector<1x32xf32> to vector<16x32xf32>
    %225 = arith.mulf %223, %224 : vector<16x32xf32>
    %226 = vector.broadcast %164 : vector<1x32xf32> to vector<16x32xf32>
    %227 = arith.addf %225, %226 : vector<16x32xf32>
    %c1_i32_129 = arith.constant 1 : i32
    %c1_i32_130 = arith.constant 1 : i32
    %c1_i32_131 = arith.constant 1 : i32
    %c0_i32_132 = arith.constant 0 : i32
    %c0_i32_133 = arith.constant 0 : i32
    %c0_i32_134 = arith.constant 0 : i32
    %228 = tpu.memref_slice %arg8[%c1_i32_129, %c0_i32_133, %c0_i32_134] : memref<2x32x2048xbf16, #tpu.memory_space<any>> -> memref<1x32x2048xbf16, #tpu.memory_space<any>>
    %229 = tpu.memref_squeeze %228 : memref<1x32x2048xbf16, #tpu.memory_space<any>> -> memref<32x2048xbf16, #tpu.memory_space<any>>
    %c0_i32_135 = arith.constant 0 : i32
    %c0_i32_136 = arith.constant 0 : i32
    %230 = tpu.memref_slice %arg11[%c1_i32_130, %c0_i32_135, %c0_i32_136] : memref<2x32x2048xbf16, #tpu.memory_space<vmem>> -> memref<1x32x2048xbf16, #tpu.memory_space<vmem>>
    %231 = tpu.memref_squeeze %230 : memref<1x32x2048xbf16, #tpu.memory_space<vmem>> -> memref<32x2048xbf16, #tpu.memory_space<vmem>>
    %232 = tpu.memref_slice %arg13[%c1_i32_131, %c0_i32_132] : memref<2x2x!tpu.dma_semaphore, #tpu.memory_space<semaphore_mem>> -> memref<1x1x!tpu.dma_semaphore, #tpu.memory_space<semaphore_mem>>
    %233 = tpu.memref_squeeze %232 : memref<1x1x!tpu.dma_semaphore, #tpu.memory_space<semaphore_mem>> -> memref<!tpu.dma_semaphore, #tpu.memory_space<semaphore_mem>>
    tpu.wait_dma2 semaphore(%233 : memref<!tpu.dma_semaphore, #tpu.memory_space<semaphore_mem>>) src(%229 : memref<32x2048xbf16, #tpu.memory_space<any>>) dst(%231 : memref<32x2048xbf16, #tpu.memory_space<vmem>>)
    %234 = arith.truncf %227 : vector<16x32xf32> to vector<16x32xbf16>
    %c1_137 = arith.constant 1 : index
    %c0_138 = arith.constant 0 : index
    %c0_139 = arith.constant 0 : index
    %235 = vector.load %arg11[%c1_137, %c0_138, %c0_139] : memref<2x32x2048xbf16, #tpu.memory_space<vmem>>, vector<1x32x2048xbf16>
    %236 = vector.shape_cast %235 : vector<1x32x2048xbf16> to vector<32x2048xbf16>
    %cst_140 = arith.constant dense<0.000000e+00> : vector<16x2048xf32>
    %237 = tpu.matmul %234, %236, %cst_140 {dimension_numbers = #tpu.dot_dimension_numbers<[1], [0], [0], [1], [0, 0, 1, 1], [], []>} : vector<16x32xbf16>, vector<32x2048xbf16>, vector<16x2048xf32> -> vector<16x2048xf32>
    %c1_141 = arith.constant 1 : index
    %c0_142 = arith.constant 0 : index
    %c0_143 = arith.constant 0 : index
    %238 = vector.load %arg7[%c1_141, %c0_142, %c0_143] : memref<2x1x2048xf32, #tpu.memory_space<vmem>>, vector<1x1x2048xf32>
    %239 = vector.shape_cast %238 : vector<1x1x2048xf32> to vector<1x2048xf32>
    %240 = vector.broadcast %239 : vector<1x2048xf32> to vector<16x2048xf32>
    %241 = arith.addf %237, %240 : vector<16x2048xf32>
    %cst_144 = arith.constant 0.000000e+00 : f32
    %242 = vector.broadcast %cst_144 : f32 to vector<16x2048xf32>
    %243 = arith.maximumf %241, %242 : vector<16x2048xf32>
    %c1_i32_145 = arith.constant 1 : i32
    %c1_i32_146 = arith.constant 1 : i32
    %c1_i32_147 = arith.constant 1 : i32
    %c1_i32_148 = arith.constant 1 : i32
    %c0_i32_149 = arith.constant 0 : i32
    %c0_i32_150 = arith.constant 0 : i32
    %244 = tpu.memref_slice %arg9[%c1_i32_145, %c0_i32_149, %c0_i32_150] : memref<2x32x2048xbf16, #tpu.memory_space<any>> -> memref<1x32x2048xbf16, #tpu.memory_space<any>>
    %245 = tpu.memref_squeeze %244 : memref<1x32x2048xbf16, #tpu.memory_space<any>> -> memref<32x2048xbf16, #tpu.memory_space<any>>
    %c0_i32_151 = arith.constant 0 : i32
    %c0_i32_152 = arith.constant 0 : i32
    %246 = tpu.memref_slice %arg12[%c1_i32_146, %c0_i32_151, %c0_i32_152] : memref<2x32x2048xbf16, #tpu.memory_space<vmem>> -> memref<1x32x2048xbf16, #tpu.memory_space<vmem>>
    %247 = tpu.memref_squeeze %246 : memref<1x32x2048xbf16, #tpu.memory_space<vmem>> -> memref<32x2048xbf16, #tpu.memory_space<vmem>>
    %248 = tpu.memref_slice %arg13[%c1_i32_147, %c1_i32_148] : memref<2x2x!tpu.dma_semaphore, #tpu.memory_space<semaphore_mem>> -> memref<1x1x!tpu.dma_semaphore, #tpu.memory_space<semaphore_mem>>
    %249 = tpu.memref_squeeze %248 : memref<1x1x!tpu.dma_semaphore, #tpu.memory_space<semaphore_mem>> -> memref<!tpu.dma_semaphore, #tpu.memory_space<semaphore_mem>>
    tpu.wait_dma2 semaphore(%249 : memref<!tpu.dma_semaphore, #tpu.memory_space<semaphore_mem>>) src(%245 : memref<32x2048xbf16, #tpu.memory_space<any>>) dst(%247 : memref<32x2048xbf16, #tpu.memory_space<vmem>>)
    %250 = arith.truncf %243 : vector<16x2048xf32> to vector<16x2048xbf16>
    %c1_153 = arith.constant 1 : index
    %c0_154 = arith.constant 0 : index
    %c0_155 = arith.constant 0 : index
    %251 = vector.load %arg12[%c1_153, %c0_154, %c0_155] : memref<2x32x2048xbf16, #tpu.memory_space<vmem>>, vector<1x32x2048xbf16>
    %252 = vector.shape_cast %251 : vector<1x32x2048xbf16> to vector<32x2048xbf16>
    %cst_156 = arith.constant dense<0.000000e+00> : vector<16x32xf32>
    %253 = tpu.matmul %250, %252, %cst_156 {dimension_numbers = #tpu.dot_dimension_numbers<[1], [1], [0], [0], [0, 0, 1, 0], [], []>} : vector<16x2048xbf16>, vector<32x2048xbf16>, vector<16x32xf32> -> vector<16x32xf32>
    %254 = vector.broadcast %165 : vector<1x32xf32> to vector<16x32xf32>
    %255 = arith.addf %253, %254 : vector<16x32xf32>
    %256 = arith.addf %227, %255 : vector<16x32xf32>
    %cst_157 = arith.constant dense<0.000000e+00> : vector<16xf32>
    %257 = vector.multi_reduction <add>, %256, %cst_157 [1] : vector<16x32xf32> to vector<16xf32>
    %258 = vector.shape_cast %257 : vector<16xf32> to vector<16x1xf32>
    %cst_158 = arith.constant 3.200000e+01 : f32
    %259 = vector.broadcast %cst_158 : f32 to vector<16x1xf32>
    %260 = arith.divf %258, %259 : vector<16x1xf32>
    %261 = vector.broadcast %260 : vector<16x1xf32> to vector<16x32xf32>
    %262 = arith.subf %256, %261 : vector<16x32xf32>
    %263 = arith.mulf %262, %262 : vector<16x32xf32>
    %cst_159 = arith.constant dense<0.000000e+00> : vector<16xf32>
    %264 = vector.multi_reduction <add>, %263, %cst_159 [1] : vector<16x32xf32> to vector<16xf32>
    %265 = vector.shape_cast %264 : vector<16xf32> to vector<16x1xf32>
    %cst_160 = arith.constant 3.200000e+01 : f32
    %266 = vector.broadcast %cst_160 : f32 to vector<16x1xf32>
    %267 = arith.divf %265, %266 : vector<16x1xf32>
    %268 = vector.broadcast %260 : vector<16x1xf32> to vector<16x32xf32>
    %269 = arith.subf %256, %268 : vector<16x32xf32>
    %cst_161 = arith.constant 9.99999974E-6 : f32
    %270 = vector.broadcast %cst_161 : f32 to vector<16x1xf32>
    %271 = arith.addf %267, %270 : vector<16x1xf32>
    %272 = math.rsqrt %271 : vector<16x1xf32>
    %273 = vector.broadcast %272 : vector<16x1xf32> to vector<16x32xf32>
    %274 = arith.mulf %269, %273 : vector<16x32xf32>
    %275 = vector.broadcast %166 : vector<1x32xf32> to vector<16x32xf32>
    %276 = arith.mulf %274, %275 : vector<16x32xf32>
    %277 = vector.broadcast %167 : vector<1x32xf32> to vector<16x32xf32>
    %278 = arith.addf %276, %277 : vector<16x32xf32>
    %c64 = arith.constant 64 : index
    %c0_162 = arith.constant 0 : index
    %279 = vector.load %arg3[%c64, %c0_162] : memref<136x32xf32, #tpu.memory_space<vmem>>, vector<32x32xf32>
    %c96 = arith.constant 96 : index
    %c0_163 = arith.constant 0 : index
    %280 = vector.load %arg3[%c96, %c0_163] : memref<136x32xf32, #tpu.memory_space<vmem>>, vector<1x32xf32>
    %c97 = arith.constant 97 : index
    %c0_164 = arith.constant 0 : index
    %281 = vector.load %arg3[%c97, %c0_164] : memref<136x32xf32, #tpu.memory_space<vmem>>, vector<1x32xf32>
    %c98 = arith.constant 98 : index
    %c0_165 = arith.constant 0 : index
    %282 = vector.load %arg3[%c98, %c0_165] : memref<136x32xf32, #tpu.memory_space<vmem>>, vector<1x32xf32>
    %c0_166 = arith.constant 0 : index
    %c0_167 = arith.constant 0 : index
    %283 = vector.load %arg4[%c0_166, %c0_167] : memref<40x16xf32, #tpu.memory_space<vmem>>, vector<32x16xf32>
    %c32_168 = arith.constant 32 : index
    %c0_169 = arith.constant 0 : index
    %284 = vector.load %arg4[%c32_168, %c0_169] : memref<40x16xf32, #tpu.memory_space<vmem>>, vector<1x16xf32>
    %c33_170 = arith.constant 33 : index
    %c0_171 = arith.constant 0 : index
    %285 = vector.load %arg4[%c33_170, %c0_171] : memref<40x16xf32, #tpu.memory_space<vmem>>, vector<1x16xf32>
    %c34_172 = arith.constant 34 : index
    %c0_173 = arith.constant 0 : index
    %286 = vector.load %arg4[%c34_172, %c0_173] : memref<40x16xf32, #tpu.memory_space<vmem>>, vector<1x16xf32>
    %c35_174 = arith.constant 35 : index
    %c0_175 = arith.constant 0 : index
    %287 = vector.load %arg4[%c35_174, %c0_175] : memref<40x16xf32, #tpu.memory_space<vmem>>, vector<1x16xf32>
    %c36_176 = arith.constant 36 : index
    %c0_177 = arith.constant 0 : index
    %288 = vector.load %arg4[%c36_176, %c0_177] : memref<40x16xf32, #tpu.memory_space<vmem>>, vector<1x16xf32>
    %cst_178 = arith.constant dense<0.000000e+00> : vector<16x32xf32>
    %289 = tpu.matmul %278, %279, %cst_178 {dimension_numbers = #tpu.dot_dimension_numbers<[1], [0], [0], [1], [0, 0, 1, 1], [], []>} : vector<16x32xf32>, vector<32x32xf32>, vector<16x32xf32> -> vector<16x32xf32>
    %290 = vector.broadcast %280 : vector<1x32xf32> to vector<16x32xf32>
    %291 = arith.addf %289, %290 : vector<16x32xf32>
    %cst_179 = arith.constant dense<0.000000e+00> : vector<16xf32>
    %292 = vector.multi_reduction <add>, %291, %cst_179 [1] : vector<16x32xf32> to vector<16xf32>
    %293 = vector.shape_cast %292 : vector<16xf32> to vector<16x1xf32>
    %cst_180 = arith.constant 3.200000e+01 : f32
    %294 = vector.broadcast %cst_180 : f32 to vector<16x1xf32>
    %295 = arith.divf %293, %294 : vector<16x1xf32>
    %296 = vector.broadcast %295 : vector<16x1xf32> to vector<16x32xf32>
    %297 = arith.subf %291, %296 : vector<16x32xf32>
    %298 = arith.mulf %297, %297 : vector<16x32xf32>
    %cst_181 = arith.constant dense<0.000000e+00> : vector<16xf32>
    %299 = vector.multi_reduction <add>, %298, %cst_181 [1] : vector<16x32xf32> to vector<16xf32>
    %300 = vector.shape_cast %299 : vector<16xf32> to vector<16x1xf32>
    %cst_182 = arith.constant 3.200000e+01 : f32
    %301 = vector.broadcast %cst_182 : f32 to vector<16x1xf32>
    %302 = arith.divf %300, %301 : vector<16x1xf32>
    %303 = vector.broadcast %295 : vector<16x1xf32> to vector<16x32xf32>
    %304 = arith.subf %291, %303 : vector<16x32xf32>
    %cst_183 = arith.constant 9.99999974E-6 : f32
    %305 = vector.broadcast %cst_183 : f32 to vector<16x1xf32>
    %306 = arith.addf %302, %305 : vector<16x1xf32>
    %307 = math.rsqrt %306 : vector<16x1xf32>
    %308 = vector.broadcast %307 : vector<16x1xf32> to vector<16x32xf32>
    %309 = arith.mulf %304, %308 : vector<16x32xf32>
    %310 = vector.broadcast %281 : vector<1x32xf32> to vector<16x32xf32>
    %311 = arith.mulf %309, %310 : vector<16x32xf32>
    %312 = vector.broadcast %282 : vector<1x32xf32> to vector<16x32xf32>
    %313 = arith.addf %311, %312 : vector<16x32xf32>
    %cst_184 = arith.constant 0.000000e+00 : f32
    %314 = vector.broadcast %cst_184 : f32 to vector<16x32xf32>
    %315 = arith.cmpf oge, %313, %314 : vector<16x32xf32>
    %cst_185 = arith.constant 0.00999999977 : f32
    %316 = vector.broadcast %cst_185 : f32 to vector<16x32xf32>
    %317 = arith.mulf %316, %313 : vector<16x32xf32>
    %318 = arith.select %315, %313, %317 : vector<16x32xi1>, vector<16x32xf32>
    %cst_186 = arith.constant dense<0.000000e+00> : vector<16x16xf32>
    %319 = tpu.matmul %318, %283, %cst_186 {dimension_numbers = #tpu.dot_dimension_numbers<[1], [0], [0], [1], [0, 0, 1, 1], [], []>} : vector<16x32xf32>, vector<32x16xf32>, vector<16x16xf32> -> vector<16x16xf32>
    %320 = vector.broadcast %284 : vector<1x16xf32> to vector<16x16xf32>
    %321 = arith.addf %319, %320 : vector<16x16xf32>
    %cst_187 = arith.constant dense<0.000000e+00> : vector<16xf32>
    %322 = vector.multi_reduction <add>, %321, %cst_187 [1] : vector<16x16xf32> to vector<16xf32>
    %323 = vector.shape_cast %322 : vector<16xf32> to vector<16x1xf32>
    %cst_188 = arith.constant 1.600000e+01 : f32
    %324 = vector.broadcast %cst_188 : f32 to vector<16x1xf32>
    %325 = arith.divf %323, %324 : vector<16x1xf32>
    %326 = vector.broadcast %325 : vector<16x1xf32> to vector<16x16xf32>
    %327 = arith.subf %321, %326 : vector<16x16xf32>
    %328 = arith.mulf %327, %327 : vector<16x16xf32>
    %cst_189 = arith.constant dense<0.000000e+00> : vector<16xf32>
    %329 = vector.multi_reduction <add>, %328, %cst_189 [1] : vector<16x16xf32> to vector<16xf32>
    %330 = vector.shape_cast %329 : vector<16xf32> to vector<16x1xf32>
    %cst_190 = arith.constant 1.600000e+01 : f32
    %331 = vector.broadcast %cst_190 : f32 to vector<16x1xf32>
    %332 = arith.divf %330, %331 : vector<16x1xf32>
    %333 = vector.broadcast %325 : vector<16x1xf32> to vector<16x16xf32>
    %334 = arith.subf %321, %333 : vector<16x16xf32>
    %cst_191 = arith.constant 9.99999974E-6 : f32
    %335 = vector.broadcast %cst_191 : f32 to vector<16x1xf32>
    %336 = arith.addf %332, %335 : vector<16x1xf32>
    %337 = math.rsqrt %336 : vector<16x1xf32>
    %338 = vector.broadcast %337 : vector<16x1xf32> to vector<16x16xf32>
    %339 = arith.mulf %334, %338 : vector<16x16xf32>
    %340 = vector.broadcast %285 : vector<1x16xf32> to vector<16x16xf32>
    %341 = arith.mulf %339, %340 : vector<16x16xf32>
    %342 = vector.broadcast %286 : vector<1x16xf32> to vector<16x16xf32>
    %343 = arith.addf %341, %342 : vector<16x16xf32>
    %cst_192 = arith.constant 0.000000e+00 : f32
    %344 = vector.broadcast %cst_192 : f32 to vector<16x16xf32>
    %345 = arith.cmpf oge, %343, %344 : vector<16x16xf32>
    %cst_193 = arith.constant 0.00999999977 : f32
    %346 = vector.broadcast %cst_193 : f32 to vector<16x16xf32>
    %347 = arith.mulf %346, %343 : vector<16x16xf32>
    %348 = arith.select %345, %343, %347 : vector<16x16xi1>, vector<16x16xf32>
    %cst_194 = arith.constant dense<0.000000e+00> : vector<1x16xf32>
    %349 = tpu.matmul %287, %348, %cst_194 {dimension_numbers = #tpu.dot_dimension_numbers<[1], [1], [0], [0], [0, 0, 1, 0], [], []>} : vector<1x16xf32>, vector<16x16xf32>, vector<1x16xf32> -> vector<1x16xf32>
    %350 = arith.addf %349, %288 : vector<1x16xf32>
    %c0_195 = arith.constant 0 : index
    %c0_196 = arith.constant 0 : index
    %351 = vector.load %arg10[%c0_195, %c0_196] : memref<1x16xf32, #tpu.memory_space<vmem>>, vector<1x16xf32>
    tpu.vector_store %arg10[%c0_195, %c0_196], %350 {strides = array<i32>} : memref<1x16xf32, #tpu.memory_space<vmem>>, vector<1x16xf32>,
    return
  }
  func.func @transform_0(%arg0: i32) -> (i32, i32, i32) {
    %c0_i32 = arith.constant 0 : i32
    %c0_i32_0 = arith.constant 0 : i32
    %c0_i32_1 = arith.constant 0 : i32
    %c0_i32_2 = arith.constant 0 : i32
    return %c0_i32, %c0_i32_0, %c0_i32_1 : i32, i32, i32
  }
  func.func @transform_1(%arg0: i32) -> (i32, i32, i32) {
    %c0_i32 = arith.constant 0 : i32
    %c0_i32_0 = arith.constant 0 : i32
    %c0_i32_1 = arith.constant 0 : i32
    %c0_i32_2 = arith.constant 0 : i32
    return %c0_i32, %c0_i32_0, %c0_i32_1 : i32, i32, i32
  }
  func.func @transform_2(%arg0: i32) -> (i32, i32) {
    %c0_i32 = arith.constant 0 : i32
    %c0_i32_0 = arith.constant 0 : i32
    %c0_i32_1 = arith.constant 0 : i32
    return %c0_i32, %c0_i32_0 : i32, i32
  }
  func.func @transform_3(%arg0: i32) -> (i32, i32) {
    %c0_i32 = arith.constant 0 : i32
    %c0_i32_0 = arith.constant 0 : i32
    %c0_i32_1 = arith.constant 0 : i32
    return %c0_i32, %c0_i32_0 : i32, i32
  }
  func.func @transform_4(%arg0: i32) -> (i32, i32, i32) {
    %c0_i32 = arith.constant 0 : i32
    %c0_i32_0 = arith.constant 0 : i32
    %c0_i32_1 = arith.constant 0 : i32
    %c0_i32_2 = arith.constant 0 : i32
    return %c0_i32, %c0_i32_0, %c0_i32_1 : i32, i32, i32
  }
  func.func @transform_5(%arg0: i32) -> (i32, i32, i32) {
    %c0_i32 = arith.constant 0 : i32
    %c0_i32_0 = arith.constant 0 : i32
    %c0_i32_1 = arith.constant 0 : i32
    %c0_i32_2 = arith.constant 0 : i32
    return %c0_i32, %c0_i32_0, %c0_i32_1 : i32, i32, i32
  }
  func.func @transform_6(%arg0: i32) -> (i32, i32, i32) {
    %c0_i32 = arith.constant 0 : i32
    %c0_i32_0 = arith.constant 0 : i32
    %c0_i32_1 = arith.constant 0 : i32
    %c0_i32_2 = arith.constant 0 : i32
    return %c0_i32, %c0_i32_0, %c0_i32_1 : i32, i32, i32
  }
  func.func @transform_9(%arg0: i32) -> (i32, i32) {
    %c0_i32 = arith.constant 0 : i32
    %c0_i32_0 = arith.constant 0 : i32
    %c0_i32_1 = arith.constant 0 : i32
    return %c0_i32, %c0_i32_0 : i32, i32
  }
}

</mosaic_0001>

<llo_original>
// kernel: tpu_custom_call.1
$region0: #{tpu_custom_call.1}
  #allocation0 [shape = 'u32[]', space=smem, size = 0x4, offset = 0x4, fixed_abs, tag = 'smem constant byte address 0x4 - core index']
  #allocation1 [shape = 'u32[72,128]{1,0:T(1,128)}', space=vmem, size = 0x9000, scoped, tag = 'internal scratch']
  #allocation2 [shape = 'bf16[2,32,2048]{2,1,0:T(8,128)(2,1)}', space=vmem, size = 0x40000, scoped, tag = 'scratch operand']
  #allocation3 [shape = 'bf16[2,32,2048]{2,1,0:T(8,128)(2,1)}', space=vmem, size = 0x40000, scoped, tag = 'scratch operand']
  #allocation4 [shape = 's32[4]{0}', space=sflag, size = 0x10, scoped, tag = 'scratch operand']
  #allocation7 [shape = 's32[]', space=sflag, size = 0x4, offset = 0, fixed_abs, tag = 'sflag constant byte address 0x0 - dummy sync flag']
  #allocation8 [shape = 's32[]', space=sflag, size = 0x4, offset = 0, fixed_abs, tag = 'sflag constant byte address 0x0 - dummy sync flag']
  #allocation9 [shape = 'u32[]', space=smem, size = 0x4, offset = 0x44, fixed_abs, tag = 'smem constant byte address 0x44 - assertion arg 0']
  #allocation10 [shape = 'u32[]', space=smem, size = 0x4, offset = 0x48, fixed_abs, tag = 'smem constant byte address 0x48 - assertion arg 1']
  #allocation11 [shape = 's32[]', space=sflag, size = 0x4, offset = 0, fixed_abs, tag = 'sflag constant byte address 0x0 - dummy sync flag']
  #allocation12 [shape = 's32[]', space=sflag, size = 0x4, offset = 0, fixed_abs, tag = 'sflag constant byte address 0x0 - dummy sync flag']
  #allocation13 [shape = 's32[]', space=sflag, size = 0x4, offset = 0, fixed_abs, tag = 'sflag constant byte address 0x0 - dummy sync flag']
  #allocation14 [shape = 's32[]', space=sflag, size = 0x4, offset = 0, fixed_abs, tag = 'sflag constant byte address 0x0 - dummy sync flag']
  #allocation15 [shape = 's32[]', space=sflag, size = 0x4, offset = 0, fixed_abs, tag = 'sflag constant byte address 0x0 - dummy sync flag']
  #allocation16 [shape = 's32[]', space=sflag, size = 0x4, offset = 0, fixed_abs, tag = 'sflag constant byte address 0x0 - dummy sync flag']
  %s0 = inlined_call_operand.vmem [shape: f32[2,8,4], index: 0, kind: input, shape index: {}]
  %s1 = inlined_call_operand.vmem [shape: f32[2,8,2], index: 1, kind: input, shape index: {}]
  %s2 = inlined_call_operand.vmem [shape: f32[136,32], index: 2, kind: input, shape index: {}]
  %s3 = inlined_call_operand.vmem [shape: f32[40,16], index: 3, kind: input, shape index: {}]
  %s4 = inlined_call_operand.vmem [shape: f32[2,32,96], index: 4, kind: input, shape index: {}]
  %s5 = inlined_call_operand.vmem [shape: f32[2,32,32], index: 5, kind: input, shape index: {}]
  %s6 = inlined_call_operand.vmem [shape: f32[2,1,2048], index: 6, kind: input, shape index: {}]
  %s7 = inlined_call_operand.hbm [shape: bf16[2,32,2048], index: 7, kind: input, shape index: {}]
  %s8 = inlined_call_operand.hbm [shape: bf16[2,32,2048], index: 8, kind: input, shape index: {}]
  %s9 = inlined_call_operand.hbm [shape: f32[1,16], index: 9, kind: output, shape index: {}]
  %s10 = sld [smem:[#allocation0]]
  $region54: #{tpu_custom_call.1} parent=0
    _
  %s12 = ssub.s32 1, %s10
  %s13 = scalar_select 0, %s12, %s10
  $region1: #{tpu_custom_call.1} parent=0
    #allocation5 [shape = 'u8[512]{0}', space=vmem, size = 0x400, scoped, tag = 'output window, operand 0, single buffered']
    #allocation6 [shape = 's32[1]{0}', space=sflag, size = 0x4, scoped, tag = 'scoped memory for tpu_custom_call.1']
    %14 = vsyncpa [#allocation6], 0
    // Predicated region
    $region2: #{tpu_custom_call.1} parent=1 // pred_check
      _
    $region3: #{tpu_custom_call.1} parent=1 // pred_check_branch
      %16 = sbr.rel (0) target = $region5
    $region4: #{tpu_custom_call.1} parent=1 // pred_region
      _
    $region5: #{tpu_custom_call.1} parent=1 // pred_fallthru
      _
    // Predicated region
    $region6: #{tpu_custom_call.1} parent=1 // pred_check
      _
    $region7: #{tpu_custom_call.1} parent=1 // pred_check_branch
      %18 = sbr.rel (0) target = $region9
    $region8: #{tpu_custom_call.1} parent=1 // pred_region
      _
    $region9: #{tpu_custom_call.1} parent=1 // pred_fallthru
      _
    // Predicated region
    $region10: #{tpu_custom_call.1} parent=1 // pred_check
      _
    $region11: #{tpu_custom_call.1} parent=1 // pred_check_branch
      %20 = sbr.rel (0) target = $region13
    $region12: #{tpu_custom_call.1} parent=1 // pred_region
      _
    $region13: #{tpu_custom_call.1} parent=1 // pred_fallthru
      _
    // Predicated region
    $region14: #{tpu_custom_call.1} parent=1 // pred_check
      _
    $region15: #{tpu_custom_call.1} parent=1 // pred_check_branch
      %22 = sbr.rel (0) target = $region17
    $region16: #{tpu_custom_call.1} parent=1 // pred_region
      _
    $region17: #{tpu_custom_call.1} parent=1 // pred_fallthru
      _
    // Predicated region
    $region18: #{tpu_custom_call.1} parent=1 // pred_check
      _
    $region19: #{tpu_custom_call.1} parent=1 // pred_check_branch
      %24 = sbr.rel (0) target = $region21
    $region20: #{tpu_custom_call.1} parent=1 // pred_region
      _
    $region21: #{tpu_custom_call.1} parent=1 // pred_fallthru
      _
    // Predicated region
    $region22: #{tpu_custom_call.1} parent=1 // pred_check
      _
    $region23: #{tpu_custom_call.1} parent=1 // pred_check_branch
      %26 = sbr.rel (0) target = $region25
    $region24: #{tpu_custom_call.1} parent=1 // pred_region
      _
    $region25: #{tpu_custom_call.1} parent=1 // pred_fallthru
      _
    // Predicated region
    $region26: #{tpu_custom_call.1} parent=1 // pred_check
      _
    $region27: #{tpu_custom_call.1} parent=1 // pred_check_branch
      %28 = sbr.rel (0) target = $region29
    $region28: #{tpu_custom_call.1} parent=1 // pred_region
      _
    $region29: #{tpu_custom_call.1} parent=1 // pred_fallthru
      _
    // Predicated region
    $region30: #{tpu_custom_call.1} parent=1 // pred_check
      _
    $region31: #{tpu_custom_call.1} parent=1 // pred_check_branch
      %31 = sbr.rel target = $region33
    $region32: #{tpu_custom_call.1} parent=1 // pred_region
      %32 = sst [smem:[#allocation9]] [#allocation8]
      %33 = sst [smem:[#allocation10]] [#allocation7]
    $region33: #{tpu_custom_call.1} parent=1 // pred_fallthru
      _
    %35 = shalt.err (0)
    %s37 = sshll.u32 %s7, 4
    %s38 = int_to_ptr.hbm [resolvable:$true] %s37
    %s39 = sshll.u32 [#allocation2], 4
    %s40 = int_to_ptr.vmem [resolvable:$true] %s39
    %42 = dma.hbm_to_vmem [thread:$0]  %s38, 4096, %s40, [#allocation4]
    %s43 = scalar_lea.sflag [#allocation4], 1
    // Predicated region
    $region34: #{tpu_custom_call.1} parent=1 // pred_check
      _
    $region35: #{tpu_custom_call.1} parent=1 // pred_check_branch
      %45 = sbr.rel target = $region37
    $region36: #{tpu_custom_call.1} parent=1 // pred_region
      %46 = sst [smem:[#allocation9]] [#allocation12]
      %47 = sst [smem:[#allocation10]] [#allocation11]
    $region37: #{tpu_custom_call.1} parent=1 // pred_fallthru
      _
    %49 = shalt.err (0)
    %s51 = sshll.u32 %s8, 4
    %s52 = int_to_ptr.hbm [resolvable:$true] %s51
    %s53 = sshll.u32 [#allocation3], 4
    %s54 = int_to_ptr.vmem [resolvable:$true] %s53
    %56 = dma.hbm_to_vmem [thread:$0]  %s52, 4096, %s54, %s43
    %s57 = scalar_lea.hbm %s7, 256
    %s58 = scalar_lea.vmem [#allocation2], 256
    %s59 = scalar_lea.sflag [#allocation4], 2
    // Predicated region
    $region38: #{tpu_custom_call.1} parent=1 // pred_check
      _
    $region39: #{tpu_custom_call.1} parent=1 // pred_check_branch
      %61 = sbr.rel target = $region41
    $region40: #{tpu_custom_call.1} parent=1 // pred_region
      %62 = sst [smem:[#allocation9]] [#allocation14]
      %63 = sst [smem:[#allocation10]] [#allocation13]
    $region41: #{tpu_custom_call.1} parent=1 // pred_fallthru
      _
    %65 = shalt.err (0)
    %s67 = sshll.u32 %s57, 4
    %s68 = int_to_ptr.hbm [resolvable:$true] %s67
    %s69 = sshll.u32 %s58, 4
    %s70 = int_to_ptr.vmem [resolvable:$true] %s69
    %72 = dma.hbm_to_vmem [thread:$0]  %s68, 4096, %s70, %s59
    %s73 = scalar_lea.hbm %s8, 256
    %s74 = scalar_lea.vmem [#allocation3], 256
    %s75 = scalar_lea.sflag [#allocation4], 3
    // Predicated region
    $region42: #{tpu_custom_call.1} parent=1 // pred_check
      _
    $region43: #{tpu_custom_call.1} parent=1 // pred_check_branch
      %77 = sbr.rel target = $region45
    $region44: #{tpu_custom_call.1} parent=1 // pred_region
      %78 = sst [smem:[#allocation9]] [#allocation16]
      %79 = sst [smem:[#allocation10]] [#allocation15]
    $region45: #{tpu_custom_call.1} parent=1 // pred_fallthru
      _
    %81 = shalt.err (0)
    %s83 = sshll.u32 %s73, 4
    %s84 = int_to_ptr.hbm [resolvable:$true] %s83
    %s85 = sshll.u32 %s74, 4
    %s86 = int_to_ptr.vmem [resolvable:$true] %s85
    %88 = dma.hbm_to_vmem [thread:$0]  %s84, 4096, %s86, %s75
    %v89 = vld [vmem:[%s0] sm:$0xff]
    %v90 = vld [vmem:[%s0 + $0x8] sm:$0xff]
    %v91 = vld [vmem:[%s1] sm:$0xff]
    %v92 = vld [vmem:[%s1 + $0x8] sm:$0xff]
    %v93 = vld [vmem:[%s2] sm:$0xf]
    %v94 = vld [vmem:[%s2 + $0x4] sm:$0x3]
    %v95 = vld [vmem:[%s2 + $0x8] sm:$0x1]
    %v96 = vld [vmem:[%s2 + $0x10] sm:$0xff]
    %v97 = vld [vmem:[%s2 + $0x18] sm:$0xff]
    %vm98 = vcmask 15360
    %v100 = vsel %vm98, %v91, 0
    %v103 = vsel %vm98, %v92, 0
    %vm105 = vcmask 1041408
    %v107 = vsel %vm105, %v94, 0
    %109 = vmatpush.msra.mxu0 0.0
    %110 = vmatpush.msra.mxu0 0.0
    %111 = vmatpush.msra.mxu0 0.0
    %112 = vmatpush.msra.mxu0 0.0
    %113 = vmatpush.msra.mxu0 0.0
    %114 = vmatpush.msra.mxu0 0.0
    %115 = vmatpush.msra.mxu0 0.0
    %116 = vmatpush.msra.mxu0 0.0
    %117 = vmatpush.msra.mxu0 0.0
    %118 = vmatpush.msra.mxu0 0.0
    %119 = vmatpush.msra.mxu0 0.0
    %120 = vmatpush.msra.mxu0 0.0
    %121 = vmatpush.msra.mxu0 0.0
    %122 = vmatpush.msra.mxu0 0.0
    %123 = vmatpush.msra.mxu0 0.0
    %124 = vmatpush.msra.mxu0 %v107
    %125 = vmatmul.f32.gmra.mxu0 %v100
    %v126 = vpop.f32.mrf.mxu0
    %v127 = vadd.f32 0.0, %v126
    %128 = vmatmul.f32.gmra.mxu0 %v103
    %v129 = vpop.f32.mrf.mxu0
    %v130 = vadd.f32 0.0, %v129
    %131 = vdwg.mxu0
    %vm132 = vcmask 31744
    %v134 = vsel %vm132, %v89, 0
    %v137 = vsel %vm132, %v90, 0
    %vm139 = vcmask 1043456
    %v141 = vsel %vm139, %v93, 0
    %143 = vmatpush.msra.mxu0 0.0
    %144 = vmatpush.msra.mxu0 0.0
    %145 = vmatpush.msra.mxu0 0.0
    %146 = vmatpush.msra.mxu0 0.0
    %147 = vmatpush.msra.mxu0 0.0
    %148 = vmatpush.msra.mxu0 0.0
    %149 = vmatpush.msra.mxu0 0.0
    %150 = vmatpush.msra.mxu0 0.0
    %151 = vmatpush.msra.mxu0 0.0
    %152 = vmatpush.msra.mxu0 0.0
    %153 = vmatpush.msra.mxu0 0.0
    %154 = vmatpush.msra.mxu0 0.0
    %155 = vmatpush.msra.mxu0 0.0
    %156 = vmatpush.msra.mxu0 0.0
    %157 = vmatpush.msra.mxu0 0.0
    %158 = vmatpush.msra.mxu0 %v141
    %159 = vmatmul.f32.gmra.mxu0 %v134
    %v160 = vpop.f32.mrf.mxu0
    %v161 = vadd.f32 %v127, %v160
    %162 = vmatmul.f32.gmra.mxu0 %v137
    %v163 = vpop.f32.mrf.mxu0
    %v164 = vadd.f32 %v130, %v163
    %165 = vdwg.mxu0
    %v166 = vperm.slane %v95, 0
    %v167 = vadd.f32 %v161, %v166
    %v168 = vadd.f32 %v164, %v166
    %v169 = vadd.f32 %v167, %v96
    %v170 = vadd.f32 %v168, %v97
    %v171 = vld [vmem:[%s2 + $0x68] sm:$0xff]
    %v172 = vld [vmem:[%s2 + $0x70] sm:$0xff]
    %v173 = vld [vmem:[%s2 + $0x78] sm:$0xff]
    %v174 = vld [vmem:[%s2 + $0x80] sm:$0xff]
    %v175 = vld [vmem:[%s2 + $0x20] sm:$0x1]
    %v176 = vld [vmem:[%s2 + $0x21] sm:$0x1]
    %v177 = vld [vmem:[%s2 + $0x22] sm:$0x1]
    %v178 = vld [vmem:[%s2 + $0x23] sm:$0x1]
    %v179 = vld [vmem:[%s2 + $0x24] sm:$0x1]
    %v180 = vld [vmem:[%s2 + $0x25] sm:$0x1]
    %v181 = vld [vmem:[%s2 + $0x26] sm:$0x1]
    %v182 = vld [vmem:[%s2 + $0x27] sm:$0x1]
    %v183 = vld [vmem:[%s2 + $0x28] sm:$0x1]
    %v184 = vld [vmem:[%s4] sm:$0xff]
    %v185 = vld [vmem:[%s4 + $0x8] sm:$0xff]
    %v186 = vld [vmem:[%s4 + $0x10] sm:$0xff]
    %v187 = vld [vmem:[%s4 + $0x18] sm:$0xff]
    %vm188 = vcmask 261120
    %v190 = vsel %vm188, %v169, 0
    %v193 = vsel %vm188, %v170, 0
    %195 = vmatpush.msra.mxu0 0.0
    %196 = vmatpush.msra.mxu0 0.0
    %197 = vmatpush.msra.mxu0 0.0
    %198 = vmatpush.msra.mxu0 0.0
    %199 = vmatpush.msra.mxu0 0.0
    %200 = vmatpush.msra.mxu0 0.0
    %201 = vmatpush.msra.mxu0 0.0
    %202 = vmatpush.msra.mxu0 0.0
    %203 = vmatpush.msra.mxu0 0.0
    %204 = vmatpush.msra.mxu0 0.0
    %205 = vmatpush.msra.mxu0 0.0
    %206 = vmatpush.msra.mxu0 0.0
    %207 = vmatpush.msra.mxu0 %v187
    %208 = vmatpush.msra.mxu0 %v186
    %209 = vmatpush.msra.mxu0 %v185
    %210 = vmatpush.msra.mxu0 %v184
    %211 = vmatmul.f32.gmra.mxu0 %v190
    %v212 = vpop.f32.mrf.mxu0
    %v213 = vadd.f32 0.0, %v212
    %214 = vmatmul.f32.gmra.mxu0 %v193
    %v215 = vpop.f32.mrf.mxu0
    %v216 = vadd.f32 0.0, %v215
    %217 = vdwg.mxu0
    %v218 = vperm.slane %v175, 0
    %v219 = vadd.f32 %v213, %v218
    %v220 = vadd.f32 %v216, %v218
    %v221 = vperm.slane %v176, 0
    %223 = vrot.lane.b32.xlu0 %v221, 32
    %v224 = vpop.permute.xlu0 %223
    %v226 = vadd.f32 %v213, %v224
    %v227 = vadd.f32 %v216, %v224
    %v228 = vperm.slane %v177, 0
    %230 = vrot.lane.b32.xlu0 %v228, 64
    %v231 = vpop.permute.xlu0 %230
    %v233 = vadd.f32 %v213, %v231
    %v234 = vadd.f32 %v216, %v231
    %237 = vrot.lane.b32.xlu0 %v226, 96
    %v238 = vpop.permute.xlu0 %237
    %239 = vrot.lane.b32.xlu0 %v227, 96
    %v240 = vpop.permute.xlu0 %239
    %245 = vrot.lane.b32.xlu0 %v233, 64
    %v246 = vpop.permute.xlu0 %245
    %247 = vrot.lane.b32.xlu0 %v234, 64
    %v248 = vpop.permute.xlu0 %247
    %v251 = vmul.f32 %v219, %v238
    %v252 = vmul.f32 %v220, %v240
    %v254 = vsel %vm188, %v251, 0
    %v257 = vsel %vm188, %v252, 0
    %259 = vmatpush.msra.mxu0 0.0
    %260 = vmatpush.msra.mxu0 0.0
    %261 = vmatpush.msra.mxu0 0.0
    %262 = vmatpush.msra.mxu0 0.0
    %263 = vmatpush.msra.mxu0 0.0
    %264 = vmatpush.msra.mxu0 0.0
    %265 = vmatpush.msra.mxu0 0.0
    %266 = vmatpush.msra.mxu0 0.0
    %267 = vmatpush.msra.mxu0 0.0
    %268 = vmatpush.msra.mxu0 0.0
    %269 = vmatpush.msra.mxu0 0.0
    %270 = vmatpush.msra.mxu0 0.0
    %271 = vmatpush.msra.mxu0 %v174
    %272 = vmatpush.msra.mxu0 %v173
    %273 = vmatpush.msra.mxu0 %v172
    %274 = vmatpush.msra.mxu0 %v171
    %275 = vmatmul.f32.gmra.mxu0 %v254
    %v276 = vpop.f32.mrf.mxu0
    %v277 = vadd.f32 0.0, %v276
    %278 = vmatmul.f32.gmra.mxu0 %v257
    %v279 = vpop.f32.mrf.mxu0
    %v280 = vadd.f32 0.0, %v279
    %281 = vdwg.mxu0
    %v282 = vmul.f32 %v277, 0.35355338
    %v283 = vmul.f32 %v280, 0.35355338
    %v284 = vmul.f32 %v219, %v240
    %v285 = vmul.f32 %v220, %v238
    %v287 = vsel %vm188, %v284, 0
    %v290 = vsel %vm188, %v285, 0
    %292 = vmatpush.msra.mxu0 0.0
    %293 = vmatpush.msra.mxu0 0.0
    %294 = vmatpush.msra.mxu0 0.0
    %295 = vmatpush.msra.mxu0 0.0
    %296 = vmatpush.msra.mxu0 0.0
    %297 = vmatpush.msra.mxu0 0.0
    %298 = vmatpush.msra.mxu0 0.0
    %299 = vmatpush.msra.mxu0 0.0
    %300 = vmatpush.msra.mxu0 0.0
    %301 = vmatpush.msra.mxu0 0.0
    %302 = vmatpush.msra.mxu0 0.0
    %303 = vmatpush.msra.mxu0 0.0
    %304 = vmatpush.msra.mxu0 %v174
    %305 = vmatpush.msra.mxu0 %v173
    %306 = vmatpush.msra.mxu0 %v172
    %307 = vmatpush.msra.mxu0 %v171
    %308 = vmatmul.f32.gmra.mxu0 %v287
    %v309 = vpop.f32.mrf.mxu0
    %v310 = vadd.f32 0.0, %v309
    %311 = vmatmul.f32.gmra.mxu0 %v290
    %v312 = vpop.f32.mrf.mxu0
    %v313 = vadd.f32 0.0, %v312
    %314 = vdwg.mxu0
    %v315 = vmul.f32 %v310, 0.35355338
    %v316 = vmul.f32 %v313, 0.35355338
    %v317 = vmax.f32 %v282, %v315
    %v318 = vmax.f32 %v283, %v316
    %v319 = vsub.f32 %v282, %v317
    %v320 = vsub.f32 %v283, %v318
    %v321 = vmul.f32 %v319, 1.442695
    %v322 = vpow.pop %v321
    %v323 = vmul.f32 %v320, 1.442695
    %v324 = vpow.pop %v323
    %v325 = vsub.f32 %v315, %v317
    %v326 = vsub.f32 %v316, %v318
    %v327 = vmul.f32 %v325, 1.442695
    %v328 = vpow.pop %v327
    %v329 = vmul.f32 %v326, 1.442695
    %v330 = vpow.pop %v329
    %v331 = vmul.f32 %v322, %v246
    %v332 = vmul.f32 %v324, %v248
    %v333 = vmul.f32 %v328, %v248
    %v334 = vmul.f32 %v330, %v246
    %v335 = vadd.f32 %v331, %v333
    %v336 = vadd.f32 %v332, %v334
    %v337 = vadd.f32 %v322, %v328
    %v338 = vadd.f32 %v324, %v330
    %v339 = vrcp.pop %v337
    %v340 = vmul.f32 %v337, %v339
    %v341 = vsub.f32 1.0, %v340
    %v342 = vmul.f32 %v339, %v341
    %v343 = vadd.f32 %v339, %v342
    %vm344 = vweird.f32 %v337
    %vm345 = vweird.f32 %v339
    %vm346 = vmor %vm344, %vm345
    %v347 = vsel %vm346, %v339, %v343
    %v348 = vand.u32 2147483647, %v337
    %vm349 = vcmp.eq.f32.partialorder %v348, 8.507059e+37
    %v350 = vand.u32 %v337, 2147483648
    %v351 = vor.u32 1.1754944e-38, %v350
    %v352 = vsel %vm349, %v351, %v347
    %v353 = vmul.f32 %v335, %v352
    %v354 = vrcp.pop %v338
    %v355 = vmul.f32 %v338, %v354
    %v356 = vsub.f32 1.0, %v355
    %v357 = vmul.f32 %v354, %v356
    %v358 = vadd.f32 %v354, %v357
    %vm359 = vweird.f32 %v338
    %vm360 = vweird.f32 %v354
    %vm361 = vmor %vm359, %vm360
    %v362 = vsel %vm361, %v354, %v358
    %v363 = vand.u32 2147483647, %v338
    %vm364 = vcmp.eq.f32.partialorder %v363, 8.507059e+37
    %v365 = vand.u32 %v338, 2147483648
    %v366 = vor.u32 1.1754944e-38, %v365
    %v367 = vsel %vm364, %v366, %v362
    %v368 = vmul.f32 %v336, %v367
    %v369 = vld [vmem:[%s5] sm:$0xff]
    %v370 = vld [vmem:[%s5 + $0x8] sm:$0xff]
    %v371 = vld [vmem:[%s5 + $0x10] sm:$0xff]
    %v372 = vld [vmem:[%s5 + $0x18] sm:$0xff]
    %v373 = vperm.slane %v178, 0
    %v375 = vsel %vm188, %v353, 0
    %v378 = vsel %vm188, %v368, 0
    %380 = vmatpush.msra.mxu0 0.0
    %381 = vmatpush.msra.mxu0 0.0
    %382 = vmatpush.msra.mxu0 0.0
    %383 = vmatpush.msra.mxu0 0.0
    %384 = vmatpush.msra.mxu0 0.0
    %385 = vmatpush.msra.mxu0 0.0
    %386 = vmatpush.msra.mxu0 0.0
    %387 = vmatpush.msra.mxu0 0.0
    %388 = vmatpush.msra.mxu0 0.0
    %389 = vmatpush.msra.mxu0 0.0
    %390 = vmatpush.msra.mxu0 0.0
    %391 = vmatpush.msra.mxu0 0.0
    %392 = vmatpush.msra.mxu0 %v372
    %393 = vmatpush.msra.mxu0 %v371
    %394 = vmatpush.msra.mxu0 %v370
    %395 = vmatpush.msra.mxu0 %v369
    %396 = vmatmul.f32.gmra.mxu0 %v375
    %v397 = vpop.f32.mrf.mxu0
    %v398 = vadd.f32 %v373, %v397
    %399 = vmatmul.f32.gmra.mxu0 %v378
    %v400 = vpop.f32.mrf.mxu0
    %v401 = vadd.f32 %v373, %v400
    %402 = vdwg.mxu0
    %v403 = vadd.f32 %v169, %v398
    %v404 = vadd.f32 %v170, %v401
    %v405 = vsel %vm188, %v403, 0.0
    %406 = vadd.xlane.f32.xlu0 %v405
    %v407 = vpop.xlane.xlu0 %406
    %v408 = vsel %vm188, %v404, 0.0
    %409 = vadd.xlane.f32.xlu0 %v408
    %v410 = vpop.xlane.xlu0 %409
    %v411 = vrcp.pop 32.0
    %v412 = vmul.f32 32.0, %v411
    %v413 = vsub.f32 1.0, %v412
    %v414 = vmul.f32 %v411, %v413
    %v415 = vadd.f32 %v411, %v414
    %vm416 = vweird.f32 %v411
    %v417 = vsel %vm416, %v411, %v415
    %v418 = vmul.f32 %v407, %v417
    %v419 = vmul.f32 %v410, %v417
    %v420 = vsub.f32 %v403, %v418
    %v421 = vsub.f32 %v404, %v419
    %v422 = vmul.f32 %v420, %v420
    %v423 = vmul.f32 %v421, %v421
    %v424 = vsel %vm188, %v422, 0.0
    %425 = vadd.xlane.f32.xlu0 %v424
    %v426 = vpop.xlane.xlu0 %425
    %v427 = vsel %vm188, %v423, 0.0
    %428 = vadd.xlane.f32.xlu0 %v427
    %v429 = vpop.xlane.xlu0 %428
    %v430 = vmul.f32 %v426, %v417
    %v431 = vmul.f32 %v429, %v417
    %v432 = vadd.f32 %v430, 1e-05
    %v433 = vadd.f32 %v431, 1e-05
    %v434 = vrsqrt.pop %v432
    %v435 = vmul.f32 %v434, %v432
    %v436 = vmul.f32 %v435, %v434
    %v437 = vmul.f32 0.5, %v436
    %v438 = vsub.f32 1.5, %v437
    %v439 = vmul.f32 %v434, %v438
    %vm440 = vweird.f32 %v432
    %vm441 = vweird.f32 %v434
    %vm442 = vmor %vm440, %vm441
    %v443 = vsel %vm442, %v434, %v439
    %v444 = vrsqrt.pop %v433
    %v445 = vmul.f32 %v444, %v433
    %v446 = vmul.f32 %v445, %v444
    %v447 = vmul.f32 0.5, %v446
    %v448 = vsub.f32 1.5, %v447
    %v449 = vmul.f32 %v444, %v448
    %vm450 = vweird.f32 %v433
    %vm451 = vweird.f32 %v444
    %vm452 = vmor %vm450, %vm451
    %v453 = vsel %vm452, %v444, %v449
    %v454 = vmul.f32 %v420, %v443
    %v455 = vmul.f32 %v421, %v453
    %v456 = vperm.slane %v179, 0
    %v457 = vmul.f32 %v454, %v456
    %v458 = vmul.f32 %v455, %v456
    %v459 = vperm.slane %v180, 0
    %v460 = vadd.f32 %v457, %v459
    %v461 = vadd.f32 %v458, %v459
    %s462 = smul.u32 4, 4
    %s463 = smul.u32 %s462, 16
    %s464 = sshll.u32 %s463, 4
    %465 = dma.done [#allocation4], %s464
    %v466 = vpack.c.bf16 %v461, %v460
    %v467 = vld [vmem:[#allocation2] sm:$0xff]
    %v468 = vld [vmem:[#allocation2 + $0x8] sm:$0xff]
    %v469 = vld [vmem:[#allocation2 + $0x10] sm:$0xff]
    %v470 = vld [vmem:[#allocation2 + $0x18] sm:$0xff]
    %v471 = vld [vmem:[#allocation2 + $0x20] sm:$0xff]
    %v472 = vld [vmem:[#allocation2 + $0x28] sm:$0xff]
    %v473 = vld [vmem:[#allocation2 + $0x30] sm:$0xff]
    %v474 = vld [vmem:[#allocation2 + $0x38] sm:$0xff]
    %v475 = vld [vmem:[#allocation2 + $0x40] sm:$0xff]
    %v476 = vld [vmem:[#allocation2 + $0x48] sm:$0xff]
    %v477 = vld [vmem:[#allocation2 + $0x50] sm:$0xff]
    %v478 = vld [vmem:[#allocation2 + $0x58] sm:$0xff]
    %v479 = vld [vmem:[#allocation2 + $0x60] sm:$0xff]
    %v480 = vld [vmem:[#allocation2 + $0x68] sm:$0xff]
    %v481 = vld [vmem:[#allocation2 + $0x70] sm:$0xff]
    %v482 = vld [vmem:[#allocation2 + $0x78] sm:$0xff]
    %v483 = vld [vmem:[#allocation2 + $0x80] sm:$0xff]
    %v484 = vld [vmem:[#allocation2 + $0x88] sm:$0xff]
    %v485 = vld [vmem:[#allocation2 + $0x90] sm:$0xff]
    %v486 = vld [vmem:[#allocation2 + $0x98] sm:$0xff]
    %v487 = vld [vmem:[#allocation2 + $0xa0] sm:$0xff]
    %v488 = vld [vmem:[#allocation2 + $0xa8] sm:$0xff]
    %v489 = vld [vmem:[#allocation2 + $0xb0] sm:$0xff]
    %v490 = vld [vmem:[#allocation2 + $0xb8] sm:$0xff]
    %v491 = vld [vmem:[#allocation2 + $0xc0] sm:$0xff]
    %v492 = vld [vmem:[#allocation2 + $0xc8] sm:$0xff]
    %v493 = vld [vmem:[#allocation2 + $0xd0] sm:$0xff]
    %v494 = vld [vmem:[#allocation2 + $0xd8] sm:$0xff]
    %v495 = vld [vmem:[#allocation2 + $0xe0] sm:$0xff]
    %v496 = vld [vmem:[#allocation2 + $0xe8] sm:$0xff]
    %v497 = vld [vmem:[#allocation2 + $0xf0] sm:$0xff]
    %v498 = vld [vmem:[#allocation2 + $0xf8] sm:$0xff]
    %v499 = vld [vmem:[%s6] sm:$0xff]
    %v500 = vld [vmem:[%s6 + $0x8] sm:$0xff]
    %v503 = vperm.slane %v499, 0
    %v504 = vperm.slane %v499, 1
    %v505 = vperm.slane %v499, 2
    %v506 = vperm.slane %v499, 3
    %v507 = vperm.slane %v499, 4
    %v508 = vperm.slane %v499, 5
    %v509 = vperm.slane %v499, 6
    %v510 = vperm.slane %v499, 7
    %v511 = vperm.slane %v500, 0
    %v512 = vperm.slane %v500, 1
    %v513 = vperm.slane %v500, 2
    %v514 = vperm.slane %v500, 3
    %v515 = vperm.slane %v500, 4
    %v516 = vperm.slane %v500, 5
    %v517 = vperm.slane %v500, 6
    %v518 = vperm.slane %v500, 7
    %v567 = vunpack.c.l.b16 %v467
    %v568 = vunpack.c.h.b16 %v467
    %v569 = vunpack.c.l.b16 %v468
    %v570 = vunpack.c.h.b16 %v468
    %v571 = vunpack.c.l.b16 %v469
    %v572 = vunpack.c.h.b16 %v469
    %v573 = vunpack.c.l.b16 %v470
    %v574 = vunpack.c.h.b16 %v470
    %v575 = vunpack.c.l.b16 %v471
    %v576 = vunpack.c.h.b16 %v471
    %v577 = vunpack.c.l.b16 %v472
    %v578 = vunpack.c.h.b16 %v472
    %v579 = vunpack.c.l.b16 %v473
    %v580 = vunpack.c.h.b16 %v473
    %v581 = vunpack.c.l.b16 %v474
    %v582 = vunpack.c.h.b16 %v474
    %v583 = vunpack.c.l.b16 %v475
    %v584 = vunpack.c.h.b16 %v475
    %v585 = vunpack.c.l.b16 %v476
    %v586 = vunpack.c.h.b16 %v476
    %v587 = vunpack.c.l.b16 %v477
    %v588 = vunpack.c.h.b16 %v477
    %v589 = vunpack.c.l.b16 %v478
    %v590 = vunpack.c.h.b16 %v478
    %v591 = vunpack.c.l.b16 %v479
    %v592 = vunpack.c.h.b16 %v479
    %v593 = vunpack.c.l.b16 %v480
    %v594 = vunpack.c.h.b16 %v480
    %v595 = vunpack.c.l.b16 %v481
    %v596 = vunpack.c.h.b16 %v481
    %v597 = vunpack.c.l.b16 %v482
    %v598 = vunpack.c.h.b16 %v482
    %v599 = vunpack.c.l.b16 %v483
    %v600 = vunpack.c.h.b16 %v483
    %v601 = vunpack.c.l.b16 %v484
    %v602 = vunpack.c.h.b16 %v484
    %v603 = vunpack.c.l.b16 %v485
    %v604 = vunpack.c.h.b16 %v485
    %v605 = vunpack.c.l.b16 %v486
    %v606 = vunpack.c.h.b16 %v486
    %v607 = vunpack.c.l.b16 %v487
    %v608 = vunpack.c.h.b16 %v487
    %v609 = vunpack.c.l.b16 %v488
    %v610 = vunpack.c.h.b16 %v488
    %v611 = vunpack.c.l.b16 %v489
    %v612 = vunpack.c.h.b16 %v489
    %v613 = vunpack.c.l.b16 %v490
    %v614 = vunpack.c.h.b16 %v490
    %v615 = vunpack.c.l.b16 %v491
    %v616 = vunpack.c.h.b16 %v491
    %v617 = vunpack.c.l.b16 %v492
    %v618 = vunpack.c.h.b16 %v492
    %v619 = vunpack.c.l.b16 %v493
    %v620 = vunpack.c.h.b16 %v493
    %v621 = vunpack.c.l.b16 %v494
    %v622 = vunpack.c.h.b16 %v494
    %v623 = vunpack.c.l.b16 %v495
    %v624 = vunpack.c.h.b16 %v495
    %v625 = vunpack.c.l.b16 %v496
    %v626 = vunpack.c.h.b16 %v496
    %v627 = vunpack.c.l.b16 %v497
    %v628 = vunpack.c.h.b16 %v497
    %v629 = vunpack.c.l.b16 %v498
    %v630 = vunpack.c.h.b16 %v498
    %v631 = vpack.c.b16 %v583, %v567
    %v632 = vpack.c.b16 %v584, %v568
    %v633 = vpack.c.b16 %v585, %v569
    %v634 = vpack.c.b16 %v586, %v570
    %v635 = vpack.c.b16 %v587, %v571
    %v636 = vpack.c.b16 %v588, %v572
    %v637 = vpack.c.b16 %v589, %v573
    %v638 = vpack.c.b16 %v590, %v574
    %v639 = vpack.c.b16 %v591, %v575
    %v640 = vpack.c.b16 %v592, %v576
    %v641 = vpack.c.b16 %v593, %v577
    %v642 = vpack.c.b16 %v594, %v578
    %v643 = vpack.c.b16 %v595, %v579
    %v644 = vpack.c.b16 %v596, %v580
    %v645 = vpack.c.b16 %v597, %v581
    %v646 = vpack.c.b16 %v598, %v582
    %v647 = vpack.c.b16 %v615, %v599
    %v648 = vpack.c.b16 %v616, %v600
    %v649 = vpack.c.b16 %v617, %v601
    %v650 = vpack.c.b16 %v618, %v602
    %v651 = vpack.c.b16 %v619, %v603
    %v652 = vpack.c.b16 %v620, %v604
    %v653 = vpack.c.b16 %v621, %v605
    %v654 = vpack.c.b16 %v622, %v606
    %v655 = vpack.c.b16 %v623, %v607
    %v656 = vpack.c.b16 %v624, %v608
    %v657 = vpack.c.b16 %v625, %v609
    %v658 = vpack.c.b16 %v626, %v610
    %v659 = vpack.c.b16 %v627, %v611
    %v660 = vpack.c.b16 %v628, %v612
    %v661 = vpack.c.b16 %v629, %v613
    %v662 = vpack.c.b16 %v630, %v614
    %v696 = vsel %vm188, %v466, 0
    %698 = vmatpush.bf16.msra.mxu0 0
    %699 = vmatpush.bf16.msra.mxu0 0
    %700 = vmatpush.bf16.msra.mxu0 0
    %701 = vmatpush.bf16.msra.mxu0 0
    %702 = vmatpush.bf16.msra.mxu0 0
    %703 = vmatpush.bf16.msra.mxu0 0
    %704 = vmatpush.bf16.msra.mxu0 %v647
    %705 = vmatpush.bf16.msra.mxu0 %v631
    %706 = vmatmul.bf16.gmra.mxu0 %v696
    %v707 = vpop.f32.mrf.mxu0
    %v708 = vadd.f32 %v503, %v707
    %v709 = vpop.f32.mrf.mxu0
    %v710 = vadd.f32 %v503, %v709
    %711 = vdwg.mxu0
    %712 = vmatpush.bf16.msra.mxu0 0
    %713 = vmatpush.bf16.msra.mxu0 0
    %714 = vmatpush.bf16.msra.mxu0 0
    %715 = vmatpush.bf16.msra.mxu0 0
    %716 = vmatpush.bf16.msra.mxu0 0
    %717 = vmatpush.bf16.msra.mxu0 0
    %718 = vmatpush.bf16.msra.mxu0 %v648
    %719 = vmatpush.bf16.msra.mxu0 %v632
    %720 = vmatmul.bf16.gmra.mxu0 %v696
    %v721 = vpop.f32.mrf.mxu0
    %v722 = vadd.f32 %v504, %v721
    %v723 = vpop.f32.mrf.mxu0
    %v724 = vadd.f32 %v504, %v723
    %725 = vdwg.mxu0
    %726 = vmatpush.bf16.msra.mxu0 0
    %727 = vmatpush.bf16.msra.mxu0 0
    %728 = vmatpush.bf16.msra.mxu0 0
    %729 = vmatpush.bf16.msra.mxu0 0
    %730 = vmatpush.bf16.msra.mxu0 0
    %731 = vmatpush.bf16.msra.mxu0 0
    %732 = vmatpush.bf16.msra.mxu0 %v649
    %733 = vmatpush.bf16.msra.mxu0 %v633
    %734 = vmatmul.bf16.gmra.mxu0 %v696
    %v735 = vpop.f32.mrf.mxu0
    %v736 = vadd.f32 %v505, %v735
    %v737 = vpop.f32.mrf.mxu0
    %v738 = vadd.f32 %v505, %v737
    %739 = vdwg.mxu0
    %740 = vmatpush.bf16.msra.mxu0 0
    %741 = vmatpush.bf16.msra.mxu0 0
    %742 = vmatpush.bf16.msra.mxu0 0
    %743 = vmatpush.bf16.msra.mxu0 0
    %744 = vmatpush.bf16.msra.mxu0 0
    %745 = vmatpush.bf16.msra.mxu0 0
    %746 = vmatpush.bf16.msra.mxu0 %v650
    %747 = vmatpush.bf16.msra.mxu0 %v634
    %748 = vmatmul.bf16.gmra.mxu0 %v696
    %v749 = vpop.f32.mrf.mxu0
    %v750 = vadd.f32 %v506, %v749
    %v751 = vpop.f32.mrf.mxu0
    %v752 = vadd.f32 %v506, %v751
    %753 = vdwg.mxu0
    %754 = vmatpush.bf16.msra.mxu0 0
    %755 = vmatpush.bf16.msra.mxu0 0
    %756 = vmatpush.bf16.msra.mxu0 0
    %757 = vmatpush.bf16.msra.mxu0 0
    %758 = vmatpush.bf16.msra.mxu0 0
    %759 = vmatpush.bf16.msra.mxu0 0
    %760 = vmatpush.bf16.msra.mxu0 %v651
    %761 = vmatpush.bf16.msra.mxu0 %v635
    %762 = vmatmul.bf16.gmra.mxu0 %v696
    %v763 = vpop.f32.mrf.mxu0
    %v764 = vadd.f32 %v507, %v763
    %v765 = vpop.f32.mrf.mxu0
    %v766 = vadd.f32 %v507, %v765
    %767 = vdwg.mxu0
    %768 = vmatpush.bf16.msra.mxu0 0
    %769 = vmatpush.bf16.msra.mxu0 0
    %770 = vmatpush.bf16.msra.mxu0 0
    %771 = vmatpush.bf16.msra.mxu0 0
    %772 = vmatpush.bf16.msra.mxu0 0
    %773 = vmatpush.bf16.msra.mxu0 0
    %774 = vmatpush.bf16.msra.mxu0 %v652
    %775 = vmatpush.bf16.msra.mxu0 %v636
    %776 = vmatmul.bf16.gmra.mxu0 %v696
    %v777 = vpop.f32.mrf.mxu0
    %v778 = vadd.f32 %v508, %v777
    %v779 = vpop.f32.mrf.mxu0
    %v780 = vadd.f32 %v508, %v779
    %781 = vdwg.mxu0
    %782 = vmatpush.bf16.msra.mxu0 0
    %783 = vmatpush.bf16.msra.mxu0 0
    %784 = vmatpush.bf16.msra.mxu0 0
    %785 = vmatpush.bf16.msra.mxu0 0
    %786 = vmatpush.bf16.msra.mxu0 0
    %787 = vmatpush.bf16.msra.mxu0 0
    %788 = vmatpush.bf16.msra.mxu0 %v653
    %789 = vmatpush.bf16.msra.mxu0 %v637
    %790 = vmatmul.bf16.gmra.mxu0 %v696
    %v791 = vpop.f32.mrf.mxu0
    %v792 = vadd.f32 %v509, %v791
    %v793 = vpop.f32.mrf.mxu0
    %v794 = vadd.f32 %v509, %v793
    %795 = vdwg.mxu0
    %796 = vmatpush.bf16.msra.mxu0 0
    %797 = vmatpush.bf16.msra.mxu0 0
    %798 = vmatpush.bf16.msra.mxu0 0
    %799 = vmatpush.bf16.msra.mxu0 0
    %800 = vmatpush.bf16.msra.mxu0 0
    %801 = vmatpush.bf16.msra.mxu0 0
    %802 = vmatpush.bf16.msra.mxu0 %v654
    %803 = vmatpush.bf16.msra.mxu0 %v638
    %804 = vmatmul.bf16.gmra.mxu0 %v696
    %v805 = vpop.f32.mrf.mxu0
    %v806 = vadd.f32 %v510, %v805
    %v807 = vpop.f32.mrf.mxu0
    %v808 = vadd.f32 %v510, %v807
    %809 = vdwg.mxu0
    %810 = vmatpush.bf16.msra.mxu0 0
    %811 = vmatpush.bf16.msra.mxu0 0
    %812 = vmatpush.bf16.msra.mxu0 0
    %813 = vmatpush.bf16.msra.mxu0 0
    %814 = vmatpush.bf16.msra.mxu0 0
    %815 = vmatpush.bf16.msra.mxu0 0
    %816 = vmatpush.bf16.msra.mxu0 %v655
    %817 = vmatpush.bf16.msra.mxu0 %v639
    %818 = vmatmul.bf16.gmra.mxu0 %v696
    %v819 = vpop.f32.mrf.mxu0
    %v820 = vadd.f32 %v511, %v819
    %v821 = vpop.f32.mrf.mxu0
    %v822 = vadd.f32 %v511, %v821
    %823 = vdwg.mxu0
    %824 = vmatpush.bf16.msra.mxu0 0
    %825 = vmatpush.bf16.msra.mxu0 0
    %826 = vmatpush.bf16.msra.mxu0 0
    %827 = vmatpush.bf16.msra.mxu0 0
    %828 = vmatpush.bf16.msra.mxu0 0
    %829 = vmatpush.bf16.msra.mxu0 0
    %830 = vmatpush.bf16.msra.mxu0 %v656
    %831 = vmatpush.bf16.msra.mxu0 %v640
    %832 = vmatmul.bf16.gmra.mxu0 %v696
    %v833 = vpop.f32.mrf.mxu0
    %v834 = vadd.f32 %v512, %v833
    %v835 = vpop.f32.mrf.mxu0
    %v836 = vadd.f32 %v512, %v835
    %837 = vdwg.mxu0
    %838 = vmatpush.bf16.msra.mxu0 0
    %839 = vmatpush.bf16.msra.mxu0 0
    %840 = vmatpush.bf16.msra.mxu0 0
    %841 = vmatpush.bf16.msra.mxu0 0
    %842 = vmatpush.bf16.msra.mxu0 0
    %843 = vmatpush.bf16.msra.mxu0 0
    %844 = vmatpush.bf16.msra.mxu0 %v657
    %845 = vmatpush.bf16.msra.mxu0 %v641
    %846 = vmatmul.bf16.gmra.mxu0 %v696
    %v847 = vpop.f32.mrf.mxu0
    %v848 = vadd.f32 %v513, %v847
    %v849 = vpop.f32.mrf.mxu0
    %v850 = vadd.f32 %v513, %v849
    %851 = vdwg.mxu0
    %852 = vmatpush.bf16.msra.mxu0 0
    %853 = vmatpush.bf16.msra.mxu0 0
    %854 = vmatpush.bf16.msra.mxu0 0
    %855 = vmatpush.bf16.msra.mxu0 0
    %856 = vmatpush.bf16.msra.mxu0 0
    %857 = vmatpush.bf16.msra.mxu0 0
    %858 = vmatpush.bf16.msra.mxu0 %v658
    %859 = vmatpush.bf16.msra.mxu0 %v642
    %860 = vmatmul.bf16.gmra.mxu0 %v696
    %v861 = vpop.f32.mrf.mxu0
    %v862 = vadd.f32 %v514, %v861
    %v863 = vpop.f32.mrf.mxu0
    %v864 = vadd.f32 %v514, %v863
    %865 = vdwg.mxu0
    %866 = vmatpush.bf16.msra.mxu0 0
    %867 = vmatpush.bf16.msra.mxu0 0
    %868 = vmatpush.bf16.msra.mxu0 0
    %869 = vmatpush.bf16.msra.mxu0 0
    %870 = vmatpush.bf16.msra.mxu0 0
    %871 = vmatpush.bf16.msra.mxu0 0
    %872 = vmatpush.bf16.msra.mxu0 %v659
    %873 = vmatpush.bf16.msra.mxu0 %v643
    %874 = vmatmul.bf16.gmra.mxu0 %v696
    %v875 = vpop.f32.mrf.mxu0
    %v876 = vadd.f32 %v515, %v875
    %v877 = vpop.f32.mrf.mxu0
    %v878 = vadd.f32 %v515, %v877
    %879 = vdwg.mxu0
    %880 = vmatpush.bf16.msra.mxu0 0
    %881 = vmatpush.bf16.msra.mxu0 0
    %882 = vmatpush.bf16.msra.mxu0 0
    %883 = vmatpush.bf16.msra.mxu0 0
    %884 = vmatpush.bf16.msra.mxu0 0
    %885 = vmatpush.bf16.msra.mxu0 0
    %886 = vmatpush.bf16.msra.mxu0 %v660
    %887 = vmatpush.bf16.msra.mxu0 %v644
    %888 = vmatmul.bf16.gmra.mxu0 %v696
    %v889 = vpop.f32.mrf.mxu0
    %v890 = vadd.f32 %v516, %v889
    %v891 = vpop.f32.mrf.mxu0
    %v892 = vadd.f32 %v516, %v891
    %893 = vdwg.mxu0
    %894 = vmatpush.bf16.msra.mxu0 0
    %895 = vmatpush.bf16.msra.mxu0 0
    %896 = vmatpush.bf16.msra.mxu0 0
    %897 = vmatpush.bf16.msra.mxu0 0
    %898 = vmatpush.bf16.msra.mxu0 0
    %899 = vmatpush.bf16.msra.mxu0 0
    %900 = vmatpush.bf16.msra.mxu0 %v661
    %901 = vmatpush.bf16.msra.mxu0 %v645
    %902 = vmatmul.bf16.gmra.mxu0 %v696
    %v903 = vpop.f32.mrf.mxu0
    %v904 = vadd.f32 %v517, %v903
    %v905 = vpop.f32.mrf.mxu0
    %v906 = vadd.f32 %v517, %v905
    %907 = vdwg.mxu0
    %908 = vmatpush.bf16.msra.mxu0 0
    %909 = vmatpush.bf16.msra.mxu0 0
    %910 = vmatpush.bf16.msra.mxu0 0
    %911 = vmatpush.bf16.msra.mxu0 0
    %912 = vmatpush.bf16.msra.mxu0 0
    %913 = vmatpush.bf16.msra.mxu0 0
    %914 = vmatpush.bf16.msra.mxu0 %v662
    %915 = vmatpush.bf16.msra.mxu0 %v646
    %916 = vmatmul.bf16.gmra.mxu0 %v696
    %v917 = vpop.f32.mrf.mxu0
    %v918 = vadd.f32 %v518, %v917
    %v919 = vpop.f32.mrf.mxu0
    %v920 = vadd.f32 %v518, %v919
    %921 = vdwg.mxu0
    %v922 = vmax.f32 %v708, 0.0
    %v923 = vmax.f32 %v722, 0.0
    %v924 = vmax.f32 %v736, 0.0
    %v925 = vmax.f32 %v750, 0.0
    %v926 = vmax.f32 %v764, 0.0
    %v927 = vmax.f32 %v778, 0.0
    %v928 = vmax.f32 %v792, 0.0
    %v929 = vmax.f32 %v806, 0.0
    %v930 = vmax.f32 %v820, 0.0
    %v931 = vmax.f32 %v834, 0.0
    %v932 = vmax.f32 %v848, 0.0
    %v933 = vmax.f32 %v862, 0.0
    %v934 = vmax.f32 %v876, 0.0
    %v935 = vmax.f32 %v890, 0.0
    %v936 = vmax.f32 %v904, 0.0
    %v937 = vmax.f32 %v918, 0.0
    %v938 = vmax.f32 %v710, 0.0
    %v939 = vmax.f32 %v724, 0.0
    %v940 = vmax.f32 %v738, 0.0
    %v941 = vmax.f32 %v752, 0.0
    %v942 = vmax.f32 %v766, 0.0
    %v943 = vmax.f32 %v780, 0.0
    %v944 = vmax.f32 %v794, 0.0
    %v945 = vmax.f32 %v808, 0.0
    %v946 = vmax.f32 %v822, 0.0
    %v947 = vmax.f32 %v836, 0.0
    %v948 = vmax.f32 %v850, 0.0
    %v949 = vmax.f32 %v864, 0.0
    %v950 = vmax.f32 %v878, 0.0
    %v951 = vmax.f32 %v892, 0.0
    %v952 = vmax.f32 %v906, 0.0
    %v953 = vmax.f32 %v920, 0.0
    %s954 = sshll.u32 %s463, 4
    %955 = dma.done %s43, %s954
    %v956 = vpack.c.bf16 %v938, %v922
    %v957 = vpack.c.bf16 %v939, %v923
    %v958 = vpack.c.bf16 %v940, %v924
    %v959 = vpack.c.bf16 %v941, %v925
    %v960 = vpack.c.bf16 %v942, %v926
    %v961 = vpack.c.bf16 %v943, %v927
    %v962 = vpack.c.bf16 %v944, %v928
    %v963 = vpack.c.bf16 %v945, %v929
    %v964 = vpack.c.bf16 %v946, %v930
    %v965 = vpack.c.bf16 %v947, %v931
    %v966 = vpack.c.bf16 %v948, %v932
    %v967 = vpack.c.bf16 %v949, %v933
    %v968 = vpack.c.bf16 %v950, %v934
    %v969 = vpack.c.bf16 %v951, %v935
    %v970 = vpack.c.bf16 %v952, %v936
    %v971 = vpack.c.bf16 %v953, %v937
    %v972 = vld [vmem:[#allocation3] sm:$0xff]
    %v973 = vld [vmem:[#allocation3 + $0x8] sm:$0xff]
    %v974 = vld [vmem:[#allocation3 + $0x10] sm:$0xff]
    %v975 = vld [vmem:[#allocation3 + $0x18] sm:$0xff]
    %v976 = vld [vmem:[#allocation3 + $0x20] sm:$0xff]
    %v977 = vld [vmem:[#allocation3 + $0x28] sm:$0xff]
    %v978 = vld [vmem:[#allocation3 + $0x30] sm:$0xff]
    %v979 = vld [vmem:[#allocation3 + $0x38] sm:$0xff]
    %v980 = vld [vmem:[#allocation3 + $0x40] sm:$0xff]
    %v981 = vld [vmem:[#allocation3 + $0x48] sm:$0xff]
    %v982 = vld [vmem:[#allocation3 + $0x50] sm:$0xff]
    %v983 = vld [vmem:[#allocation3 + $0x58] sm:$0xff]
    %v984 = vld [vmem:[#allocation3 + $0x60] sm:$0xff]
    %v985 = vld [vmem:[#allocation3 + $0x68] sm:$0xff]
    %v986 = vld [vmem:[#allocation3 + $0x70] sm:$0xff]
    %v987 = vld [vmem:[#allocation3 + $0x78] sm:$0xff]
    %v988 = vld [vmem:[#allocation3 + $0x80] sm:$0xff]
    %v989 = vld [vmem:[#allocation3 + $0x88] sm:$0xff]
    %v990 = vld [vmem:[#allocation3 + $0x90] sm:$0xff]
    %v991 = vld [vmem:[#allocation3 + $0x98] sm:$0xff]
    %v992 = vld [vmem:[#allocation3 + $0xa0] sm:$0xff]
    %v993 = vld [vmem:[#allocation3 + $0xa8] sm:$0xff]
    %v994 = vld [vmem:[#allocation3 + $0xb0] sm:$0xff]
    %v995 = vld [vmem:[#allocation3 + $0xb8] sm:$0xff]
    %v996 = vld [vmem:[#allocation3 + $0xc0] sm:$0xff]
    %v997 = vld [vmem:[#allocation3 + $0xc8] sm:$0xff]
    %v998 = vld [vmem:[#allocation3 + $0xd0] sm:$0xff]
    %v999 = vld [vmem:[#allocation3 + $0xd8] sm:$0xff]
    %v1000 = vld [vmem:[#allocation3 + $0xe0] sm:$0xff]
    %v1001 = vld [vmem:[#allocation3 + $0xe8] sm:$0xff]
    %v1002 = vld [vmem:[#allocation3 + $0xf0] sm:$0xff]
    %v1003 = vld [vmem:[#allocation3 + $0xf8] sm:$0xff]
    %v1004 = vperm.slane %v181, 0
    %v1037 = vunpack.c.l.b16 %v972
    %v1038 = vunpack.c.h.b16 %v972
    %v1039 = vunpack.c.l.b16 %v973
    %v1040 = vunpack.c.h.b16 %v973
    %v1041 = vunpack.c.l.b16 %v974
    %v1042 = vunpack.c.h.b16 %v974
    %v1043 = vunpack.c.l.b16 %v975
    %v1044 = vunpack.c.h.b16 %v975
    %v1045 = vunpack.c.l.b16 %v976
    %v1046 = vunpack.c.h.b16 %v976
    %v1047 = vunpack.c.l.b16 %v977
    %v1048 = vunpack.c.h.b16 %v977
    %v1049 = vunpack.c.l.b16 %v978
    %v1050 = vunpack.c.h.b16 %v978
    %v1051 = vunpack.c.l.b16 %v979
    %v1052 = vunpack.c.h.b16 %v979
    %v1053 = vunpack.c.l.b16 %v980
    %v1054 = vunpack.c.h.b16 %v980
    %v1055 = vunpack.c.l.b16 %v981
    %v1056 = vunpack.c.h.b16 %v981
    %v1057 = vunpack.c.l.b16 %v982
    %v1058 = vunpack.c.h.b16 %v982
    %v1059 = vunpack.c.l.b16 %v983
    %v1060 = vunpack.c.h.b16 %v983
    %v1061 = vunpack.c.l.b16 %v984
    %v1062 = vunpack.c.h.b16 %v984
    %v1063 = vunpack.c.l.b16 %v985
    %v1064 = vunpack.c.h.b16 %v985
    %v1065 = vunpack.c.l.b16 %v986
    %v1066 = vunpack.c.h.b16 %v986
    %v1067 = vunpack.c.l.b16 %v987
    %v1068 = vunpack.c.h.b16 %v987
    %v1069 = vunpack.c.l.b16 %v988
    %v1070 = vunpack.c.h.b16 %v988
    %v1071 = vunpack.c.l.b16 %v989
    %v1072 = vunpack.c.h.b16 %v989
    %v1073 = vunpack.c.l.b16 %v990
    %v1074 = vunpack.c.h.b16 %v990
    %v1075 = vunpack.c.l.b16 %v991
    %v1076 = vunpack.c.h.b16 %v991
    %v1077 = vunpack.c.l.b16 %v992
    %v1078 = vunpack.c.h.b16 %v992
    %v1079 = vunpack.c.l.b16 %v993
    %v1080 = vunpack.c.h.b16 %v993
    %v1081 = vunpack.c.l.b16 %v994
    %v1082 = vunpack.c.h.b16 %v994
    %v1083 = vunpack.c.l.b16 %v995
    %v1084 = vunpack.c.h.b16 %v995
    %v1085 = vunpack.c.l.b16 %v996
    %v1086 = vunpack.c.h.b16 %v996
    %v1087 = vunpack.c.l.b16 %v997
    %v1088 = vunpack.c.h.b16 %v997
    %v1089 = vunpack.c.l.b16 %v998
    %v1090 = vunpack.c.h.b16 %v998
    %v1091 = vunpack.c.l.b16 %v999
    %v1092 = vunpack.c.h.b16 %v999
    %v1093 = vunpack.c.l.b16 %v1000
    %v1094 = vunpack.c.h.b16 %v1000
    %v1095 = vunpack.c.l.b16 %v1001
    %v1096 = vunpack.c.h.b16 %v1001
    %v1097 = vunpack.c.l.b16 %v1002
    %v1098 = vunpack.c.h.b16 %v1002
    %v1099 = vunpack.c.l.b16 %v1003
    %v1100 = vunpack.c.h.b16 %v1003
    %v1101 = vpack.c.b16 %v1053, %v1037
    %v1102 = vpack.c.b16 %v1054, %v1038
    %v1103 = vpack.c.b16 %v1055, %v1039
    %v1104 = vpack.c.b16 %v1056, %v1040
    %v1105 = vpack.c.b16 %v1057, %v1041
    %v1106 = vpack.c.b16 %v1058, %v1042
    %v1107 = vpack.c.b16 %v1059, %v1043
    %v1108 = vpack.c.b16 %v1060, %v1044
    %v1109 = vpack.c.b16 %v1061, %v1045
    %v1110 = vpack.c.b16 %v1062, %v1046
    %v1111 = vpack.c.b16 %v1063, %v1047
    %v1112 = vpack.c.b16 %v1064, %v1048
    %v1113 = vpack.c.b16 %v1065, %v1049
    %v1114 = vpack.c.b16 %v1066, %v1050
    %v1115 = vpack.c.b16 %v1067, %v1051
    %v1116 = vpack.c.b16 %v1068, %v1052
    %v1117 = vpack.c.b16 %v1085, %v1069
    %v1118 = vpack.c.b16 %v1086, %v1070
    %v1119 = vpack.c.b16 %v1087, %v1071
    %v1120 = vpack.c.b16 %v1088, %v1072
    %v1121 = vpack.c.b16 %v1089, %v1073
    %v1122 = vpack.c.b16 %v1090, %v1074
    %v1123 = vpack.c.b16 %v1091, %v1075
    %v1124 = vpack.c.b16 %v1092, %v1076
    %v1125 = vpack.c.b16 %v1093, %v1077
    %v1126 = vpack.c.b16 %v1094, %v1078
    %v1127 = vpack.c.b16 %v1095, %v1079
    %v1128 = vpack.c.b16 %v1096, %v1080
    %v1129 = vpack.c.b16 %v1097, %v1081
    %v1130 = vpack.c.b16 %v1098, %v1082
    %v1131 = vpack.c.b16 %v1099, %v1083
    %v1132 = vpack.c.b16 %v1100, %v1084
    %1165 = vmatpush.bf16.xpose.msra.mxu0 0
    %1166 = vmatpush.bf16.xpose.msra.mxu0 0
    %1167 = vmatpush.bf16.xpose.msra.mxu0 0
    %1168 = vmatpush.bf16.xpose.msra.mxu0 0
    %1169 = vmatpush.bf16.xpose.msra.mxu0 0
    %1170 = vmatpush.bf16.xpose.msra.mxu0 0
    %1171 = vmatpush.bf16.xpose.msra.mxu0 %v1117
    %1172 = vmatpush.bf16.xpose.msra.mxu0 %v1101
    %1173 = vmatmul.bf16.gmra.mxu0 %v956
    %v1174 = vpop.f32.mrf.mxu0
    %v1175 = vadd.f32 %v1004, %v1174
    %v1176 = vpop.f32.mrf.mxu0
    %v1177 = vadd.f32 %v1004, %v1176
    %1178 = vdwg.mxu0
    %1179 = vmatpush.bf16.xpose.msra.mxu0 0
    %1180 = vmatpush.bf16.xpose.msra.mxu0 0
    %1181 = vmatpush.bf16.xpose.msra.mxu0 0
    %1182 = vmatpush.bf16.xpose.msra.mxu0 0
    %1183 = vmatpush.bf16.xpose.msra.mxu0 0
    %1184 = vmatpush.bf16.xpose.msra.mxu0 0
    %1185 = vmatpush.bf16.xpose.msra.mxu0 %v1118
    %1186 = vmatpush.bf16.xpose.msra.mxu0 %v1102
    %1187 = vmatmul.bf16.gmra.mxu0 %v957
    %v1188 = vpop.f32.mrf.mxu0
    %v1189 = vadd.f32 %v1175, %v1188
    %v1190 = vpop.f32.mrf.mxu0
    %v1191 = vadd.f32 %v1177, %v1190
    %1192 = vdwg.mxu0
    %1193 = vmatpush.bf16.xpose.msra.mxu0 0
    %1194 = vmatpush.bf16.xpose.msra.mxu0 0
    %1195 = vmatpush.bf16.xpose.msra.mxu0 0
    %1196 = vmatpush.bf16.xpose.msra.mxu0 0
    %1197 = vmatpush.bf16.xpose.msra.mxu0 0
    %1198 = vmatpush.bf16.xpose.msra.mxu0 0
    %1199 = vmatpush.bf16.xpose.msra.mxu0 %v1119
    %1200 = vmatpush.bf16.xpose.msra.mxu0 %v1103
    %1201 = vmatmul.bf16.gmra.mxu0 %v958
    %v1202 = vpop.f32.mrf.mxu0
    %v1203 = vadd.f32 %v1189, %v1202
    %v1204 = vpop.f32.mrf.mxu0
    %v1205 = vadd.f32 %v1191, %v1204
    %1206 = vdwg.mxu0
    %1207 = vmatpush.bf16.xpose.msra.mxu0 0
    %1208 = vmatpush.bf16.xpose.msra.mxu0 0
    %1209 = vmatpush.bf16.xpose.msra.mxu0 0
    %1210 = vmatpush.bf16.xpose.msra.mxu0 0
    %1211 = vmatpush.bf16.xpose.msra.mxu0 0
    %1212 = vmatpush.bf16.xpose.msra.mxu0 0
    %1213 = vmatpush.bf16.xpose.msra.mxu0 %v1120
    %1214 = vmatpush.bf16.xpose.msra.mxu0 %v1104
    %1215 = vmatmul.bf16.gmra.mxu0 %v959
    %v1216 = vpop.f32.mrf.mxu0
    %v1217 = vadd.f32 %v1203, %v1216
    %v1218 = vpop.f32.mrf.mxu0
    %v1219 = vadd.f32 %v1205, %v1218
    %1220 = vdwg.mxu0
    %1221 = vmatpush.bf16.xpose.msra.mxu0 0
    %1222 = vmatpush.bf16.xpose.msra.mxu0 0
    %1223 = vmatpush.bf16.xpose.msra.mxu0 0
    %1224 = vmatpush.bf16.xpose.msra.mxu0 0
    %1225 = vmatpush.bf16.xpose.msra.mxu0 0
    %1226 = vmatpush.bf16.xpose.msra.mxu0 0
    %1227 = vmatpush.bf16.xpose.msra.mxu0 %v1121
    %1228 = vmatpush.bf16.xpose.msra.mxu0 %v1105
    %1229 = vmatmul.bf16.gmra.mxu0 %v960
    %v1230 = vpop.f32.mrf.mxu0
    %v1231 = vadd.f32 %v1217, %v1230
    %v1232 = vpop.f32.mrf.mxu0
    %v1233 = vadd.f32 %v1219, %v1232
    %1234 = vdwg.mxu0
    %1235 = vmatpush.bf16.xpose.msra.mxu0 0
    %1236 = vmatpush.bf16.xpose.msra.mxu0 0
    %1237 = vmatpush.bf16.xpose.msra.mxu0 0
    %1238 = vmatpush.bf16.xpose.msra.mxu0 0
    %1239 = vmatpush.bf16.xpose.msra.mxu0 0
    %1240 = vmatpush.bf16.xpose.msra.mxu0 0
    %1241 = vmatpush.bf16.xpose.msra.mxu0 %v1122
    %1242 = vmatpush.bf16.xpose.msra.mxu0 %v1106
    %1243 = vmatmul.bf16.gmra.mxu0 %v961
    %v1244 = vpop.f32.mrf.mxu0
    %v1245 = vadd.f32 %v1231, %v1244
    %v1246 = vpop.f32.mrf.mxu0
    %v1247 = vadd.f32 %v1233, %v1246
    %1248 = vdwg.mxu0
    %1249 = vmatpush.bf16.xpose.msra.mxu0 0
    %1250 = vmatpush.bf16.xpose.msra.mxu0 0
    %1251 = vmatpush.bf16.xpose.msra.mxu0 0
    %1252 = vmatpush.bf16.xpose.msra.mxu0 0
    %1253 = vmatpush.bf16.xpose.msra.mxu0 0
    %1254 = vmatpush.bf16.xpose.msra.mxu0 0
    %1255 = vmatpush.bf16.xpose.msra.mxu0 %v1123
    %1256 = vmatpush.bf16.xpose.msra.mxu0 %v1107
    %1257 = vmatmul.bf16.gmra.mxu0 %v962
    %v1258 = vpop.f32.mrf.mxu0
    %v1259 = vadd.f32 %v1245, %v1258
    %v1260 = vpop.f32.mrf.mxu0
    %v1261 = vadd.f32 %v1247, %v1260
    %1262 = vdwg.mxu0
    %1263 = vmatpush.bf16.xpose.msra.mxu0 0
    %1264 = vmatpush.bf16.xpose.msra.mxu0 0
    %1265 = vmatpush.bf16.xpose.msra.mxu0 0
    %1266 = vmatpush.bf16.xpose.msra.mxu0 0
    %1267 = vmatpush.bf16.xpose.msra.mxu0 0
    %1268 = vmatpush.bf16.xpose.msra.mxu0 0
    %1269 = vmatpush.bf16.xpose.msra.mxu0 %v1124
    %1270 = vmatpush.bf16.xpose.msra.mxu0 %v1108
    %1271 = vmatmul.bf16.gmra.mxu0 %v963
    %v1272 = vpop.f32.mrf.mxu0
    %v1273 = vadd.f32 %v1259, %v1272
    %v1274 = vpop.f32.mrf.mxu0
    %v1275 = vadd.f32 %v1261, %v1274
    %1276 = vdwg.mxu0
    %1277 = vmatpush.bf16.xpose.msra.mxu0 0
    %1278 = vmatpush.bf16.xpose.msra.mxu0 0
    %1279 = vmatpush.bf16.xpose.msra.mxu0 0
    %1280 = vmatpush.bf16.xpose.msra.mxu0 0
    %1281 = vmatpush.bf16.xpose.msra.mxu0 0
    %1282 = vmatpush.bf16.xpose.msra.mxu0 0
    %1283 = vmatpush.bf16.xpose.msra.mxu0 %v1125
    %1284 = vmatpush.bf16.xpose.msra.mxu0 %v1109
    %1285 = vmatmul.bf16.gmra.mxu0 %v964
    %v1286 = vpop.f32.mrf.mxu0
    %v1287 = vadd.f32 %v1273, %v1286
    %v1288 = vpop.f32.mrf.mxu0
    %v1289 = vadd.f32 %v1275, %v1288
    %1290 = vdwg.mxu0
    %1291 = vmatpush.bf16.xpose.msra.mxu0 0
    %1292 = vmatpush.bf16.xpose.msra.mxu0 0
    %1293 = vmatpush.bf16.xpose.msra.mxu0 0
    %1294 = vmatpush.bf16.xpose.msra.mxu0 0
    %1295 = vmatpush.bf16.xpose.msra.mxu0 0
    %1296 = vmatpush.bf16.xpose.msra.mxu0 0
    %1297 = vmatpush.bf16.xpose.msra.mxu0 %v1126
    %1298 = vmatpush.bf16.xpose.msra.mxu0 %v1110
    %1299 = vmatmul.bf16.gmra.mxu0 %v965
    %v1300 = vpop.f32.mrf.mxu0
    %v1301 = vadd.f32 %v1287, %v1300
    %v1302 = vpop.f32.mrf.mxu0
    %v1303 = vadd.f32 %v1289, %v1302
    %1304 = vdwg.mxu0
    %1305 = vmatpush.bf16.xpose.msra.mxu0 0
    %1306 = vmatpush.bf16.xpose.msra.mxu0 0
    %1307 = vmatpush.bf16.xpose.msra.mxu0 0
    %1308 = vmatpush.bf16.xpose.msra.mxu0 0
    %1309 = vmatpush.bf16.xpose.msra.mxu0 0
    %1310 = vmatpush.bf16.xpose.msra.mxu0 0
    %1311 = vmatpush.bf16.xpose.msra.mxu0 %v1127
    %1312 = vmatpush.bf16.xpose.msra.mxu0 %v1111
    %1313 = vmatmul.bf16.gmra.mxu0 %v966
    %v1314 = vpop.f32.mrf.mxu0
    %v1315 = vadd.f32 %v1301, %v1314
    %v1316 = vpop.f32.mrf.mxu0
    %v1317 = vadd.f32 %v1303, %v1316
    %1318 = vdwg.mxu0
    %1319 = vmatpush.bf16.xpose.msra.mxu0 0
    %1320 = vmatpush.bf16.xpose.msra.mxu0 0
    %1321 = vmatpush.bf16.xpose.msra.mxu0 0
    %1322 = vmatpush.bf16.xpose.msra.mxu0 0
    %1323 = vmatpush.bf16.xpose.msra.mxu0 0
    %1324 = vmatpush.bf16.xpose.msra.mxu0 0
    %1325 = vmatpush.bf16.xpose.msra.mxu0 %v1128
    %1326 = vmatpush.bf16.xpose.msra.mxu0 %v1112
    %1327 = vmatmul.bf16.gmra.mxu0 %v967
    %v1328 = vpop.f32.mrf.mxu0
    %v1329 = vadd.f32 %v1315, %v1328
    %v1330 = vpop.f32.mrf.mxu0
    %v1331 = vadd.f32 %v1317, %v1330
    %1332 = vdwg.mxu0
    %1333 = vmatpush.bf16.xpose.msra.mxu0 0
    %1334 = vmatpush.bf16.xpose.msra.mxu0 0
    %1335 = vmatpush.bf16.xpose.msra.mxu0 0
    %1336 = vmatpush.bf16.xpose.msra.mxu0 0
    %1337 = vmatpush.bf16.xpose.msra.mxu0 0
    %1338 = vmatpush.bf16.xpose.msra.mxu0 0
    %1339 = vmatpush.bf16.xpose.msra.mxu0 %v1129
    %1340 = vmatpush.bf16.xpose.msra.mxu0 %v1113
    %1341 = vmatmul.bf16.gmra.mxu0 %v968
    %v1342 = vpop.f32.mrf.mxu0
    %v1343 = vadd.f32 %v1329, %v1342
    %v1344 = vpop.f32.mrf.mxu0
    %v1345 = vadd.f32 %v1331, %v1344
    %1346 = vdwg.mxu0
    %1347 = vmatpush.bf16.xpose.msra.mxu0 0
    %1348 = vmatpush.bf16.xpose.msra.mxu0 0
    %1349 = vmatpush.bf16.xpose.msra.mxu0 0
    %1350 = vmatpush.bf16.xpose.msra.mxu0 0
    %1351 = vmatpush.bf16.xpose.msra.mxu0 0
    %1352 = vmatpush.bf16.xpose.msra.mxu0 0
    %1353 = vmatpush.bf16.xpose.msra.mxu0 %v1130
    %1354 = vmatpush.bf16.xpose.msra.mxu0 %v1114
    %1355 = vmatmul.bf16.gmra.mxu0 %v969
    %v1356 = vpop.f32.mrf.mxu0
    %v1357 = vadd.f32 %v1343, %v1356
    %v1358 = vpop.f32.mrf.mxu0
    %v1359 = vadd.f32 %v1345, %v1358
    %1360 = vdwg.mxu0
    %1361 = vmatpush.bf16.xpose.msra.mxu0 0
    %1362 = vmatpush.bf16.xpose.msra.mxu0 0
    %1363 = vmatpush.bf16.xpose.msra.mxu0 0
    %1364 = vmatpush.bf16.xpose.msra.mxu0 0
    %1365 = vmatpush.bf16.xpose.msra.mxu0 0
    %1366 = vmatpush.bf16.xpose.msra.mxu0 0
    %1367 = vmatpush.bf16.xpose.msra.mxu0 %v1131
    %1368 = vmatpush.bf16.xpose.msra.mxu0 %v1115
    %1369 = vmatmul.bf16.gmra.mxu0 %v970
    %v1370 = vpop.f32.mrf.mxu0
    %v1371 = vadd.f32 %v1357, %v1370
    %v1372 = vpop.f32.mrf.mxu0
    %v1373 = vadd.f32 %v1359, %v1372
    %1374 = vdwg.mxu0
    %1375 = vmatpush.bf16.xpose.msra.mxu0 0
    %1376 = vmatpush.bf16.xpose.msra.mxu0 0
    %1377 = vmatpush.bf16.xpose.msra.mxu0 0
    %1378 = vmatpush.bf16.xpose.msra.mxu0 0
    %1379 = vmatpush.bf16.xpose.msra.mxu0 0
    %1380 = vmatpush.bf16.xpose.msra.mxu0 0
    %1381 = vmatpush.bf16.xpose.msra.mxu0 %v1132
    %1382 = vmatpush.bf16.xpose.msra.mxu0 %v1116
    %1383 = vmatmul.bf16.gmra.mxu0 %v971
    %v1384 = vpop.f32.mrf.mxu0
    %v1385 = vadd.f32 %v1371, %v1384
    %v1386 = vpop.f32.mrf.mxu0
    %v1387 = vadd.f32 %v1373, %v1386
    %1388 = vdwg.mxu0
    %v1389 = vadd.f32 %v460, %v1385
    %v1390 = vadd.f32 %v461, %v1387
    %v1391 = vsel %vm188, %v1389, 0.0
    %1392 = vadd.xlane.f32.xlu0 %v1391
    %v1393 = vpop.xlane.xlu0 %1392
    %v1394 = vsel %vm188, %v1390, 0.0
    %1395 = vadd.xlane.f32.xlu0 %v1394
    %v1396 = vpop.xlane.xlu0 %1395
    %v1397 = vmul.f32 %v1393, %v417
    %v1398 = vmul.f32 %v1396, %v417
    %v1399 = vsub.f32 %v1389, %v1397
    %v1400 = vsub.f32 %v1390, %v1398
    %v1401 = vmul.f32 %v1399, %v1399
    %v1402 = vmul.f32 %v1400, %v1400
    %v1403 = vsel %vm188, %v1401, 0.0
    %1404 = vadd.xlane.f32.xlu0 %v1403
    %v1405 = vpop.xlane.xlu0 %1404
    %v1406 = vsel %vm188, %v1402, 0.0
    %1407 = vadd.xlane.f32.xlu0 %v1406
    %v1408 = vpop.xlane.xlu0 %1407
    %v1409 = vmul.f32 %v1405, %v417
    %v1410 = vmul.f32 %v1408, %v417
    %v1411 = vadd.f32 %v1409, 1e-05
    %v1412 = vadd.f32 %v1410, 1e-05
    %v1413 = vrsqrt.pop %v1411
    %v1414 = vmul.f32 %v1413, %v1411
    %v1415 = vmul.f32 %v1414, %v1413
    %v1416 = vmul.f32 0.5, %v1415
    %v1417 = vsub.f32 1.5, %v1416
    %v1418 = vmul.f32 %v1413, %v1417
    %vm1419 = vweird.f32 %v1411
    %vm1420 = vweird.f32 %v1413
    %vm1421 = vmor %vm1419, %vm1420
    %v1422 = vsel %vm1421, %v1413, %v1418
    %v1423 = vrsqrt.pop %v1412
    %v1424 = vmul.f32 %v1423, %v1412
    %v1425 = vmul.f32 %v1424, %v1423
    %v1426 = vmul.f32 0.5, %v1425
    %v1427 = vsub.f32 1.5, %v1426
    %v1428 = vmul.f32 %v1423, %v1427
    %vm1429 = vweird.f32 %v1412
    %vm1430 = vweird.f32 %v1423
    %vm1431 = vmor %vm1429, %vm1430
    %v1432 = vsel %vm1431, %v1423, %v1428
    %v1433 = vmul.f32 %v1399, %v1422
    %v1434 = vmul.f32 %v1400, %v1432
    %v1435 = vperm.slane %v182, 0
    %v1436 = vmul.f32 %v1433, %v1435
    %v1437 = vmul.f32 %v1434, %v1435
    %v1438 = vperm.slane %v183, 0
    %v1439 = vadd.f32 %v1436, %v1438
    %v1440 = vadd.f32 %v1437, %v1438
    %v1441 = vld [vmem:[%s2 + $0x30] sm:$0x1]
    %v1442 = vld [vmem:[%s2 + $0x31] sm:$0x1]
    %v1443 = vld [vmem:[%s2 + $0x32] sm:$0x1]
    %v1444 = vld [vmem:[%s2 + $0x33] sm:$0x1]
    %v1445 = vld [vmem:[%s2 + $0x34] sm:$0x1]
    %v1446 = vld [vmem:[%s2 + $0x35] sm:$0x1]
    %v1447 = vld [vmem:[%s2 + $0x36] sm:$0x1]
    %v1448 = vld [vmem:[%s2 + $0x37] sm:$0x1]
    %v1449 = vld [vmem:[%s2 + $0x38] sm:$0x1]
    %s1450 = scalar_lea.vmem %s4, 32
    %v1451 = vld [vmem:[%s1450] sm:$0xff]
    %v1452 = vld [vmem:[%s1450 + $0x8] sm:$0xff]
    %v1453 = vld [vmem:[%s1450 + $0x10] sm:$0xff]
    %v1454 = vld [vmem:[%s1450 + $0x18] sm:$0xff]
    %v1456 = vsel %vm188, %v1439, 0
    %v1459 = vsel %vm188, %v1440, 0
    %1461 = vmatpush.msra.mxu0 0.0
    %1462 = vmatpush.msra.mxu0 0.0
    %1463 = vmatpush.msra.mxu0 0.0
    %1464 = vmatpush.msra.mxu0 0.0
    %1465 = vmatpush.msra.mxu0 0.0
    %1466 = vmatpush.msra.mxu0 0.0
    %1467 = vmatpush.msra.mxu0 0.0
    %1468 = vmatpush.msra.mxu0 0.0
    %1469 = vmatpush.msra.mxu0 0.0
    %1470 = vmatpush.msra.mxu0 0.0
    %1471 = vmatpush.msra.mxu0 0.0
    %1472 = vmatpush.msra.mxu0 0.0
    %1473 = vmatpush.msra.mxu0 %v1454
    %1474 = vmatpush.msra.mxu0 %v1453
    %1475 = vmatpush.msra.mxu0 %v1452
    %1476 = vmatpush.msra.mxu0 %v1451
    %1477 = vmatmul.f32.gmra.mxu0 %v1456
    %v1478 = vpop.f32.mrf.mxu0
    %v1479 = vadd.f32 0.0, %v1478
    %1480 = vmatmul.f32.gmra.mxu0 %v1459
    %v1481 = vpop.f32.mrf.mxu0
    %v1482 = vadd.f32 0.0, %v1481
    %1483 = vdwg.mxu0
    %v1484 = vperm.slane %v1441, 0
    %v1485 = vadd.f32 %v1479, %v1484
    %v1486 = vadd.f32 %v1482, %v1484
    %v1487 = vperm.slane %v1442, 0
    %1489 = vrot.lane.b32.xlu0 %v1487, 32
    %v1490 = vpop.permute.xlu0 %1489
    %v1492 = vadd.f32 %v1479, %v1490
    %v1493 = vadd.f32 %v1482, %v1490
    %v1494 = vperm.slane %v1443, 0
    %1496 = vrot.lane.b32.xlu0 %v1494, 64
    %v1497 = vpop.permute.xlu0 %1496
    %v1499 = vadd.f32 %v1479, %v1497
    %v1500 = vadd.f32 %v1482, %v1497
    %1503 = vrot.lane.b32.xlu0 %v1492, 96
    %v1504 = vpop.permute.xlu0 %1503
    %1505 = vrot.lane.b32.xlu0 %v1493, 96
    %v1506 = vpop.permute.xlu0 %1505
    %1511 = vrot.lane.b32.xlu0 %v1499, 64
    %v1512 = vpop.permute.xlu0 %1511
    %1513 = vrot.lane.b32.xlu0 %v1500, 64
    %v1514 = vpop.permute.xlu0 %1513
    %v1517 = vmul.f32 %v1485, %v1504
    %v1518 = vmul.f32 %v1486, %v1506
    %v1520 = vsel %vm188, %v1517, 0
    %v1523 = vsel %vm188, %v1518, 0
    %1525 = vmatpush.msra.mxu0 0.0
    %1526 = vmatpush.msra.mxu0 0.0
    %1527 = vmatpush.msra.mxu0 0.0
    %1528 = vmatpush.msra.mxu0 0.0
    %1529 = vmatpush.msra.mxu0 0.0
    %1530 = vmatpush.msra.mxu0 0.0
    %1531 = vmatpush.msra.mxu0 0.0
    %1532 = vmatpush.msra.mxu0 0.0
    %1533 = vmatpush.msra.mxu0 0.0
    %1534 = vmatpush.msra.mxu0 0.0
    %1535 = vmatpush.msra.mxu0 0.0
    %1536 = vmatpush.msra.mxu0 0.0
    %1537 = vmatpush.msra.mxu0 %v174
    %1538 = vmatpush.msra.mxu0 %v173
    %1539 = vmatpush.msra.mxu0 %v172
    %1540 = vmatpush.msra.mxu0 %v171
    %1541 = vmatmul.f32.gmra.mxu0 %v1520
    %v1542 = vpop.f32.mrf.mxu0
    %v1543 = vadd.f32 0.0, %v1542
    %1544 = vmatmul.f32.gmra.mxu0 %v1523
    %v1545 = vpop.f32.mrf.mxu0
    %v1546 = vadd.f32 0.0, %v1545
    %1547 = vdwg.mxu0
    %v1548 = vmul.f32 %v1543, 0.35355338
    %v1549 = vmul.f32 %v1546, 0.35355338
    %v1550 = vmul.f32 %v1485, %v1506
    %v1551 = vmul.f32 %v1486, %v1504
    %v1553 = vsel %vm188, %v1550, 0
    %v1556 = vsel %vm188, %v1551, 0
    %1558 = vmatpush.msra.mxu0 0.0
    %1559 = vmatpush.msra.mxu0 0.0
    %1560 = vmatpush.msra.mxu0 0.0
    %1561 = vmatpush.msra.mxu0 0.0
    %1562 = vmatpush.msra.mxu0 0.0
    %1563 = vmatpush.msra.mxu0 0.0
    %1564 = vmatpush.msra.mxu0 0.0
    %1565 = vmatpush.msra.mxu0 0.0
    %1566 = vmatpush.msra.mxu0 0.0
    %1567 = vmatpush.msra.mxu0 0.0
    %1568 = vmatpush.msra.mxu0 0.0
    %1569 = vmatpush.msra.mxu0 0.0
    %1570 = vmatpush.msra.mxu0 %v174
    %1571 = vmatpush.msra.mxu0 %v173
    %1572 = vmatpush.msra.mxu0 %v172
    %1573 = vmatpush.msra.mxu0 %v171
    %1574 = vmatmul.f32.gmra.mxu0 %v1553
    %v1575 = vpop.f32.mrf.mxu0
    %v1576 = vadd.f32 0.0, %v1575
    %1577 = vmatmul.f32.gmra.mxu0 %v1556
    %v1578 = vpop.f32.mrf.mxu0
    %v1579 = vadd.f32 0.0, %v1578
    %1580 = vdwg.mxu0
    %v1581 = vmul.f32 %v1576, 0.35355338
    %v1582 = vmul.f32 %v1579, 0.35355338
    %v1583 = vmax.f32 %v1548, %v1581
    %v1584 = vmax.f32 %v1549, %v1582
    %v1585 = vsub.f32 %v1548, %v1583
    %v1586 = vsub.f32 %v1549, %v1584
    %v1587 = vmul.f32 %v1585, 1.442695
    %v1588 = vpow.pop %v1587
    %v1589 = vmul.f32 %v1586, 1.442695
    %v1590 = vpow.pop %v1589
    %v1591 = vsub.f32 %v1581, %v1583
    %v1592 = vsub.f32 %v1582, %v1584
    %v1593 = vmul.f32 %v1591, 1.442695
    %v1594 = vpow.pop %v1593
    %v1595 = vmul.f32 %v1592, 1.442695
    %v1596 = vpow.pop %v1595
    %v1597 = vmul.f32 %v1588, %v1512
    %v1598 = vmul.f32 %v1590, %v1514
    %v1599 = vmul.f32 %v1594, %v1514
    %v1600 = vmul.f32 %v1596, %v1512
    %v1601 = vadd.f32 %v1597, %v1599
    %v1602 = vadd.f32 %v1598, %v1600
    %v1603 = vadd.f32 %v1588, %v1594
    %v1604 = vadd.f32 %v1590, %v1596
    %v1605 = vrcp.pop %v1603
    %v1606 = vmul.f32 %v1603, %v1605
    %v1607 = vsub.f32 1.0, %v1606
    %v1608 = vmul.f32 %v1605, %v1607
    %v1609 = vadd.f32 %v1605, %v1608
    %vm1610 = vweird.f32 %v1603
    %vm1611 = vweird.f32 %v1605
    %vm1612 = vmor %vm1610, %vm1611
    %v1613 = vsel %vm1612, %v1605, %v1609
    %v1614 = vand.u32 2147483647, %v1603
    %vm1615 = vcmp.eq.f32.partialorder %v1614, 8.507059e+37
    %v1616 = vand.u32 %v1603, 2147483648
    %v1617 = vor.u32 1.1754944e-38, %v1616
    %v1618 = vsel %vm1615, %v1617, %v1613
    %v1619 = vmul.f32 %v1601, %v1618
    %v1620 = vrcp.pop %v1604
    %v1621 = vmul.f32 %v1604, %v1620
    %v1622 = vsub.f32 1.0, %v1621
    %v1623 = vmul.f32 %v1620, %v1622
    %v1624 = vadd.f32 %v1620, %v1623
    %vm1625 = vweird.f32 %v1604
    %vm1626 = vweird.f32 %v1620
    %vm1627 = vmor %vm1625, %vm1626
    %v1628 = vsel %vm1627, %v1620, %v1624
    %v1629 = vand.u32 2147483647, %v1604
    %vm1630 = vcmp.eq.f32.partialorder %v1629, 8.507059e+37
    %v1631 = vand.u32 %v1604, 2147483648
    %v1632 = vor.u32 1.1754944e-38, %v1631
    %v1633 = vsel %vm1630, %v1632, %v1628
    %v1634 = vmul.f32 %v1602, %v1633
    %s1635 = scalar_lea.vmem %s5, 32
    %v1636 = vld [vmem:[%s1635] sm:$0xff]
    %v1637 = vld [vmem:[%s1635 + $0x8] sm:$0xff]
    %v1638 = vld [vmem:[%s1635 + $0x10] sm:$0xff]
    %v1639 = vld [vmem:[%s1635 + $0x18] sm:$0xff]
    %v1640 = vperm.slane %v1444, 0
    %v1642 = vsel %vm188, %v1619, 0
    %v1645 = vsel %vm188, %v1634, 0
    %1647 = vmatpush.msra.mxu0 0.0
    %1648 = vmatpush.msra.mxu0 0.0
    %1649 = vmatpush.msra.mxu0 0.0
    %1650 = vmatpush.msra.mxu0 0.0
    %1651 = vmatpush.msra.mxu0 0.0
    %1652 = vmatpush.msra.mxu0 0.0
    %1653 = vmatpush.msra.mxu0 0.0
    %1654 = vmatpush.msra.mxu0 0.0
    %1655 = vmatpush.msra.mxu0 0.0
    %1656 = vmatpush.msra.mxu0 0.0
    %1657 = vmatpush.msra.mxu0 0.0
    %1658 = vmatpush.msra.mxu0 0.0
    %1659 = vmatpush.msra.mxu0 %v1639
    %1660 = vmatpush.msra.mxu0 %v1638
    %1661 = vmatpush.msra.mxu0 %v1637
    %1662 = vmatpush.msra.mxu0 %v1636
    %1663 = vmatmul.f32.gmra.mxu0 %v1642
    %v1664 = vpop.f32.mrf.mxu0
    %v1665 = vadd.f32 %v1640, %v1664
    %1666 = vmatmul.f32.gmra.mxu0 %v1645
    %v1667 = vpop.f32.mrf.mxu0
    %v1668 = vadd.f32 %v1640, %v1667
    %1669 = vdwg.mxu0
    %v1670 = vadd.f32 %v1439, %v1665
    %v1671 = vadd.f32 %v1440, %v1668
    %v1672 = vsel %vm188, %v1670, 0.0
    %1673 = vadd.xlane.f32.xlu0 %v1672
    %v1674 = vpop.xlane.xlu0 %1673
    %v1675 = vsel %vm188, %v1671, 0.0
    %1676 = vadd.xlane.f32.xlu0 %v1675
    %v1677 = vpop.xlane.xlu0 %1676
    %v1678 = vmul.f32 %v1674, %v417
    %v1679 = vmul.f32 %v1677, %v417
    %v1680 = vsub.f32 %v1670, %v1678
    %v1681 = vsub.f32 %v1671, %v1679
    %v1682 = vmul.f32 %v1680, %v1680
    %v1683 = vmul.f32 %v1681, %v1681
    %v1684 = vsel %vm188, %v1682, 0.0
    %1685 = vadd.xlane.f32.xlu0 %v1684
    %v1686 = vpop.xlane.xlu0 %1685
    %v1687 = vsel %vm188, %v1683, 0.0
    %1688 = vadd.xlane.f32.xlu0 %v1687
    %v1689 = vpop.xlane.xlu0 %1688
    %v1690 = vmul.f32 %v1686, %v417
    %v1691 = vmul.f32 %v1689, %v417
    %v1692 = vadd.f32 %v1690, 1e-05
    %v1693 = vadd.f32 %v1691, 1e-05
    %v1694 = vrsqrt.pop %v1692
    %v1695 = vmul.f32 %v1694, %v1692
    %v1696 = vmul.f32 %v1695, %v1694
    %v1697 = vmul.f32 0.5, %v1696
    %v1698 = vsub.f32 1.5, %v1697
    %v1699 = vmul.f32 %v1694, %v1698
    %vm1700 = vweird.f32 %v1692
    %vm1701 = vweird.f32 %v1694
    %vm1702 = vmor %vm1700, %vm1701
    %v1703 = vsel %vm1702, %v1694, %v1699
    %v1704 = vrsqrt.pop %v1693
    %v1705 = vmul.f32 %v1704, %v1693
    %v1706 = vmul.f32 %v1705, %v1704
    %v1707 = vmul.f32 0.5, %v1706
    %v1708 = vsub.f32 1.5, %v1707
    %v1709 = vmul.f32 %v1704, %v1708
    %vm1710 = vweird.f32 %v1693
    %vm1711 = vweird.f32 %v1704
    %vm1712 = vmor %vm1710, %vm1711
    %v1713 = vsel %vm1712, %v1704, %v1709
    %v1714 = vmul.f32 %v1680, %v1703
    %v1715 = vmul.f32 %v1681, %v1713
    %v1716 = vperm.slane %v1445, 0
    %v1717 = vmul.f32 %v1714, %v1716
    %v1718 = vmul.f32 %v1715, %v1716
    %v1719 = vperm.slane %v1446, 0
    %v1720 = vadd.f32 %v1717, %v1719
    %v1721 = vadd.f32 %v1718, %v1719
    %s1722 = sshll.u32 %s463, 4
    %1723 = dma.done %s59, %s1722
    %v1724 = vpack.c.bf16 %v1721, %v1720
    %v1725 = vld [vmem:[%s58] sm:$0xff]
    %v1726 = vld [vmem:[%s58 + $0x8] sm:$0xff]
    %v1727 = vld [vmem:[%s58 + $0x10] sm:$0xff]
    %v1728 = vld [vmem:[%s58 + $0x18] sm:$0xff]
    %v1729 = vld [vmem:[%s58 + $0x20] sm:$0xff]
    %v1730 = vld [vmem:[%s58 + $0x28] sm:$0xff]
    %v1731 = vld [vmem:[%s58 + $0x30] sm:$0xff]
    %v1732 = vld [vmem:[%s58 + $0x38] sm:$0xff]
    %v1733 = vld [vmem:[%s58 + $0x40] sm:$0xff]
    %v1734 = vld [vmem:[%s58 + $0x48] sm:$0xff]
    %v1735 = vld [vmem:[%s58 + $0x50] sm:$0xff]
    %v1736 = vld [vmem:[%s58 + $0x58] sm:$0xff]
    %v1737 = vld [vmem:[%s58 + $0x60] sm:$0xff]
    %v1738 = vld [vmem:[%s58 + $0x68] sm:$0xff]
    %v1739 = vld [vmem:[%s58 + $0x70] sm:$0xff]
    %v1740 = vld [vmem:[%s58 + $0x78] sm:$0xff]
    %v1741 = vld [vmem:[%s58 + $0x80] sm:$0xff]
    %v1742 = vld [vmem:[%s58 + $0x88] sm:$0xff]
    %v1743 = vld [vmem:[%s58 + $0x90] sm:$0xff]
    %v1744 = vld [vmem:[%s58 + $0x98] sm:$0xff]
    %v1745 = vld [vmem:[%s58 + $0xa0] sm:$0xff]
    %v1746 = vld [vmem:[%s58 + $0xa8] sm:$0xff]
    %v1747 = vld [vmem:[%s58 + $0xb0] sm:$0xff]
    %v1748 = vld [vmem:[%s58 + $0xb8] sm:$0xff]
    %v1749 = vld [vmem:[%s58 + $0xc0] sm:$0xff]
    %v1750 = vld [vmem:[%s58 + $0xc8] sm:$0xff]
    %v1751 = vld [vmem:[%s58 + $0xd0] sm:$0xff]
    %v1752 = vld [vmem:[%s58 + $0xd8] sm:$0xff]
    %v1753 = vld [vmem:[%s58 + $0xe0] sm:$0xff]
    %v1754 = vld [vmem:[%s58 + $0xe8] sm:$0xff]
    %v1755 = vld [vmem:[%s58 + $0xf0] sm:$0xff]
    %v1756 = vld [vmem:[%s58 + $0xf8] sm:$0xff]
    %s1757 = scalar_lea.vmem %s6, 16
    %v1758 = vld [vmem:[%s1757] sm:$0xff]
    %v1759 = vld [vmem:[%s1757 + $0x8] sm:$0xff]
    %v1762 = vperm.slane %v1758, 0
    %v1763 = vperm.slane %v1758, 1
    %v1764 = vperm.slane %v1758, 2
    %v1765 = vperm.slane %v1758, 3
    %v1766 = vperm.slane %v1758, 4
    %v1767 = vperm.slane %v1758, 5
    %v1768 = vperm.slane %v1758, 6
    %v1769 = vperm.slane %v1758, 7
    %v1770 = vperm.slane %v1759, 0
    %v1771 = vperm.slane %v1759, 1
    %v1772 = vperm.slane %v1759, 2
    %v1773 = vperm.slane %v1759, 3
    %v1774 = vperm.slane %v1759, 4
    %v1775 = vperm.slane %v1759, 5
    %v1776 = vperm.slane %v1759, 6
    %v1777 = vperm.slane %v1759, 7
    %v1826 = vunpack.c.l.b16 %v1725
    %v1827 = vunpack.c.h.b16 %v1725
    %v1828 = vunpack.c.l.b16 %v1726
    %v1829 = vunpack.c.h.b16 %v1726
    %v1830 = vunpack.c.l.b16 %v1727
    %v1831 = vunpack.c.h.b16 %v1727
    %v1832 = vunpack.c.l.b16 %v1728
    %v1833 = vunpack.c.h.b16 %v1728
    %v1834 = vunpack.c.l.b16 %v1729
    %v1835 = vunpack.c.h.b16 %v1729
    %v1836 = vunpack.c.l.b16 %v1730
    %v1837 = vunpack.c.h.b16 %v1730
    %v1838 = vunpack.c.l.b16 %v1731
    %v1839 = vunpack.c.h.b16 %v1731
    %v1840 = vunpack.c.l.b16 %v1732
    %v1841 = vunpack.c.h.b16 %v1732
    %v1842 = vunpack.c.l.b16 %v1733
    %v1843 = vunpack.c.h.b16 %v1733
    %v1844 = vunpack.c.l.b16 %v1734
    %v1845 = vunpack.c.h.b16 %v1734
    %v1846 = vunpack.c.l.b16 %v1735
    %v1847 = vunpack.c.h.b16 %v1735
    %v1848 = vunpack.c.l.b16 %v1736
    %v1849 = vunpack.c.h.b16 %v1736
    %v1850 = vunpack.c.l.b16 %v1737
    %v1851 = vunpack.c.h.b16 %v1737
    %v1852 = vunpack.c.l.b16 %v1738
    %v1853 = vunpack.c.h.b16 %v1738
    %v1854 = vunpack.c.l.b16 %v1739
    %v1855 = vunpack.c.h.b16 %v1739
    %v1856 = vunpack.c.l.b16 %v1740
    %v1857 = vunpack.c.h.b16 %v1740
    %v1858 = vunpack.c.l.b16 %v1741
    %v1859 = vunpack.c.h.b16 %v1741
    %v1860 = vunpack.c.l.b16 %v1742
    %v1861 = vunpack.c.h.b16 %v1742
    %v1862 = vunpack.c.l.b16 %v1743
    %v1863 = vunpack.c.h.b16 %v1743
    %v1864 = vunpack.c.l.b16 %v1744
    %v1865 = vunpack.c.h.b16 %v1744
    %v1866 = vunpack.c.l.b16 %v1745
    %v1867 = vunpack.c.h.b16 %v1745
    %v1868 = vunpack.c.l.b16 %v1746
    %v1869 = vunpack.c.h.b16 %v1746
    %v1870 = vunpack.c.l.b16 %v1747
    %v1871 = vunpack.c.h.b16 %v1747
    %v1872 = vunpack.c.l.b16 %v1748
    %v1873 = vunpack.c.h.b16 %v1748
    %v1874 = vunpack.c.l.b16 %v1749
    %v1875 = vunpack.c.h.b16 %v1749
    %v1876 = vunpack.c.l.b16 %v1750
    %v1877 = vunpack.c.h.b16 %v1750
    %v1878 = vunpack.c.l.b16 %v1751
    %v1879 = vunpack.c.h.b16 %v1751
    %v1880 = vunpack.c.l.b16 %v1752
    %v1881 = vunpack.c.h.b16 %v1752
    %v1882 = vunpack.c.l.b16 %v1753
    %v1883 = vunpack.c.h.b16 %v1753
    %v1884 = vunpack.c.l.b16 %v1754
    %v1885 = vunpack.c.h.b16 %v1754
    %v1886 = vunpack.c.l.b16 %v1755
    %v1887 = vunpack.c.h.b16 %v1755
    %v1888 = vunpack.c.l.b16 %v1756
    %v1889 = vunpack.c.h.b16 %v1756
    %v1890 = vpack.c.b16 %v1842, %v1826
    %v1891 = vpack.c.b16 %v1843, %v1827
    %v1892 = vpack.c.b16 %v1844, %v1828
    %v1893 = vpack.c.b16 %v1845, %v1829
    %v1894 = vpack.c.b16 %v1846, %v1830
    %v1895 = vpack.c.b16 %v1847, %v1831
    %v1896 = vpack.c.b16 %v1848, %v1832
    %v1897 = vpack.c.b16 %v1849, %v1833
    %v1898 = vpack.c.b16 %v1850, %v1834
    %v1899 = vpack.c.b16 %v1851, %v1835
    %v1900 = vpack.c.b16 %v1852, %v1836
    %v1901 = vpack.c.b16 %v1853, %v1837
    %v1902 = vpack.c.b16 %v1854, %v1838
    %v1903 = vpack.c.b16 %v1855, %v1839
    %v1904 = vpack.c.b16 %v1856, %v1840
    %v1905 = vpack.c.b16 %v1857, %v1841
    %v1906 = vpack.c.b16 %v1874, %v1858
    %v1907 = vpack.c.b16 %v1875, %v1859
    %v1908 = vpack.c.b16 %v1876, %v1860
    %v1909 = vpack.c.b16 %v1877, %v1861
    %v1910 = vpack.c.b16 %v1878, %v1862
    %v1911 = vpack.c.b16 %v1879, %v1863
    %v1912 = vpack.c.b16 %v1880, %v1864
    %v1913 = vpack.c.b16 %v1881, %v1865
    %v1914 = vpack.c.b16 %v1882, %v1866
    %v1915 = vpack.c.b16 %v1883, %v1867
    %v1916 = vpack.c.b16 %v1884, %v1868
    %v1917 = vpack.c.b16 %v1885, %v1869
    %v1918 = vpack.c.b16 %v1886, %v1870
    %v1919 = vpack.c.b16 %v1887, %v1871
    %v1920 = vpack.c.b16 %v1888, %v1872
    %v1921 = vpack.c.b16 %v1889, %v1873
    %v1955 = vsel %vm188, %v1724, 0
    %1957 = vmatpush.bf16.msra.mxu0 0
    %1958 = vmatpush.bf16.msra.mxu0 0
    %1959 = vmatpush.bf16.msra.mxu0 0
    %1960 = vmatpush.bf16.msra.mxu0 0
    %1961 = vmatpush.bf16.msra.mxu0 0
    %1962 = vmatpush.bf16.msra.mxu0 0
    %1963 = vmatpush.bf16.msra.mxu0 %v1906
    %1964 = vmatpush.bf16.msra.mxu0 %v1890
    %1965 = vmatmul.bf16.gmra.mxu0 %v1955
    %v1966 = vpop.f32.mrf.mxu0
    %v1967 = vadd.f32 %v1762, %v1966
    %v1968 = vpop.f32.mrf.mxu0
    %v1969 = vadd.f32 %v1762, %v1968
    %1970 = vdwg.mxu0
    %1971 = vmatpush.bf16.msra.mxu0 0
    %1972 = vmatpush.bf16.msra.mxu0 0
    %1973 = vmatpush.bf16.msra.mxu0 0
    %1974 = vmatpush.bf16.msra.mxu0 0
    %1975 = vmatpush.bf16.msra.mxu0 0
    %1976 = vmatpush.bf16.msra.mxu0 0
    %1977 = vmatpush.bf16.msra.mxu0 %v1907
    %1978 = vmatpush.bf16.msra.mxu0 %v1891
    %1979 = vmatmul.bf16.gmra.mxu0 %v1955
    %v1980 = vpop.f32.mrf.mxu0
    %v1981 = vadd.f32 %v1763, %v1980
    %v1982 = vpop.f32.mrf.mxu0
    %v1983 = vadd.f32 %v1763, %v1982
    %1984 = vdwg.mxu0
    %1985 = vmatpush.bf16.msra.mxu0 0
    %1986 = vmatpush.bf16.msra.mxu0 0
    %1987 = vmatpush.bf16.msra.mxu0 0
    %1988 = vmatpush.bf16.msra.mxu0 0
    %1989 = vmatpush.bf16.msra.mxu0 0
    %1990 = vmatpush.bf16.msra.mxu0 0
    %1991 = vmatpush.bf16.msra.mxu0 %v1908
    %1992 = vmatpush.bf16.msra.mxu0 %v1892
    %1993 = vmatmul.bf16.gmra.mxu0 %v1955
    %v1994 = vpop.f32.mrf.mxu0
    %v1995 = vadd.f32 %v1764, %v1994
    %v1996 = vpop.f32.mrf.mxu0
    %v1997 = vadd.f32 %v1764, %v1996
    %1998 = vdwg.mxu0
    %1999 = vmatpush.bf16.msra.mxu0 0
    %2000 = vmatpush.bf16.msra.mxu0 0
    %2001 = vmatpush.bf16.msra.mxu0 0
    %2002 = vmatpush.bf16.msra.mxu0 0
    %2003 = vmatpush.bf16.msra.mxu0 0
    %2004 = vmatpush.bf16.msra.mxu0 0
    %2005 = vmatpush.bf16.msra.mxu0 %v1909
    %2006 = vmatpush.bf16.msra.mxu0 %v1893
    %2007 = vmatmul.bf16.gmra.mxu0 %v1955
    %v2008 = vpop.f32.mrf.mxu0
    %v2009 = vadd.f32 %v1765, %v2008
    %v2010 = vpop.f32.mrf.mxu0
    %v2011 = vadd.f32 %v1765, %v2010
    %2012 = vdwg.mxu0
    %2013 = vmatpush.bf16.msra.mxu0 0
    %2014 = vmatpush.bf16.msra.mxu0 0
    %2015 = vmatpush.bf16.msra.mxu0 0
    %2016 = vmatpush.bf16.msra.mxu0 0
    %2017 = vmatpush.bf16.msra.mxu0 0
    %2018 = vmatpush.bf16.msra.mxu0 0
    %2019 = vmatpush.bf16.msra.mxu0 %v1910
    %2020 = vmatpush.bf16.msra.mxu0 %v1894
    %2021 = vmatmul.bf16.gmra.mxu0 %v1955
    %v2022 = vpop.f32.mrf.mxu0
    %v2023 = vadd.f32 %v1766, %v2022
    %v2024 = vpop.f32.mrf.mxu0
    %v2025 = vadd.f32 %v1766, %v2024
    %2026 = vdwg.mxu0
    %2027 = vmatpush.bf16.msra.mxu0 0
    %2028 = vmatpush.bf16.msra.mxu0 0
    %2029 = vmatpush.bf16.msra.mxu0 0
    %2030 = vmatpush.bf16.msra.mxu0 0
    %2031 = vmatpush.bf16.msra.mxu0 0
    %2032 = vmatpush.bf16.msra.mxu0 0
    %2033 = vmatpush.bf16.msra.mxu0 %v1911
    %2034 = vmatpush.bf16.msra.mxu0 %v1895
    %2035 = vmatmul.bf16.gmra.mxu0 %v1955
    %v2036 = vpop.f32.mrf.mxu0
    %v2037 = vadd.f32 %v1767, %v2036
    %v2038 = vpop.f32.mrf.mxu0
    %v2039 = vadd.f32 %v1767, %v2038
    %2040 = vdwg.mxu0
    %2041 = vmatpush.bf16.msra.mxu0 0
    %2042 = vmatpush.bf16.msra.mxu0 0
    %2043 = vmatpush.bf16.msra.mxu0 0
    %2044 = vmatpush.bf16.msra.mxu0 0
    %2045 = vmatpush.bf16.msra.mxu0 0
    %2046 = vmatpush.bf16.msra.mxu0 0
    %2047 = vmatpush.bf16.msra.mxu0 %v1912
    %2048 = vmatpush.bf16.msra.mxu0 %v1896
    %2049 = vmatmul.bf16.gmra.mxu0 %v1955
    %v2050 = vpop.f32.mrf.mxu0
    %v2051 = vadd.f32 %v1768, %v2050
    %v2052 = vpop.f32.mrf.mxu0
    %v2053 = vadd.f32 %v1768, %v2052
    %2054 = vdwg.mxu0
    %2055 = vmatpush.bf16.msra.mxu0 0
    %2056 = vmatpush.bf16.msra.mxu0 0
    %2057 = vmatpush.bf16.msra.mxu0 0
    %2058 = vmatpush.bf16.msra.mxu0 0
    %2059 = vmatpush.bf16.msra.mxu0 0
    %2060 = vmatpush.bf16.msra.mxu0 0
    %2061 = vmatpush.bf16.msra.mxu0 %v1913
    %2062 = vmatpush.bf16.msra.mxu0 %v1897
    %2063 = vmatmul.bf16.gmra.mxu0 %v1955
    %v2064 = vpop.f32.mrf.mxu0
    %v2065 = vadd.f32 %v1769, %v2064
    %v2066 = vpop.f32.mrf.mxu0
    %v2067 = vadd.f32 %v1769, %v2066
    %2068 = vdwg.mxu0
    %2069 = vmatpush.bf16.msra.mxu0 0
    %2070 = vmatpush.bf16.msra.mxu0 0
    %2071 = vmatpush.bf16.msra.mxu0 0
    %2072 = vmatpush.bf16.msra.mxu0 0
    %2073 = vmatpush.bf16.msra.mxu0 0
    %2074 = vmatpush.bf16.msra.mxu0 0
    %2075 = vmatpush.bf16.msra.mxu0 %v1914
    %2076 = vmatpush.bf16.msra.mxu0 %v1898
    %2077 = vmatmul.bf16.gmra.mxu0 %v1955
    %v2078 = vpop.f32.mrf.mxu0
    %v2079 = vadd.f32 %v1770, %v2078
    %v2080 = vpop.f32.mrf.mxu0
    %v2081 = vadd.f32 %v1770, %v2080
    %2082 = vdwg.mxu0
    %2083 = vmatpush.bf16.msra.mxu0 0
    %2084 = vmatpush.bf16.msra.mxu0 0
    %2085 = vmatpush.bf16.msra.mxu0 0
    %2086 = vmatpush.bf16.msra.mxu0 0
    %2087 = vmatpush.bf16.msra.mxu0 0
    %2088 = vmatpush.bf16.msra.mxu0 0
    %2089 = vmatpush.bf16.msra.mxu0 %v1915
    %2090 = vmatpush.bf16.msra.mxu0 %v1899
    %2091 = vmatmul.bf16.gmra.mxu0 %v1955
    %v2092 = vpop.f32.mrf.mxu0
    %v2093 = vadd.f32 %v1771, %v2092
    %v2094 = vpop.f32.mrf.mxu0
    %v2095 = vadd.f32 %v1771, %v2094
    %2096 = vdwg.mxu0
    %2097 = vmatpush.bf16.msra.mxu0 0
    %2098 = vmatpush.bf16.msra.mxu0 0
    %2099 = vmatpush.bf16.msra.mxu0 0
    %2100 = vmatpush.bf16.msra.mxu0 0
    %2101 = vmatpush.bf16.msra.mxu0 0
    %2102 = vmatpush.bf16.msra.mxu0 0
    %2103 = vmatpush.bf16.msra.mxu0 %v1916
    %2104 = vmatpush.bf16.msra.mxu0 %v1900
    %2105 = vmatmul.bf16.gmra.mxu0 %v1955
    %v2106 = vpop.f32.mrf.mxu0
    %v2107 = vadd.f32 %v1772, %v2106
    %v2108 = vpop.f32.mrf.mxu0
    %v2109 = vadd.f32 %v1772, %v2108
    %2110 = vdwg.mxu0
    %2111 = vmatpush.bf16.msra.mxu0 0
    %2112 = vmatpush.bf16.msra.mxu0 0
    %2113 = vmatpush.bf16.msra.mxu0 0
    %2114 = vmatpush.bf16.msra.mxu0 0
    %2115 = vmatpush.bf16.msra.mxu0 0
    %2116 = vmatpush.bf16.msra.mxu0 0
    %2117 = vmatpush.bf16.msra.mxu0 %v1917
    %2118 = vmatpush.bf16.msra.mxu0 %v1901
    %2119 = vmatmul.bf16.gmra.mxu0 %v1955
    %v2120 = vpop.f32.mrf.mxu0
    %v2121 = vadd.f32 %v1773, %v2120
    %v2122 = vpop.f32.mrf.mxu0
    %v2123 = vadd.f32 %v1773, %v2122
    %2124 = vdwg.mxu0
    %2125 = vmatpush.bf16.msra.mxu0 0
    %2126 = vmatpush.bf16.msra.mxu0 0
    %2127 = vmatpush.bf16.msra.mxu0 0
    %2128 = vmatpush.bf16.msra.mxu0 0
    %2129 = vmatpush.bf16.msra.mxu0 0
    %2130 = vmatpush.bf16.msra.mxu0 0
    %2131 = vmatpush.bf16.msra.mxu0 %v1918
    %2132 = vmatpush.bf16.msra.mxu0 %v1902
    %2133 = vmatmul.bf16.gmra.mxu0 %v1955
    %v2134 = vpop.f32.mrf.mxu0
    %v2135 = vadd.f32 %v1774, %v2134
    %v2136 = vpop.f32.mrf.mxu0
    %v2137 = vadd.f32 %v1774, %v2136
    %2138 = vdwg.mxu0
    %2139 = vmatpush.bf16.msra.mxu0 0
    %2140 = vmatpush.bf16.msra.mxu0 0
    %2141 = vmatpush.bf16.msra.mxu0 0
    %2142 = vmatpush.bf16.msra.mxu0 0
    %2143 = vmatpush.bf16.msra.mxu0 0
    %2144 = vmatpush.bf16.msra.mxu0 0
    %2145 = vmatpush.bf16.msra.mxu0 %v1919
    %2146 = vmatpush.bf16.msra.mxu0 %v1903
    %2147 = vmatmul.bf16.gmra.mxu0 %v1955
    %v2148 = vpop.f32.mrf.mxu0
    %v2149 = vadd.f32 %v1775, %v2148
    %v2150 = vpop.f32.mrf.mxu0
    %v2151 = vadd.f32 %v1775, %v2150
    %2152 = vdwg.mxu0
    %2153 = vmatpush.bf16.msra.mxu0 0
    %2154 = vmatpush.bf16.msra.mxu0 0
    %2155 = vmatpush.bf16.msra.mxu0 0
    %2156 = vmatpush.bf16.msra.mxu0 0
    %2157 = vmatpush.bf16.msra.mxu0 0
    %2158 = vmatpush.bf16.msra.mxu0 0
    %2159 = vmatpush.bf16.msra.mxu0 %v1920
    %2160 = vmatpush.bf16.msra.mxu0 %v1904
    %2161 = vmatmul.bf16.gmra.mxu0 %v1955
    %v2162 = vpop.f32.mrf.mxu0
    %v2163 = vadd.f32 %v1776, %v2162
    %v2164 = vpop.f32.mrf.mxu0
    %v2165 = vadd.f32 %v1776, %v2164
    %2166 = vdwg.mxu0
    %2167 = vmatpush.bf16.msra.mxu0 0
    %2168 = vmatpush.bf16.msra.mxu0 0
    %2169 = vmatpush.bf16.msra.mxu0 0
    %2170 = vmatpush.bf16.msra.mxu0 0
    %2171 = vmatpush.bf16.msra.mxu0 0
    %2172 = vmatpush.bf16.msra.mxu0 0
    %2173 = vmatpush.bf16.msra.mxu0 %v1921
    %2174 = vmatpush.bf16.msra.mxu0 %v1905
    %2175 = vmatmul.bf16.gmra.mxu0 %v1955
    %v2176 = vpop.f32.mrf.mxu0
    %v2177 = vadd.f32 %v1777, %v2176
    %v2178 = vpop.f32.mrf.mxu0
    %v2179 = vadd.f32 %v1777, %v2178
    %2180 = vdwg.mxu0
    %v2181 = vmax.f32 %v1967, 0.0
    %v2182 = vmax.f32 %v1981, 0.0
    %v2183 = vmax.f32 %v1995, 0.0
    %v2184 = vmax.f32 %v2009, 0.0
    %v2185 = vmax.f32 %v2023, 0.0
    %v2186 = vmax.f32 %v2037, 0.0
    %v2187 = vmax.f32 %v2051, 0.0
    %v2188 = vmax.f32 %v2065, 0.0
    %v2189 = vmax.f32 %v2079, 0.0
    %v2190 = vmax.f32 %v2093, 0.0
    %v2191 = vmax.f32 %v2107, 0.0
    %v2192 = vmax.f32 %v2121, 0.0
    %v2193 = vmax.f32 %v2135, 0.0
    %v2194 = vmax.f32 %v2149, 0.0
    %v2195 = vmax.f32 %v2163, 0.0
    %v2196 = vmax.f32 %v2177, 0.0
    %v2197 = vmax.f32 %v1969, 0.0
    %v2198 = vmax.f32 %v1983, 0.0
    %v2199 = vmax.f32 %v1997, 0.0
    %v2200 = vmax.f32 %v2011, 0.0
    %v2201 = vmax.f32 %v2025, 0.0
    %v2202 = vmax.f32 %v2039, 0.0
    %v2203 = vmax.f32 %v2053, 0.0
    %v2204 = vmax.f32 %v2067, 0.0
    %v2205 = vmax.f32 %v2081, 0.0
    %v2206 = vmax.f32 %v2095, 0.0
    %v2207 = vmax.f32 %v2109, 0.0
    %v2208 = vmax.f32 %v2123, 0.0
    %v2209 = vmax.f32 %v2137, 0.0
    %v2210 = vmax.f32 %v2151, 0.0
    %v2211 = vmax.f32 %v2165, 0.0
    %v2212 = vmax.f32 %v2179, 0.0
    %s2213 = sshll.u32 %s463, 4
    %2214 = dma.done %s75, %s2213
    %v2215 = vpack.c.bf16 %v2197, %v2181
    %v2216 = vpack.c.bf16 %v2198, %v2182
    %v2217 = vpack.c.bf16 %v2199, %v2183
    %v2218 = vpack.c.bf16 %v2200, %v2184
    %v2219 = vpack.c.bf16 %v2201, %v2185
    %v2220 = vpack.c.bf16 %v2202, %v2186
    %v2221 = vpack.c.bf16 %v2203, %v2187
    %v2222 = vpack.c.bf16 %v2204, %v2188
    %v2223 = vpack.c.bf16 %v2205, %v2189
    %v2224 = vpack.c.bf16 %v2206, %v2190
    %v2225 = vpack.c.bf16 %v2207, %v2191
    %v2226 = vpack.c.bf16 %v2208, %v2192
    %v2227 = vpack.c.bf16 %v2209, %v2193
    %v2228 = vpack.c.bf16 %v2210, %v2194
    %v2229 = vpack.c.bf16 %v2211, %v2195
    %v2230 = vpack.c.bf16 %v2212, %v2196
    %v2231 = vld [vmem:[%s74] sm:$0xff]
    %v2232 = vld [vmem:[%s74 + $0x8] sm:$0xff]
    %v2233 = vld [vmem:[%s74 + $0x10] sm:$0xff]
    %v2234 = vld [vmem:[%s74 + $0x18] sm:$0xff]
    %v2235 = vld [vmem:[%s74 + $0x20] sm:$0xff]
    %v2236 = vld [vmem:[%s74 + $0x28] sm:$0xff]
    %v2237 = vld [vmem:[%s74 + $0x30] sm:$0xff]
    %v2238 = vld [vmem:[%s74 + $0x38] sm:$0xff]
    %v2239 = vld [vmem:[%s74 + $0x40] sm:$0xff]
    %v2240 = vld [vmem:[%s74 + $0x48] sm:$0xff]
    %v2241 = vld [vmem:[%s74 + $0x50] sm:$0xff]
    %v2242 = vld [vmem:[%s74 + $0x58] sm:$0xff]
    %v2243 = vld [vmem:[%s74 + $0x60] sm:$0xff]
    %v2244 = vld [vmem:[%s74 + $0x68] sm:$0xff]
    %v2245 = vld [vmem:[%s74 + $0x70] sm:$0xff]
    %v2246 = vld [vmem:[%s74 + $0x78] sm:$0xff]
    %v2247 = vld [vmem:[%s74 + $0x80] sm:$0xff]
    %v2248 = vld [vmem:[%s74 + $0x88] sm:$0xff]
    %v2249 = vld [vmem:[%s74 + $0x90] sm:$0xff]
    %v2250 = vld [vmem:[%s74 + $0x98] sm:$0xff]
    %v2251 = vld [vmem:[%s74 + $0xa0] sm:$0xff]
    %v2252 = vld [vmem:[%s74 + $0xa8] sm:$0xff]
    %v2253 = vld [vmem:[%s74 + $0xb0] sm:$0xff]
    %v2254 = vld [vmem:[%s74 + $0xb8] sm:$0xff]
    %v2255 = vld [vmem:[%s74 + $0xc0] sm:$0xff]
    %v2256 = vld [vmem:[%s74 + $0xc8] sm:$0xff]
    %v2257 = vld [vmem:[%s74 + $0xd0] sm:$0xff]
    %v2258 = vld [vmem:[%s74 + $0xd8] sm:$0xff]
    %v2259 = vld [vmem:[%s74 + $0xe0] sm:$0xff]
    %v2260 = vld [vmem:[%s74 + $0xe8] sm:$0xff]
    %v2261 = vld [vmem:[%s74 + $0xf0] sm:$0xff]
    %v2262 = vld [vmem:[%s74 + $0xf8] sm:$0xff]
    %v2263 = vperm.slane %v1447, 0
    %v2296 = vunpack.c.l.b16 %v2231
    %v2297 = vunpack.c.h.b16 %v2231
    %v2298 = vunpack.c.l.b16 %v2232
    %v2299 = vunpack.c.h.b16 %v2232
    %v2300 = vunpack.c.l.b16 %v2233
    %v2301 = vunpack.c.h.b16 %v2233
    %v2302 = vunpack.c.l.b16 %v2234
    %v2303 = vunpack.c.h.b16 %v2234
    %v2304 = vunpack.c.l.b16 %v2235
    %v2305 = vunpack.c.h.b16 %v2235
    %v2306 = vunpack.c.l.b16 %v2236
    %v2307 = vunpack.c.h.b16 %v2236
    %v2308 = vunpack.c.l.b16 %v2237
    %v2309 = vunpack.c.h.b16 %v2237
    %v2310 = vunpack.c.l.b16 %v2238
    %v2311 = vunpack.c.h.b16 %v2238
    %v2312 = vunpack.c.l.b16 %v2239
    %v2313 = vunpack.c.h.b16 %v2239
    %v2314 = vunpack.c.l.b16 %v2240
    %v2315 = vunpack.c.h.b16 %v2240
    %v2316 = vunpack.c.l.b16 %v2241
    %v2317 = vunpack.c.h.b16 %v2241
    %v2318 = vunpack.c.l.b16 %v2242
    %v2319 = vunpack.c.h.b16 %v2242
    %v2320 = vunpack.c.l.b16 %v2243
    %v2321 = vunpack.c.h.b16 %v2243
    %v2322 = vunpack.c.l.b16 %v2244
    %v2323 = vunpack.c.h.b16 %v2244
    %v2324 = vunpack.c.l.b16 %v2245
    %v2325 = vunpack.c.h.b16 %v2245
    %v2326 = vunpack.c.l.b16 %v2246
    %v2327 = vunpack.c.h.b16 %v2246
    %v2328 = vunpack.c.l.b16 %v2247
    %v2329 = vunpack.c.h.b16 %v2247
    %v2330 = vunpack.c.l.b16 %v2248
    %v2331 = vunpack.c.h.b16 %v2248
    %v2332 = vunpack.c.l.b16 %v2249
    %v2333 = vunpack.c.h.b16 %v2249
    %v2334 = vunpack.c.l.b16 %v2250
    %v2335 = vunpack.c.h.b16 %v2250
    %v2336 = vunpack.c.l.b16 %v2251
    %v2337 = vunpack.c.h.b16 %v2251
    %v2338 = vunpack.c.l.b16 %v2252
    %v2339 = vunpack.c.h.b16 %v2252
    %v2340 = vunpack.c.l.b16 %v2253
    %v2341 = vunpack.c.h.b16 %v2253
    %v2342 = vunpack.c.l.b16 %v2254
    %v2343 = vunpack.c.h.b16 %v2254
    %v2344 = vunpack.c.l.b16 %v2255
    %v2345 = vunpack.c.h.b16 %v2255
    %v2346 = vunpack.c.l.b16 %v2256
    %v2347 = vunpack.c.h.b16 %v2256
    %v2348 = vunpack.c.l.b16 %v2257
    %v2349 = vunpack.c.h.b16 %v2257
    %v2350 = vunpack.c.l.b16 %v2258
    %v2351 = vunpack.c.h.b16 %v2258
    %v2352 = vunpack.c.l.b16 %v2259
    %v2353 = vunpack.c.h.b16 %v2259
    %v2354 = vunpack.c.l.b16 %v2260
    %v2355 = vunpack.c.h.b16 %v2260
    %v2356 = vunpack.c.l.b16 %v2261
    %v2357 = vunpack.c.h.b16 %v2261
    %v2358 = vunpack.c.l.b16 %v2262
    %v2359 = vunpack.c.h.b16 %v2262
    %v2360 = vpack.c.b16 %v2312, %v2296
    %v2361 = vpack.c.b16 %v2313, %v2297
    %v2362 = vpack.c.b16 %v2314, %v2298
    %v2363 = vpack.c.b16 %v2315, %v2299
    %v2364 = vpack.c.b16 %v2316, %v2300
    %v2365 = vpack.c.b16 %v2317, %v2301
    %v2366 = vpack.c.b16 %v2318, %v2302
    %v2367 = vpack.c.b16 %v2319, %v2303
    %v2368 = vpack.c.b16 %v2320, %v2304
    %v2369 = vpack.c.b16 %v2321, %v2305
    %v2370 = vpack.c.b16 %v2322, %v2306
    %v2371 = vpack.c.b16 %v2323, %v2307
    %v2372 = vpack.c.b16 %v2324, %v2308
    %v2373 = vpack.c.b16 %v2325, %v2309
    %v2374 = vpack.c.b16 %v2326, %v2310
    %v2375 = vpack.c.b16 %v2327, %v2311
    %v2376 = vpack.c.b16 %v2344, %v2328
    %v2377 = vpack.c.b16 %v2345, %v2329
    %v2378 = vpack.c.b16 %v2346, %v2330
    %v2379 = vpack.c.b16 %v2347, %v2331
    %v2380 = vpack.c.b16 %v2348, %v2332
    %v2381 = vpack.c.b16 %v2349, %v2333
    %v2382 = vpack.c.b16 %v2350, %v2334
    %v2383 = vpack.c.b16 %v2351, %v2335
    %v2384 = vpack.c.b16 %v2352, %v2336
    %v2385 = vpack.c.b16 %v2353, %v2337
    %v2386 = vpack.c.b16 %v2354, %v2338
    %v2387 = vpack.c.b16 %v2355, %v2339
    %v2388 = vpack.c.b16 %v2356, %v2340
    %v2389 = vpack.c.b16 %v2357, %v2341
    %v2390 = vpack.c.b16 %v2358, %v2342
    %v2391 = vpack.c.b16 %v2359, %v2343
    %2424 = vmatpush.bf16.xpose.msra.mxu0 0
    %2425 = vmatpush.bf16.xpose.msra.mxu0 0
    %2426 = vmatpush.bf16.xpose.msra.mxu0 0
    %2427 = vmatpush.bf16.xpose.msra.mxu0 0
    %2428 = vmatpush.bf16.xpose.msra.mxu0 0
    %2429 = vmatpush.bf16.xpose.msra.mxu0 0
    %2430 = vmatpush.bf16.xpose.msra.mxu0 %v2376
    %2431 = vmatpush.bf16.xpose.msra.mxu0 %v2360
    %2432 = vmatmul.bf16.gmra.mxu0 %v2215
    %v2433 = vpop.f32.mrf.mxu0
    %v2434 = vadd.f32 %v2263, %v2433
    %v2435 = vpop.f32.mrf.mxu0
    %v2436 = vadd.f32 %v2263, %v2435
    %2437 = vdwg.mxu0
    %2438 = vmatpush.bf16.xpose.msra.mxu0 0
    %2439 = vmatpush.bf16.xpose.msra.mxu0 0
    %2440 = vmatpush.bf16.xpose.msra.mxu0 0
    %2441 = vmatpush.bf16.xpose.msra.mxu0 0
    %2442 = vmatpush.bf16.xpose.msra.mxu0 0
    %2443 = vmatpush.bf16.xpose.msra.mxu0 0
    %2444 = vmatpush.bf16.xpose.msra.mxu0 %v2377
    %2445 = vmatpush.bf16.xpose.msra.mxu0 %v2361
    %2446 = vmatmul.bf16.gmra.mxu0 %v2216
    %v2447 = vpop.f32.mrf.mxu0
    %v2448 = vadd.f32 %v2434, %v2447
    %v2449 = vpop.f32.mrf.mxu0
    %v2450 = vadd.f32 %v2436, %v2449
    %2451 = vdwg.mxu0
    %2452 = vmatpush.bf16.xpose.msra.mxu0 0
    %2453 = vmatpush.bf16.xpose.msra.mxu0 0
    %2454 = vmatpush.bf16.xpose.msra.mxu0 0
    %2455 = vmatpush.bf16.xpose.msra.mxu0 0
    %2456 = vmatpush.bf16.xpose.msra.mxu0 0
    %2457 = vmatpush.bf16.xpose.msra.mxu0 0
    %2458 = vmatpush.bf16.xpose.msra.mxu0 %v2378
    %2459 = vmatpush.bf16.xpose.msra.mxu0 %v2362
    %2460 = vmatmul.bf16.gmra.mxu0 %v2217
    %v2461 = vpop.f32.mrf.mxu0
    %v2462 = vadd.f32 %v2448, %v2461
    %v2463 = vpop.f32.mrf.mxu0
    %v2464 = vadd.f32 %v2450, %v2463
    %2465 = vdwg.mxu0
    %2466 = vmatpush.bf16.xpose.msra.mxu0 0
    %2467 = vmatpush.bf16.xpose.msra.mxu0 0
    %2468 = vmatpush.bf16.xpose.msra.mxu0 0
    %2469 = vmatpush.bf16.xpose.msra.mxu0 0
    %2470 = vmatpush.bf16.xpose.msra.mxu0 0
    %2471 = vmatpush.bf16.xpose.msra.mxu0 0
    %2472 = vmatpush.bf16.xpose.msra.mxu0 %v2379
    %2473 = vmatpush.bf16.xpose.msra.mxu0 %v2363
    %2474 = vmatmul.bf16.gmra.mxu0 %v2218
    %v2475 = vpop.f32.mrf.mxu0
    %v2476 = vadd.f32 %v2462, %v2475
    %v2477 = vpop.f32.mrf.mxu0
    %v2478 = vadd.f32 %v2464, %v2477
    %2479 = vdwg.mxu0
    %2480 = vmatpush.bf16.xpose.msra.mxu0 0
    %2481 = vmatpush.bf16.xpose.msra.mxu0 0
    %2482 = vmatpush.bf16.xpose.msra.mxu0 0
    %2483 = vmatpush.bf16.xpose.msra.mxu0 0
    %2484 = vmatpush.bf16.xpose.msra.mxu0 0
    %2485 = vmatpush.bf16.xpose.msra.mxu0 0
    %2486 = vmatpush.bf16.xpose.msra.mxu0 %v2380
    %2487 = vmatpush.bf16.xpose.msra.mxu0 %v2364
    %2488 = vmatmul.bf16.gmra.mxu0 %v2219
    %v2489 = vpop.f32.mrf.mxu0
    %v2490 = vadd.f32 %v2476, %v2489
    %v2491 = vpop.f32.mrf.mxu0
    %v2492 = vadd.f32 %v2478, %v2491
    %2493 = vdwg.mxu0
    %2494 = vmatpush.bf16.xpose.msra.mxu0 0
    %2495 = vmatpush.bf16.xpose.msra.mxu0 0
    %2496 = vmatpush.bf16.xpose.msra.mxu0 0
    %2497 = vmatpush.bf16.xpose.msra.mxu0 0
    %2498 = vmatpush.bf16.xpose.msra.mxu0 0
    %2499 = vmatpush.bf16.xpose.msra.mxu0 0
    %2500 = vmatpush.bf16.xpose.msra.mxu0 %v2381
    %2501 = vmatpush.bf16.xpose.msra.mxu0 %v2365
    %2502 = vmatmul.bf16.gmra.mxu0 %v2220
    %v2503 = vpop.f32.mrf.mxu0
    %v2504 = vadd.f32 %v2490, %v2503
    %v2505 = vpop.f32.mrf.mxu0
    %v2506 = vadd.f32 %v2492, %v2505
    %2507 = vdwg.mxu0
    %2508 = vmatpush.bf16.xpose.msra.mxu0 0
    %2509 = vmatpush.bf16.xpose.msra.mxu0 0
    %2510 = vmatpush.bf16.xpose.msra.mxu0 0
    %2511 = vmatpush.bf16.xpose.msra.mxu0 0
    %2512 = vmatpush.bf16.xpose.msra.mxu0 0
    %2513 = vmatpush.bf16.xpose.msra.mxu0 0
    %2514 = vmatpush.bf16.xpose.msra.mxu0 %v2382
    %2515 = vmatpush.bf16.xpose.msra.mxu0 %v2366
    %2516 = vmatmul.bf16.gmra.mxu0 %v2221
    %v2517 = vpop.f32.mrf.mxu0
    %v2518 = vadd.f32 %v2504, %v2517
    %v2519 = vpop.f32.mrf.mxu0
    %v2520 = vadd.f32 %v2506, %v2519
    %2521 = vdwg.mxu0
    %2522 = vmatpush.bf16.xpose.msra.mxu0 0
    %2523 = vmatpush.bf16.xpose.msra.mxu0 0
    %2524 = vmatpush.bf16.xpose.msra.mxu0 0
    %2525 = vmatpush.bf16.xpose.msra.mxu0 0
    %2526 = vmatpush.bf16.xpose.msra.mxu0 0
    %2527 = vmatpush.bf16.xpose.msra.mxu0 0
    %2528 = vmatpush.bf16.xpose.msra.mxu0 %v2383
    %2529 = vmatpush.bf16.xpose.msra.mxu0 %v2367
    %2530 = vmatmul.bf16.gmra.mxu0 %v2222
    %v2531 = vpop.f32.mrf.mxu0
    %v2532 = vadd.f32 %v2518, %v2531
    %v2533 = vpop.f32.mrf.mxu0
    %v2534 = vadd.f32 %v2520, %v2533
    %2535 = vdwg.mxu0
    %2536 = vmatpush.bf16.xpose.msra.mxu0 0
    %2537 = vmatpush.bf16.xpose.msra.mxu0 0
    %2538 = vmatpush.bf16.xpose.msra.mxu0 0
    %2539 = vmatpush.bf16.xpose.msra.mxu0 0
    %2540 = vmatpush.bf16.xpose.msra.mxu0 0
    %2541 = vmatpush.bf16.xpose.msra.mxu0 0
    %2542 = vmatpush.bf16.xpose.msra.mxu0 %v2384
    %2543 = vmatpush.bf16.xpose.msra.mxu0 %v2368
    %2544 = vmatmul.bf16.gmra.mxu0 %v2223
    %v2545 = vpop.f32.mrf.mxu0
    %v2546 = vadd.f32 %v2532, %v2545
    %v2547 = vpop.f32.mrf.mxu0
    %v2548 = vadd.f32 %v2534, %v2547
    %2549 = vdwg.mxu0
    %2550 = vmatpush.bf16.xpose.msra.mxu0 0
    %2551 = vmatpush.bf16.xpose.msra.mxu0 0
    %2552 = vmatpush.bf16.xpose.msra.mxu0 0
    %2553 = vmatpush.bf16.xpose.msra.mxu0 0
    %2554 = vmatpush.bf16.xpose.msra.mxu0 0
    %2555 = vmatpush.bf16.xpose.msra.mxu0 0
    %2556 = vmatpush.bf16.xpose.msra.mxu0 %v2385
    %2557 = vmatpush.bf16.xpose.msra.mxu0 %v2369
    %2558 = vmatmul.bf16.gmra.mxu0 %v2224
    %v2559 = vpop.f32.mrf.mxu0
    %v2560 = vadd.f32 %v2546, %v2559
    %v2561 = vpop.f32.mrf.mxu0
    %v2562 = vadd.f32 %v2548, %v2561
    %2563 = vdwg.mxu0
    %2564 = vmatpush.bf16.xpose.msra.mxu0 0
    %2565 = vmatpush.bf16.xpose.msra.mxu0 0
    %2566 = vmatpush.bf16.xpose.msra.mxu0 0
    %2567 = vmatpush.bf16.xpose.msra.mxu0 0
    %2568 = vmatpush.bf16.xpose.msra.mxu0 0
    %2569 = vmatpush.bf16.xpose.msra.mxu0 0
    %2570 = vmatpush.bf16.xpose.msra.mxu0 %v2386
    %2571 = vmatpush.bf16.xpose.msra.mxu0 %v2370
    %2572 = vmatmul.bf16.gmra.mxu0 %v2225
    %v2573 = vpop.f32.mrf.mxu0
    %v2574 = vadd.f32 %v2560, %v2573
    %v2575 = vpop.f32.mrf.mxu0
    %v2576 = vadd.f32 %v2562, %v2575
    %2577 = vdwg.mxu0
    %2578 = vmatpush.bf16.xpose.msra.mxu0 0
    %2579 = vmatpush.bf16.xpose.msra.mxu0 0
    %2580 = vmatpush.bf16.xpose.msra.mxu0 0
    %2581 = vmatpush.bf16.xpose.msra.mxu0 0
    %2582 = vmatpush.bf16.xpose.msra.mxu0 0
    %2583 = vmatpush.bf16.xpose.msra.mxu0 0
    %2584 = vmatpush.bf16.xpose.msra.mxu0 %v2387
    %2585 = vmatpush.bf16.xpose.msra.mxu0 %v2371
    %2586 = vmatmul.bf16.gmra.mxu0 %v2226
    %v2587 = vpop.f32.mrf.mxu0
    %v2588 = vadd.f32 %v2574, %v2587
    %v2589 = vpop.f32.mrf.mxu0
    %v2590 = vadd.f32 %v2576, %v2589
    %2591 = vdwg.mxu0
    %2592 = vmatpush.bf16.xpose.msra.mxu0 0
    %2593 = vmatpush.bf16.xpose.msra.mxu0 0
    %2594 = vmatpush.bf16.xpose.msra.mxu0 0
    %2595 = vmatpush.bf16.xpose.msra.mxu0 0
    %2596 = vmatpush.bf16.xpose.msra.mxu0 0
    %2597 = vmatpush.bf16.xpose.msra.mxu0 0
    %2598 = vmatpush.bf16.xpose.msra.mxu0 %v2388
    %2599 = vmatpush.bf16.xpose.msra.mxu0 %v2372
    %2600 = vmatmul.bf16.gmra.mxu0 %v2227
    %v2601 = vpop.f32.mrf.mxu0
    %v2602 = vadd.f32 %v2588, %v2601
    %v2603 = vpop.f32.mrf.mxu0
    %v2604 = vadd.f32 %v2590, %v2603
    %2605 = vdwg.mxu0
    %2606 = vmatpush.bf16.xpose.msra.mxu0 0
    %2607 = vmatpush.bf16.xpose.msra.mxu0 0
    %2608 = vmatpush.bf16.xpose.msra.mxu0 0
    %2609 = vmatpush.bf16.xpose.msra.mxu0 0
    %2610 = vmatpush.bf16.xpose.msra.mxu0 0
    %2611 = vmatpush.bf16.xpose.msra.mxu0 0
    %2612 = vmatpush.bf16.xpose.msra.mxu0 %v2389
    %2613 = vmatpush.bf16.xpose.msra.mxu0 %v2373
    %2614 = vmatmul.bf16.gmra.mxu0 %v2228
    %v2615 = vpop.f32.mrf.mxu0
    %v2616 = vadd.f32 %v2602, %v2615
    %v2617 = vpop.f32.mrf.mxu0
    %v2618 = vadd.f32 %v2604, %v2617
    %2619 = vdwg.mxu0
    %2620 = vmatpush.bf16.xpose.msra.mxu0 0
    %2621 = vmatpush.bf16.xpose.msra.mxu0 0
    %2622 = vmatpush.bf16.xpose.msra.mxu0 0
    %2623 = vmatpush.bf16.xpose.msra.mxu0 0
    %2624 = vmatpush.bf16.xpose.msra.mxu0 0
    %2625 = vmatpush.bf16.xpose.msra.mxu0 0
    %2626 = vmatpush.bf16.xpose.msra.mxu0 %v2390
    %2627 = vmatpush.bf16.xpose.msra.mxu0 %v2374
    %2628 = vmatmul.bf16.gmra.mxu0 %v2229
    %v2629 = vpop.f32.mrf.mxu0
    %v2630 = vadd.f32 %v2616, %v2629
    %v2631 = vpop.f32.mrf.mxu0
    %v2632 = vadd.f32 %v2618, %v2631
    %2633 = vdwg.mxu0
    %2634 = vmatpush.bf16.xpose.msra.mxu0 0
    %2635 = vmatpush.bf16.xpose.msra.mxu0 0
    %2636 = vmatpush.bf16.xpose.msra.mxu0 0
    %2637 = vmatpush.bf16.xpose.msra.mxu0 0
    %2638 = vmatpush.bf16.xpose.msra.mxu0 0
    %2639 = vmatpush.bf16.xpose.msra.mxu0 0
    %2640 = vmatpush.bf16.xpose.msra.mxu0 %v2391
    %2641 = vmatpush.bf16.xpose.msra.mxu0 %v2375
    %2642 = vmatmul.bf16.gmra.mxu0 %v2230
    %v2643 = vpop.f32.mrf.mxu0
    %v2644 = vadd.f32 %v2630, %v2643
    %v2645 = vpop.f32.mrf.mxu0
    %v2646 = vadd.f32 %v2632, %v2645
    %2647 = vdwg.mxu0
    %v2648 = vadd.f32 %v1720, %v2644
    %v2649 = vadd.f32 %v1721, %v2646
    %v2650 = vsel %vm188, %v2648, 0.0
    %2651 = vadd.xlane.f32.xlu0 %v2650
    %v2652 = vpop.xlane.xlu0 %2651
    %v2653 = vsel %vm188, %v2649, 0.0
    %2654 = vadd.xlane.f32.xlu0 %v2653
    %v2655 = vpop.xlane.xlu0 %2654
    %v2656 = vmul.f32 %v2652, %v417
    %v2657 = vmul.f32 %v2655, %v417
    %v2658 = vsub.f32 %v2648, %v2656
    %v2659 = vsub.f32 %v2649, %v2657
    %v2660 = vmul.f32 %v2658, %v2658
    %v2661 = vmul.f32 %v2659, %v2659
    %v2662 = vsel %vm188, %v2660, 0.0
    %2663 = vadd.xlane.f32.xlu0 %v2662
    %v2664 = vpop.xlane.xlu0 %2663
    %v2665 = vsel %vm188, %v2661, 0.0
    %2666 = vadd.xlane.f32.xlu0 %v2665
    %v2667 = vpop.xlane.xlu0 %2666
    %v2668 = vmul.f32 %v2664, %v417
    %v2669 = vmul.f32 %v2667, %v417
    %v2670 = vadd.f32 %v2668, 1e-05
    %v2671 = vadd.f32 %v2669, 1e-05
    %v2672 = vrsqrt.pop %v2670
    %v2673 = vmul.f32 %v2672, %v2670
    %v2674 = vmul.f32 %v2673, %v2672
    %v2675 = vmul.f32 0.5, %v2674
    %v2676 = vsub.f32 1.5, %v2675
    %v2677 = vmul.f32 %v2672, %v2676
    %vm2678 = vweird.f32 %v2670
    %vm2679 = vweird.f32 %v2672
    %vm2680 = vmor %vm2678, %vm2679
    %v2681 = vsel %vm2680, %v2672, %v2677
    %v2682 = vrsqrt.pop %v2671
    %v2683 = vmul.f32 %v2682, %v2671
    %v2684 = vmul.f32 %v2683, %v2682
    %v2685 = vmul.f32 0.5, %v2684
    %v2686 = vsub.f32 1.5, %v2685
    %v2687 = vmul.f32 %v2682, %v2686
    %vm2688 = vweird.f32 %v2671
    %vm2689 = vweird.f32 %v2682
    %vm2690 = vmor %vm2688, %vm2689
    %v2691 = vsel %vm2690, %v2682, %v2687
    %v2692 = vmul.f32 %v2658, %v2681
    %v2693 = vmul.f32 %v2659, %v2691
    %v2694 = vperm.slane %v1448, 0
    %v2695 = vmul.f32 %v2692, %v2694
    %v2696 = vmul.f32 %v2693, %v2694
    %v2697 = vperm.slane %v1449, 0
    %v2698 = vadd.f32 %v2695, %v2697
    %v2699 = vadd.f32 %v2696, %v2697
    %v2700 = vld [vmem:[%s2 + $0x40] sm:$0xff]
    %v2701 = vld [vmem:[%s2 + $0x48] sm:$0xff]
    %v2702 = vld [vmem:[%s2 + $0x50] sm:$0xff]
    %v2703 = vld [vmem:[%s2 + $0x58] sm:$0xff]
    %v2704 = vld [vmem:[%s2 + $0x60] sm:$0x1]
    %v2705 = vld [vmem:[%s2 + $0x61] sm:$0x1]
    %v2706 = vld [vmem:[%s2 + $0x62] sm:$0x1]
    %v2707 = vld [vmem:[%s3] sm:$0xff]
    %v2708 = vld [vmem:[%s3 + $0x8] sm:$0xff]
    %v2709 = vld [vmem:[%s3 + $0x10] sm:$0xff]
    %v2710 = vld [vmem:[%s3 + $0x18] sm:$0xff]
    %v2711 = vld [vmem:[%s3 + $0x20] sm:$0x1]
    %v2712 = vld [vmem:[%s3 + $0x21] sm:$0x1]
    %v2713 = vld [vmem:[%s3 + $0x22] sm:$0x1]
    %v2714 = vld [vmem:[%s3 + $0x23] sm:$0x1]
    %v2715 = vld [vmem:[%s3 + $0x24] sm:$0x1]
    %v2716 = vperm.slane %v2704, 0
    %v2718 = vsel %vm188, %v2698, 0
    %v2721 = vsel %vm188, %v2699, 0
    %2723 = vmatpush.msra.mxu0 0.0
    %2724 = vmatpush.msra.mxu0 0.0
    %2725 = vmatpush.msra.mxu0 0.0
    %2726 = vmatpush.msra.mxu0 0.0
    %2727 = vmatpush.msra.mxu0 0.0
    %2728 = vmatpush.msra.mxu0 0.0
    %2729 = vmatpush.msra.mxu0 0.0
    %2730 = vmatpush.msra.mxu0 0.0
    %2731 = vmatpush.msra.mxu0 0.0
    %2732 = vmatpush.msra.mxu0 0.0
    %2733 = vmatpush.msra.mxu0 0.0
    %2734 = vmatpush.msra.mxu0 0.0
    %2735 = vmatpush.msra.mxu0 %v2703
    %2736 = vmatpush.msra.mxu0 %v2702
    %2737 = vmatpush.msra.mxu0 %v2701
    %2738 = vmatpush.msra.mxu0 %v2700
    %2739 = vmatmul.f32.gmra.mxu0 %v2718
    %v2740 = vpop.f32.mrf.mxu0
    %v2741 = vadd.f32 %v2716, %v2740
    %2742 = vmatmul.f32.gmra.mxu0 %v2721
    %v2743 = vpop.f32.mrf.mxu0
    %v2744 = vadd.f32 %v2716, %v2743
    %2745 = vdwg.mxu0
    %v2746 = vsel %vm188, %v2741, 0.0
    %2747 = vadd.xlane.f32.xlu0 %v2746
    %v2748 = vpop.xlane.xlu0 %2747
    %v2749 = vsel %vm188, %v2744, 0.0
    %2750 = vadd.xlane.f32.xlu0 %v2749
    %v2751 = vpop.xlane.xlu0 %2750
    %v2752 = vmul.f32 %v2748, %v417
    %v2753 = vmul.f32 %v2751, %v417
    %v2754 = vsub.f32 %v2741, %v2752
    %v2755 = vsub.f32 %v2744, %v2753
    %v2756 = vmul.f32 %v2754, %v2754
    %v2757 = vmul.f32 %v2755, %v2755
    %v2758 = vsel %vm188, %v2756, 0.0
    %2759 = vadd.xlane.f32.xlu0 %v2758
    %v2760 = vpop.xlane.xlu0 %2759
    %v2761 = vsel %vm188, %v2757, 0.0
    %2762 = vadd.xlane.f32.xlu0 %v2761
    %v2763 = vpop.xlane.xlu0 %2762
    %v2764 = vmul.f32 %v2760, %v417
    %v2765 = vmul.f32 %v2763, %v417
    %v2766 = vadd.f32 %v2764, 1e-05
    %v2767 = vadd.f32 %v2765, 1e-05
    %v2768 = vrsqrt.pop %v2766
    %v2769 = vmul.f32 %v2768, %v2766
    %v2770 = vmul.f32 %v2769, %v2768
    %v2771 = vmul.f32 0.5, %v2770
    %v2772 = vsub.f32 1.5, %v2771
    %v2773 = vmul.f32 %v2768, %v2772
    %vm2774 = vweird.f32 %v2766
    %vm2775 = vweird.f32 %v2768
    %vm2776 = vmor %vm2774, %vm2775
    %v2777 = vsel %vm2776, %v2768, %v2773
    %v2778 = vrsqrt.pop %v2767
    %v2779 = vmul.f32 %v2778, %v2767
    %v2780 = vmul.f32 %v2779, %v2778
    %v2781 = vmul.f32 0.5, %v2780
    %v2782 = vsub.f32 1.5, %v2781
    %v2783 = vmul.f32 %v2778, %v2782
    %vm2784 = vweird.f32 %v2767
    %vm2785 = vweird.f32 %v2778
    %vm2786 = vmor %vm2784, %vm2785
    %v2787 = vsel %vm2786, %v2778, %v2783
    %v2788 = vmul.f32 %v2754, %v2777
    %v2789 = vmul.f32 %v2755, %v2787
    %v2790 = vperm.slane %v2705, 0
    %v2791 = vmul.f32 %v2788, %v2790
    %v2792 = vmul.f32 %v2789, %v2790
    %v2793 = vperm.slane %v2706, 0
    %v2794 = vadd.f32 %v2791, %v2793
    %v2795 = vadd.f32 %v2792, %v2793
    %vm2796 = vcmp.ge.f32.partialorder %v2794, 0.0
    %vm2797 = vcmp.ge.f32.partialorder %v2795, 0.0
    %v2798 = vmul.f32 %v2794, 0.01
    %v2799 = vmul.f32 %v2795, 0.01
    %v2800 = vsel %vm2796, %v2794, %v2798
    %v2801 = vsel %vm2797, %v2795, %v2799
    %v2802 = vperm.slane %v2711, 0
    %v2804 = vsel %vm188, %v2800, 0
    %v2807 = vsel %vm188, %v2801, 0
    %2809 = vmatpush.msra.mxu0 0.0
    %2810 = vmatpush.msra.mxu0 0.0
    %2811 = vmatpush.msra.mxu0 0.0
    %2812 = vmatpush.msra.mxu0 0.0
    %2813 = vmatpush.msra.mxu0 0.0
    %2814 = vmatpush.msra.mxu0 0.0
    %2815 = vmatpush.msra.mxu0 0.0
    %2816 = vmatpush.msra.mxu0 0.0
    %2817 = vmatpush.msra.mxu0 0.0
    %2818 = vmatpush.msra.mxu0 0.0
    %2819 = vmatpush.msra.mxu0 0.0
    %2820 = vmatpush.msra.mxu0 0.0
    %2821 = vmatpush.msra.mxu0 %v2710
    %2822 = vmatpush.msra.mxu0 %v2709
    %2823 = vmatpush.msra.mxu0 %v2708
    %2824 = vmatpush.msra.mxu0 %v2707
    %2825 = vmatmul.f32.gmra.mxu0 %v2804
    %v2826 = vpop.f32.mrf.mxu0
    %v2827 = vadd.f32 %v2802, %v2826
    %2828 = vmatmul.f32.gmra.mxu0 %v2807
    %v2829 = vpop.f32.mrf.mxu0
    %v2830 = vadd.f32 %v2802, %v2829
    %2831 = vdwg.mxu0
    %vm2832 = vcmask 130048
    %v2833 = vsel %vm2832, %v2827, 0.0
    %2834 = vadd.xlane.f32.xlu0 %v2833
    %v2835 = vpop.xlane.xlu0 %2834
    %v2836 = vsel %vm2832, %v2830, 0.0
    %2837 = vadd.xlane.f32.xlu0 %v2836
    %v2838 = vpop.xlane.xlu0 %2837
    %v2839 = vrcp.pop 16.0
    %v2840 = vmul.f32 16.0, %v2839
    %v2841 = vsub.f32 1.0, %v2840
    %v2842 = vmul.f32 %v2839, %v2841
    %v2843 = vadd.f32 %v2839, %v2842
    %vm2844 = vweird.f32 %v2839
    %v2845 = vsel %vm2844, %v2839, %v2843
    %v2846 = vmul.f32 %v2835, %v2845
    %v2847 = vmul.f32 %v2838, %v2845
    %v2848 = vsub.f32 %v2827, %v2846
    %v2849 = vsub.f32 %v2830, %v2847
    %v2850 = vmul.f32 %v2848, %v2848
    %v2851 = vmul.f32 %v2849, %v2849
    %v2852 = vsel %vm2832, %v2850, 0.0
    %2853 = vadd.xlane.f32.xlu0 %v2852
    %v2854 = vpop.xlane.xlu0 %2853
    %v2855 = vsel %vm2832, %v2851, 0.0
    %2856 = vadd.xlane.f32.xlu0 %v2855
    %v2857 = vpop.xlane.xlu0 %2856
    %v2858 = vmul.f32 %v2854, %v2845
    %v2859 = vmul.f32 %v2857, %v2845
    %v2860 = vadd.f32 %v2858, 1e-05
    %v2861 = vadd.f32 %v2859, 1e-05
    %v2862 = vrsqrt.pop %v2860
    %v2863 = vmul.f32 %v2862, %v2860
    %v2864 = vmul.f32 %v2863, %v2862
    %v2865 = vmul.f32 0.5, %v2864
    %v2866 = vsub.f32 1.5, %v2865
    %v2867 = vmul.f32 %v2862, %v2866
    %vm2868 = vweird.f32 %v2860
    %vm2869 = vweird.f32 %v2862
    %vm2870 = vmor %vm2868, %vm2869
    %v2871 = vsel %vm2870, %v2862, %v2867
    %v2872 = vrsqrt.pop %v2861
    %v2873 = vmul.f32 %v2872, %v2861
    %v2874 = vmul.f32 %v2873, %v2872
    %v2875 = vmul.f32 0.5, %v2874
    %v2876 = vsub.f32 1.5, %v2875
    %v2877 = vmul.f32 %v2872, %v2876
    %vm2878 = vweird.f32 %v2861
    %vm2879 = vweird.f32 %v2872
    %vm2880 = vmor %vm2878, %vm2879
    %v2881 = vsel %vm2880, %v2872, %v2877
    %v2882 = vmul.f32 %v2848, %v2871
    %v2883 = vmul.f32 %v2849, %v2881
    %v2884 = vperm.slane %v2712, 0
    %v2885 = vmul.f32 %v2882, %v2884
    %v2886 = vmul.f32 %v2883, %v2884
    %v2887 = vperm.slane %v2713, 0
    %v2888 = vadd.f32 %v2885, %v2887
    %v2889 = vadd.f32 %v2886, %v2887
    %vm2890 = vcmp.ge.f32.partialorder %v2888, 0.0
    %vm2891 = vcmp.ge.f32.partialorder %v2889, 0.0
    %v2892 = vmul.f32 %v2888, 0.01
    %v2893 = vmul.f32 %v2889, 0.01
    %v2894 = vsel %vm2890, %v2888, %v2892
    %v2895 = vsel %vm2891, %v2889, %v2893
    %v2897 = vsel %vm2832, %v2714, 0
    %v2900 = vsel %vm2832, %v2894, 0
    %v2903 = vsel %vm2832, %v2895, 0
    %2905 = vmatpush.xpose.msra.mxu0 0.0
    %2906 = vmatpush.xpose.msra.mxu0 0.0
    %2907 = vmatpush.xpose.msra.mxu0 0.0
    %2908 = vmatpush.xpose.msra.mxu0 0.0
    %2909 = vmatpush.xpose.msra.mxu0 0.0
    %2910 = vmatpush.xpose.msra.mxu0 0.0
    %2911 = vmatpush.xpose.msra.mxu0 0.0
    %2912 = vmatpush.xpose.msra.mxu0 0.0
    %2913 = vmatpush.xpose.msra.mxu0 0.0
    %2914 = vmatpush.xpose.msra.mxu0 0.0
    %2915 = vmatpush.xpose.msra.mxu0 0.0
    %2916 = vmatpush.xpose.msra.mxu0 0.0
    %2917 = vmatpush.xpose.msra.mxu0 0.0
    %2918 = vmatpush.xpose.msra.mxu0 0.0
    %2919 = vmatpush.xpose.msra.mxu0 %v2903
    %2920 = vmatpush.xpose.msra.mxu0 %v2900
    %2921 = vmatmul.f32.gmra.mxu0 %v2897
    %v2922 = vpop.f32.mrf.mxu0
    %v2923 = vadd.f32 %v2715, %v2922
    %2924 = vdwg.mxu0
    %vm2925 = vcmask 122880
    %2926 = vst.msk [vmem:[#allocation5] sm:$0x1] %vm2925, %v2923
    // Predicated region
    $region46: #{tpu_custom_call.1} parent=1 // pred_check
      _
    $region47: #{tpu_custom_call.1} parent=1 // pred_check_branch
      %2928 = sbr.rel (0) target = $region49
    $region48: #{tpu_custom_call.1} parent=1 // pred_region
      %2930 = vsyncadd [#allocation6], 0
      %s2932 = sshll.u32 [#allocation5], 4
      %s2933 = int_to_ptr.vmem [resolvable:$true] %s2932
      %s2934 = sshll.u32 %s9, 4
      %s2935 = int_to_ptr.hbm [resolvable:$true] %s2934
      %2937 = dma.vmem_to_hbm [thread:$0]  %s2933, 16, %s2935, [#allocation6]
    $region49: #{tpu_custom_call.1} parent=1 // pred_fallthru
      _
    // Predicated region
    $region50: #{tpu_custom_call.1} parent=1 // pred_check
      _
    $region51: #{tpu_custom_call.1} parent=1 // pred_check_branch
      %2939 = sbr.rel (0) target = $region53
    $region52: #{tpu_custom_call.1} parent=1 // pred_region
      %2941 = dma.done [#allocation6], 16
    $region53: #{tpu_custom_call.1} parent=1 // pred_fallthru
      _
    %2942 = vsyncpa [#allocation6], 1
  %2943 = vsyncmov [#allocation4]
  %s2944 = vpop.sfrf %2943
  %p2945 = scmp.eq.s32.totalorder %s2944, 0
  %p2946 = pneg %p2945
  %2948 = shalt.err (%p2946)
  %s2949 = scalar_lea.sflag [#allocation4], 1
  %2950 = vsyncmov %s2949
  %s2951 = vpop.sfrf %2950
  %p2952 = scmp.eq.s32.totalorder %s2951, 0
  %p2953 = pneg %p2952
  %2955 = shalt.err (%p2953)
  %s2956 = scalar_lea.sflag [#allocation4], 2
  %2957 = vsyncmov %s2956
  %s2958 = vpop.sfrf %2957
  %p2959 = scmp.eq.s32.totalorder %s2958, 0
  %p2960 = pneg %p2959
  %2962 = shalt.err (%p2960)
  %s2963 = scalar_lea.sflag [#allocation4], 3
  %2964 = vsyncmov %s2963
  %s2965 = vpop.sfrf %2964
  %p2966 = scmp.eq.s32.totalorder %s2965, 0
  %p2967 = pneg %p2966
  %2969 = shalt.err (%p2967)

</llo_original>
